<compile_context>
chip_gen: v6e
topology: v6e:2x2x1
jax: 0.10.0
libtpu: 0.0.40
codegen_flags: <defaults>
</compile_context>

<pallas_src>
import functools
import math

import jax
import jax.numpy as jnp
from jax.experimental import pallas as pl
from jax.experimental.pallas import tpu as pltpu


def _round_up(x, m):
    return (x + m - 1) // m * m


def _pick_tn(coutp, max_tn=256):
    """Largest multiple of 128 that divides coutp and is <= max_tn."""
    best = 128
    tn = 128
    while tn <= min(coutp, max_tn):
        if coutp % tn == 0:
            best = tn
        tn += 128
    return best


# ----------------------------------------------------------------------------
# Pallas kernel: 3x3 / stride-2 conv as 9 tap-accumulated MXU dots over a
# space-to-depth packed input block.  Handles a block of `bb` batch elements
# per grid step by concatenating their tap slices along M (better MXU fill
# for small spatial problems like the P7 conv).
# ----------------------------------------------------------------------------
def _conv3x3_s2_kernel(x_ref, w_ref, b_ref, o_ref, *, wo2):
    # x_ref: (bb, Ho2*Wo2, 4*Cp) bf16  space-to-depth packed, zero padded
    # w_ref: (9, Cp, TN)         bf16  (kh*3+kw, cin, cout-tile)
    # b_ref: (1, TN)             f32
    # o_ref: (bb, m_out, TN)     m_out sublane-aligned (mult of 8)
    bb, m_out, tn = o_ref.shape
    cp = w_ref.shape[1]

    acc = jnp.zeros((bb * m_out, tn), jnp.float32)
    for kh in range(3):
        dh, ph = kh // 2, kh % 2          # group-row offset / row phase
        for kw in range(3):
            dw, pw = kw // 2, kw % 2      # group-col offset / col phase
            r0 = dh * wo2 + dw            # static row offset (sublane dim)
            c0 = (ph * 2 + pw) * cp       # static 128-aligned lane offset
            if bb == 1:
                lhs = x_ref[0, pl.ds(r0, m_out), pl.ds(c0, cp)]
            else:
                lhs = jnp.concatenate(
                    [x_ref[b, pl.ds(r0, m_out), pl.ds(c0, cp)]
                     for b in range(bb)], axis=0)
            acc = acc + jnp.dot(lhs, w_ref[kh * 3 + kw],
                                preferred_element_type=jnp.float32)

    out = (acc + b_ref[...]).astype(o_ref.dtype)
    for b in range(bb):
        o_ref[b] = out[b * m_out:(b + 1) * m_out]


# ----------------------------------------------------------------------------
# Plain-JAX glue: padding / packing (pure layout transforms, no duplication).
# ----------------------------------------------------------------------------
def _space_to_depth_pad(x_nhwc, cp, relu=False):
    """(N,H,W,C) -> (N, Ho2*Wo2, 4*cp) bf16: optional ReLU (fused with the
    cast), spatial pad=1 (+alignment), channel zero-pad to cp, stride-2
    row/col phases packed into channels.  Also returns the sublane-padded
    output row count m_out."""
    n, h, w, c = x_nhwc.shape
    ho = (h - 1) // 2 + 1
    wo = (w - 1) // 2 + 1
    wo2 = wo + 1                               # +1 halo/spare column
    m_out = _round_up(ho * wo2, 8)             # sublane-aligned output rows
    # Enough packed rows for the taps of every (padded) output row.
    ho2 = max(ho + 2, -(-(m_out + wo2 + 1) // wo2))
    hp2, wp2 = 2 * ho2, 2 * wo2

    x = jnp.maximum(x_nhwc, 0) if relu else x_nhwc
    xp = jnp.pad(x.astype(jnp.bfloat16),
                 ((0, 0), (1, hp2 - h - 1), (1, wp2 - w - 1), (0, cp - c)))
    xs = xp.reshape(n, ho2, 2, wo2, 2, cp)
    xs = xs.transpose(0, 1, 3, 2, 4, 5).reshape(n, ho2 * wo2, 4 * cp)
    return xs, ho, wo, wo2, m_out


def _pack_weights(w_oihw, bias, cp, coutp):
    """(Cout,Cin,3,3) -> (9, cp, coutp) bf16 matching (kh,kw,cin) tap order."""
    cout, cin, kh, kw = w_oihw.shape
    wt = jnp.transpose(w_oihw, (2, 3, 1, 0)).reshape(kh * kw, cin, cout)
    wt = jnp.pad(wt, ((0, 0), (0, cp - cin), (0, coutp - cout)))
    bt = jnp.pad(bias.astype(jnp.float32), (0, coutp - cout)).reshape(1, coutp)
    return wt.astype(jnp.bfloat16), bt


def _conv3x3_s2_p1(x_nhwc, w_oihw, bias, *, fuse_input_relu=False,
                   batch_block=1, max_tn=256):
    """3x3 / stride-2 / pad-1 conv.  Returns (N, Ho, Wo, Coutp) with the
    output channel dim zero-padded to a multiple of 128 (lane dense)."""
    n, h, w, c = x_nhwc.shape
    cout = w_oihw.shape[0]
    cp = _round_up(c, 128)
    coutp = _round_up(cout, 128)
    tn = _pick_tn(coutp, max_tn)
    bb = max(1, math.gcd(n, batch_block))

    xs, ho, wo, wo2, m_out = _space_to_depth_pad(x_nhwc, cp,
                                                 relu=fuse_input_relu)
    wk, bk = _pack_weights(w_oihw, bias, cp, coutp)

    m2 = xs.shape[1]                  # Ho2 * Wo2
    cout_tiles = coutp // tn
    n_blocks = n // bb
    out_dtype = x_nhwc.dtype
    out_itemsize = jnp.dtype(out_dtype).itemsize

    kernel = functools.partial(_conv3x3_s2_kernel, wo2=wo2)

    cost = pl.CostEstimate(
        flops=2 * n * m_out * 9 * cp * coutp,
        transcendentals=0,
        bytes_accessed=(xs.size * xs.dtype.itemsize            # input read once
                        + n_blocks * (wk.size * wk.dtype.itemsize
                                      + bk.size * bk.dtype.itemsize)
                        + n * m_out * coutp * out_itemsize))

    # Double-buffered per-step working set; only raise the scoped-VMEM limit
    # when it would actually be needed (it never is at FPN P5-level sizes).
    vmem_need = 2 * (bb * m2 * 4 * cp * 2
                     + 9 * cp * tn * 2
                     + tn * 4
                     + bb * m_out * tn * out_itemsize)
    cparams = dict(dimension_semantics=("parallel", "parallel"))
    if vmem_need > (12 << 20):
        cparams["vmem_limit_bytes"] = min(int(vmem_need * 1.5) + (4 << 20),
                                          100 << 20)

    out = pl.pallas_call(
        kernel,
        out_shape=jax.ShapeDtypeStruct((n, m_out, coutp), out_dtype),
        # Outer axis = batch blocks, inner axis = cout tiles: the big packed
        # input block's index depends only on the outer axis, so it stays
        # VMEM-resident across cout tiles (DMA'd from HBM exactly once).
        grid=(n_blocks, cout_tiles),
        in_specs=[
            pl.BlockSpec((bb, m2, 4 * cp), lambda nb, co: (nb, 0, 0)),  # input
            pl.BlockSpec((9, cp, tn), lambda nb, co: (0, 0, co)),       # weights
            pl.BlockSpec((1, tn), lambda nb, co: (0, co)),              # bias
        ],
        out_specs=pl.BlockSpec((bb, m_out, tn), lambda nb, co: (nb, 0, co)),
        compiler_params=pltpu.CompilerParams(**cparams),
        cost_estimate=cost,
    )(xs, wk, bk)

    # (N, m_out, Coutp) -> (N, Ho, Wo, Coutp): drop the sublane-padding rows
    # and the spare space-to-depth column.
    out = out[:, :ho * wo2, :].reshape(n, ho, wo2, coutp)
    return out[:, :, :wo, :]


# ----------------------------------------------------------------------------
# Module: parameter init + forward
# ----------------------------------------------------------------------------
def init_last_level_p6p7(key, in_channels, out_channels):
    # nn.Conv2d(out_channels, out_channels, 3): weight (Cout, Cin=Cout, 3, 3)
    # kaiming_uniform_(a=1): bound = sqrt(6 / ((1 + a^2) * fan_in)), fan_in = Cin*9
    fan_in = out_channels * 3 * 3
    bound = math.sqrt(6.0 / ((1.0 + 1.0 ** 2) * fan_in))
    k6, k7 = jax.random.split(key)
    # (use_P5 = in_channels == out_channels is a routing flag in the original
    #  module and does not affect this forward pass.)
    return {
        "w6": jax.random.uniform(k6, (out_channels, out_channels, 3, 3),
                                 jnp.float32, -bound, bound),
        "b6": jnp.zeros((out_channels,), jnp.float32),
        "w7": jax.random.uniform(k7, (out_channels, out_channels, 3, 3),
                                 jnp.float32, -bound, bound),
        "b7": jnp.zeros((out_channels,), jnp.float32),
    }


def last_level_p6p7_forward(params, p5_nchw):
    # NCHW in / NCHW out (PyTorch convention); NHWC + padded channels inside.
    cout = params["w6"].shape[0]
    n = p5_nchw.shape[0]
    x = jnp.transpose(p5_nchw, (0, 2, 3, 1))
    p6p = _conv3x3_s2_p1(x, params["w6"], params["b6"],
                         fuse_input_relu=False, batch_block=1)
    # p6p keeps its (exactly zero) channel padding -> feeds conv2 directly;
    # the ReLU is folded into conv2's space-to-depth pack.  The tiny P7 conv
    # processes the whole batch in one grid step.
    p7p = _conv3x3_s2_p1(p6p, params["w7"], params["b7"],
                         fuse_input_relu=True, batch_block=n)
    p6 = jnp.transpose(p6p[..., :cout], (0, 3, 1, 2))
    p7 = jnp.transpose(p7p[..., :cout], (0, 3, 1, 2))
    return [p6, p7]


# ----------------------------------------------------------------------------
# Reference (pure JAX, same bf16 inputs / f32 accumulation) for the self-check.
# ----------------------------------------------------------------------------
def _ref_conv_bf16(x_nchw, w, b):
    out = jax.lax.conv_general_dilated(
        x_nchw.astype(jnp.bfloat16), w.astype(jnp.bfloat16),
        window_strides=(2, 2), padding=((1, 1), (1, 1)),
        dimension_numbers=("NCHW", "OIHW", "NCHW"),
        preferred_element_type=jnp.float32)
    return out + b.reshape(1, -1, 1, 1)


def _ref_forward(params, p5):
    p6 = _ref_conv_bf16(p5, params["w6"], params["b6"])
    p7 = _ref_conv_bf16(jnp.maximum(p6, 0.0), params["w7"], params["b7"])
    return [p6, p7]


if __name__ == "__main__":
    key = jax.random.PRNGKey(0)
    k_param, k_x, k_x2 = jax.random.split(key, 3)

    in_channels, out_channels = 4, 4
    params = init_last_level_p6p7(k_param, in_channels, out_channels)

    fwd = jax.jit(last_level_p6p7_forward)

    # Spec-sized check: batch=2, channels=4, spatial=16x16 (NCHW).
    p5 = jax.random.normal(k_x, (2, out_channels, 16, 16), jnp.float32)
    p6, p7 = fwd(params, p5)
    jax.block_until_ready(p6)
    jax.block_until_ready(p7)
    p6_ref, p7_ref = _ref_forward(params, p5)
    assert p6.shape == (2, 4, 8, 8) and p7.shape == (2, 4, 4, 4)
    assert jnp.allclose(p6, p6_ref, atol=2e-2, rtol=2e-2), \
        float(jnp.max(jnp.abs(p6 - p6_ref)))
    assert jnp.allclose(p7, p7_ref, atol=2e-2, rtol=2e-2), \
        float(jnp.max(jnp.abs(p7 - p7_ref)))

    # Odd spatial size check (exercises the halo / spare-column bookkeeping).
    p5b = jax.random.normal(k_x2, (1, out_channels, 15, 17), jnp.float32)
    p6b, p7b = fwd(params, p5b)
    jax.block_until_ready(p6b)
    jax.block_until_ready(p7b)
    p6b_ref, p7b_ref = _ref_forward(params, p5b)
    assert p6b.shape == (1, 4, 8, 9) and p7b.shape == (1, 4, 4, 5)
    assert jnp.allclose(p6b, p6b_ref, atol=2e-2, rtol=2e-2), \
        float(jnp.max(jnp.abs(p6b - p6b_ref)))
    assert jnp.allclose(p7b, p7b_ref, atol=2e-2, rtol=2e-2), \
        float(jnp.max(jnp.abs(p7b - p7b_ref)))

    print("KERNEL_OK")
</pallas_src>

<mosaic_0001>
module attributes {stable_mosaic.version = 11 : i64} {
  func.func @_conv3x3_s2_kernel(%arg0: i32, %arg1: i32, %arg2: memref<1x90x512xbf16, #tpu.memory_space<vmem>>, %arg3: memref<9x128x128xbf16, #tpu.memory_space<vmem>>, %arg4: memref<1x128xf32, #tpu.memory_space<vmem>>, %arg5: memref<1x72x128xf32, #tpu.memory_space<vmem>>) attributes {dimension_semantics = [#tpu.dimension_semantics<parallel>, #tpu.dimension_semantics<parallel>], iteration_bounds = array<i64: 2, 1>, scalar_prefetch = 0 : i64, scratch_operands = 0 : i64, tpu.core_type = #tpu.core_type<tc>, window_params = [{transform_indices = @transform_0, window_bounds = array<i64: 1, 90, 512>}, {transform_indices = @transform_1, window_bounds = array<i64: 9, 128, 128>}, {transform_indices = @transform_2, window_bounds = array<i64: 1, 128>}, {transform_indices = @transform_3, window_bounds = array<i64: 1, 72, 128>}]} {
    %cst = arith.constant 0.000000e+00 : f32
    %0 = vector.broadcast %cst : f32 to vector<72x128xf32>
    %c0 = arith.constant 0 : index
    %c0_0 = arith.constant 0 : index
    %c0_1 = arith.constant 0 : index
    %1 = vector.load %arg2[%c0, %c0_0, %c0_1] : memref<1x90x512xbf16, #tpu.memory_space<vmem>>, vector<1x72x128xbf16>
    %2 = vector.shape_cast %1 : vector<1x72x128xbf16> to vector<72x128xbf16>
    %c0_2 = arith.constant 0 : index
    %c0_3 = arith.constant 0 : index
    %c0_4 = arith.constant 0 : index
    %3 = vector.load %arg3[%c0_2, %c0_3, %c0_4] : memref<9x128x128xbf16, #tpu.memory_space<vmem>>, vector<1x128x128xbf16>
    %4 = vector.shape_cast %3 : vector<1x128x128xbf16> to vector<128x128xbf16>
    %cst_5 = arith.constant dense<0.000000e+00> : vector<72x128xf32>
    %5 = tpu.matmul %2, %4, %cst_5 {dimension_numbers = #tpu.dot_dimension_numbers<[1], [0], [0], [1], [0, 0, 1, 1], [], []>} : vector<72x128xbf16>, vector<128x128xbf16>, vector<72x128xf32> -> vector<72x128xf32>
    %6 = arith.addf %0, %5 : vector<72x128xf32>
    %c0_6 = arith.constant 0 : index
    %c0_7 = arith.constant 0 : index
    %c128 = arith.constant 128 : index
    %7 = vector.load %arg2[%c0_6, %c0_7, %c128] : memref<1x90x512xbf16, #tpu.memory_space<vmem>>, vector<1x72x128xbf16>
    %8 = vector.shape_cast %7 : vector<1x72x128xbf16> to vector<72x128xbf16>
    %c1 = arith.constant 1 : index
    %c0_8 = arith.constant 0 : index
    %c0_9 = arith.constant 0 : index
    %9 = vector.load %arg3[%c1, %c0_8, %c0_9] : memref<9x128x128xbf16, #tpu.memory_space<vmem>>, vector<1x128x128xbf16>
    %10 = vector.shape_cast %9 : vector<1x128x128xbf16> to vector<128x128xbf16>
    %cst_10 = arith.constant dense<0.000000e+00> : vector<72x128xf32>
    %11 = tpu.matmul %8, %10, %cst_10 {dimension_numbers = #tpu.dot_dimension_numbers<[1], [0], [0], [1], [0, 0, 1, 1], [], []>} : vector<72x128xbf16>, vector<128x128xbf16>, vector<72x128xf32> -> vector<72x128xf32>
    %12 = arith.addf %6, %11 : vector<72x128xf32>
    %c0_11 = arith.constant 0 : index
    %c1_12 = arith.constant 1 : index
    %c0_13 = arith.constant 0 : index
    %13 = vector.load %arg2[%c0_11, %c1_12, %c0_13] : memref<1x90x512xbf16, #tpu.memory_space<vmem>>, vector<1x72x128xbf16>
    %14 = vector.shape_cast %13 : vector<1x72x128xbf16> to vector<72x128xbf16>
    %c2 = arith.constant 2 : index
    %c0_14 = arith.constant 0 : index
    %c0_15 = arith.constant 0 : index
    %15 = vector.load %arg3[%c2, %c0_14, %c0_15] : memref<9x128x128xbf16, #tpu.memory_space<vmem>>, vector<1x128x128xbf16>
    %16 = vector.shape_cast %15 : vector<1x128x128xbf16> to vector<128x128xbf16>
    %cst_16 = arith.constant dense<0.000000e+00> : vector<72x128xf32>
    %17 = tpu.matmul %14, %16, %cst_16 {dimension_numbers = #tpu.dot_dimension_numbers<[1], [0], [0], [1], [0, 0, 1, 1], [], []>} : vector<72x128xbf16>, vector<128x128xbf16>, vector<72x128xf32> -> vector<72x128xf32>
    %18 = arith.addf %12, %17 : vector<72x128xf32>
    %c0_17 = arith.constant 0 : index
    %c0_18 = arith.constant 0 : index
    %c256 = arith.constant 256 : index
    %19 = vector.load %arg2[%c0_17, %c0_18, %c256] : memref<1x90x512xbf16, #tpu.memory_space<vmem>>, vector<1x72x128xbf16>
    %20 = vector.shape_cast %19 : vector<1x72x128xbf16> to vector<72x128xbf16>
    %c3 = arith.constant 3 : index
    %c0_19 = arith.constant 0 : index
    %c0_20 = arith.constant 0 : index
    %21 = vector.load %arg3[%c3, %c0_19, %c0_20] : memref<9x128x128xbf16, #tpu.memory_space<vmem>>, vector<1x128x128xbf16>
    %22 = vector.shape_cast %21 : vector<1x128x128xbf16> to vector<128x128xbf16>
    %cst_21 = arith.constant dense<0.000000e+00> : vector<72x128xf32>
    %23 = tpu.matmul %20, %22, %cst_21 {dimension_numbers = #tpu.dot_dimension_numbers<[1], [0], [0], [1], [0, 0, 1, 1], [], []>} : vector<72x128xbf16>, vector<128x128xbf16>, vector<72x128xf32> -> vector<72x128xf32>
    %24 = arith.addf %18, %23 : vector<72x128xf32>
    %c0_22 = arith.constant 0 : index
    %c0_23 = arith.constant 0 : index
    %c384 = arith.constant 384 : index
    %25 = vector.load %arg2[%c0_22, %c0_23, %c384] : memref<1x90x512xbf16, #tpu.memory_space<vmem>>, vector<1x72x128xbf16>
    %26 = vector.shape_cast %25 : vector<1x72x128xbf16> to vector<72x128xbf16>
    %c4 = arith.constant 4 : index
    %c0_24 = arith.constant 0 : index
    %c0_25 = arith.constant 0 : index
    %27 = vector.load %arg3[%c4, %c0_24, %c0_25] : memref<9x128x128xbf16, #tpu.memory_space<vmem>>, vector<1x128x128xbf16>
    %28 = vector.shape_cast %27 : vector<1x128x128xbf16> to vector<128x128xbf16>
    %cst_26 = arith.constant dense<0.000000e+00> : vector<72x128xf32>
    %29 = tpu.matmul %26, %28, %cst_26 {dimension_numbers = #tpu.dot_dimension_numbers<[1], [0], [0], [1], [0, 0, 1, 1], [], []>} : vector<72x128xbf16>, vector<128x128xbf16>, vector<72x128xf32> -> vector<72x128xf32>
    %30 = arith.addf %24, %29 : vector<72x128xf32>
    %c0_27 = arith.constant 0 : index
    %c1_28 = arith.constant 1 : index
    %c256_29 = arith.constant 256 : index
    %31 = vector.load %arg2[%c0_27, %c1_28, %c256_29] : memref<1x90x512xbf16, #tpu.memory_space<vmem>>, vector<1x72x128xbf16>
    %32 = vector.shape_cast %31 : vector<1x72x128xbf16> to vector<72x128xbf16>
    %c5 = arith.constant 5 : index
    %c0_30 = arith.constant 0 : index
    %c0_31 = arith.constant 0 : index
    %33 = vector.load %arg3[%c5, %c0_30, %c0_31] : memref<9x128x128xbf16, #tpu.memory_space<vmem>>, vector<1x128x128xbf16>
    %34 = vector.shape_cast %33 : vector<1x128x128xbf16> to vector<128x128xbf16>
    %cst_32 = arith.constant dense<0.000000e+00> : vector<72x128xf32>
    %35 = tpu.matmul %32, %34, %cst_32 {dimension_numbers = #tpu.dot_dimension_numbers<[1], [0], [0], [1], [0, 0, 1, 1], [], []>} : vector<72x128xbf16>, vector<128x128xbf16>, vector<72x128xf32> -> vector<72x128xf32>
    %36 = arith.addf %30, %35 : vector<72x128xf32>
    %c0_33 = arith.constant 0 : index
    %c9 = arith.constant 9 : index
    %c0_34 = arith.constant 0 : index
    %37 = vector.load %arg2[%c0_33, %c9, %c0_34] : memref<1x90x512xbf16, #tpu.memory_space<vmem>>, vector<1x72x128xbf16>
    %38 = vector.shape_cast %37 : vector<1x72x128xbf16> to vector<72x128xbf16>
    %c6 = arith.constant 6 : index
    %c0_35 = arith.constant 0 : index
    %c0_36 = arith.constant 0 : index
    %39 = vector.load %arg3[%c6, %c0_35, %c0_36] : memref<9x128x128xbf16, #tpu.memory_space<vmem>>, vector<1x128x128xbf16>
    %40 = vector.shape_cast %39 : vector<1x128x128xbf16> to vector<128x128xbf16>
    %cst_37 = arith.constant dense<0.000000e+00> : vector<72x128xf32>
    %41 = tpu.matmul %38, %40, %cst_37 {dimension_numbers = #tpu.dot_dimension_numbers<[1], [0], [0], [1], [0, 0, 1, 1], [], []>} : vector<72x128xbf16>, vector<128x128xbf16>, vector<72x128xf32> -> vector<72x128xf32>
    %42 = arith.addf %36, %41 : vector<72x128xf32>
    %c0_38 = arith.constant 0 : index
    %c9_39 = arith.constant 9 : index
    %c128_40 = arith.constant 128 : index
    %43 = vector.load %arg2[%c0_38, %c9_39, %c128_40] : memref<1x90x512xbf16, #tpu.memory_space<vmem>>, vector<1x72x128xbf16>
    %44 = vector.shape_cast %43 : vector<1x72x128xbf16> to vector<72x128xbf16>
    %c7 = arith.constant 7 : index
    %c0_41 = arith.constant 0 : index
    %c0_42 = arith.constant 0 : index
    %45 = vector.load %arg3[%c7, %c0_41, %c0_42] : memref<9x128x128xbf16, #tpu.memory_space<vmem>>, vector<1x128x128xbf16>
    %46 = vector.shape_cast %45 : vector<1x128x128xbf16> to vector<128x128xbf16>
    %cst_43 = arith.constant dense<0.000000e+00> : vector<72x128xf32>
    %47 = tpu.matmul %44, %46, %cst_43 {dimension_numbers = #tpu.dot_dimension_numbers<[1], [0], [0], [1], [0, 0, 1, 1], [], []>} : vector<72x128xbf16>, vector<128x128xbf16>, vector<72x128xf32> -> vector<72x128xf32>
    %48 = arith.addf %42, %47 : vector<72x128xf32>
    %c0_44 = arith.constant 0 : index
    %c10 = arith.constant 10 : index
    %c0_45 = arith.constant 0 : index
    %49 = vector.load %arg2[%c0_44, %c10, %c0_45] : memref<1x90x512xbf16, #tpu.memory_space<vmem>>, vector<1x72x128xbf16>
    %50 = vector.shape_cast %49 : vector<1x72x128xbf16> to vector<72x128xbf16>
    %c8 = arith.constant 8 : index
    %c0_46 = arith.constant 0 : index
    %c0_47 = arith.constant 0 : index
    %51 = vector.load %arg3[%c8, %c0_46, %c0_47] : memref<9x128x128xbf16, #tpu.memory_space<vmem>>, vector<1x128x128xbf16>
    %52 = vector.shape_cast %51 : vector<1x128x128xbf16> to vector<128x128xbf16>
    %cst_48 = arith.constant dense<0.000000e+00> : vector<72x128xf32>
    %53 = tpu.matmul %50, %52, %cst_48 {dimension_numbers = #tpu.dot_dimension_numbers<[1], [0], [0], [1], [0, 0, 1, 1], [], []>} : vector<72x128xbf16>, vector<128x128xbf16>, vector<72x128xf32> -> vector<72x128xf32>
    %54 = arith.addf %48, %53 : vector<72x128xf32>
    %c0_49 = arith.constant 0 : index
    %c0_50 = arith.constant 0 : index
    %55 = vector.load %arg4[%c0_49, %c0_50] : memref<1x128xf32, #tpu.memory_space<vmem>>, vector<1x128xf32>
    %56 = vector.broadcast %55 : vector<1x128xf32> to vector<72x128xf32>
    %57 = arith.addf %54, %56 : vector<72x128xf32>
    %c0_51 = arith.constant 0 : index
    %c0_52 = arith.constant 0 : index
    %c0_53 = arith.constant 0 : index
    %58 = vector.load %arg5[%c0_51, %c0_52, %c0_53] : memref<1x72x128xf32, #tpu.memory_space<vmem>>, vector<1x72x128xf32>
    %59 = vector.shape_cast %58 : vector<1x72x128xf32> to vector<72x128xf32>
    %60 = vector.shape_cast %57 : vector<72x128xf32> to vector<1x72x128xf32>
    tpu.vector_store %arg5[%c0_51, %c0_52, %c0_53], %60 {strides = array<i32>} : memref<1x72x128xf32, #tpu.memory_space<vmem>>, vector<1x72x128xf32>,
    return
  }
  func.func @transform_0(%arg0: i32, %arg1: i32) -> (i32, i32, i32) {
    %c0_i32 = arith.constant 0 : i32
    %c0_i32_0 = arith.constant 0 : i32
    %c0_i32_1 = arith.constant 0 : i32
    return %arg0, %c0_i32, %c0_i32_0 : i32, i32, i32
  }
  func.func @transform_1(%arg0: i32, %arg1: i32) -> (i32, i32, i32) {
    %c0_i32 = arith.constant 0 : i32
    %c0_i32_0 = arith.constant 0 : i32
    %c0_i32_1 = arith.constant 0 : i32
    return %c0_i32, %c0_i32_0, %arg1 : i32, i32, i32
  }
  func.func @transform_2(%arg0: i32, %arg1: i32) -> (i32, i32) {
    %c0_i32 = arith.constant 0 : i32
    %c0_i32_0 = arith.constant 0 : i32
    return %c0_i32, %arg1 : i32, i32
  }
  func.func @transform_3(%arg0: i32, %arg1: i32) -> (i32, i32, i32) {
    %c0_i32 = arith.constant 0 : i32
    %c0_i32_0 = arith.constant 0 : i32
    return %arg0, %c0_i32, %arg1 : i32, i32, i32
  }
}

module attributes {stable_mosaic.version = 11 : i64} {
  func.func @_conv3x3_s2_kernel(%arg0: i32, %arg1: i32, %arg2: memref<2x30x512xbf16, #tpu.memory_space<vmem>>, %arg3: memref<9x128x128xbf16, #tpu.memory_space<vmem>>, %arg4: memref<1x128xf32, #tpu.memory_space<vmem>>, %arg5: memref<2x24x128xf32, #tpu.memory_space<vmem>>) attributes {dimension_semantics = [#tpu.dimension_semantics<parallel>, #tpu.dimension_semantics<parallel>], iteration_bounds = array<i64: 1, 1>, scalar_prefetch = 0 : i64, scratch_operands = 0 : i64, tpu.core_type = #tpu.core_type<tc>, window_params = [{transform_indices = @transform_0, window_bounds = array<i64: 2, 30, 512>}, {transform_indices = @transform_1, window_bounds = array<i64: 9, 128, 128>}, {transform_indices = @transform_2, window_bounds = array<i64: 1, 128>}, {transform_indices = @transform_3, window_bounds = array<i64: 2, 24, 128>}]} {
    %cst = arith.constant 0.000000e+00 : f32
    %0 = vector.broadcast %cst : f32 to vector<48x128xf32>
    %c0 = arith.constant 0 : index
    %c0_0 = arith.constant 0 : index
    %c0_1 = arith.constant 0 : index
    %1 = vector.load %arg2[%c0, %c0_0, %c0_1] : memref<2x30x512xbf16, #tpu.memory_space<vmem>>, vector<1x24x128xbf16>
    %2 = vector.shape_cast %1 : vector<1x24x128xbf16> to vector<24x128xbf16>
    %c1 = arith.constant 1 : index
    %c0_2 = arith.constant 0 : index
    %c0_3 = arith.constant 0 : index
    %3 = vector.load %arg2[%c1, %c0_2, %c0_3] : memref<2x30x512xbf16, #tpu.memory_space<vmem>>, vector<1x24x128xbf16>
    %4 = vector.shape_cast %3 : vector<1x24x128xbf16> to vector<24x128xbf16>
    %5 = tpu.concatenate %2, %4 in 0 : vector<24x128xbf16>, vector<24x128xbf16> -> vector<48x128xbf16>
    %c0_4 = arith.constant 0 : index
    %c0_5 = arith.constant 0 : index
    %c0_6 = arith.constant 0 : index
    %6 = vector.load %arg3[%c0_4, %c0_5, %c0_6] : memref<9x128x128xbf16, #tpu.memory_space<vmem>>, vector<1x128x128xbf16>
    %7 = vector.shape_cast %6 : vector<1x128x128xbf16> to vector<128x128xbf16>
    %cst_7 = arith.constant dense<0.000000e+00> : vector<48x128xf32>
    %8 = tpu.matmul %5, %7, %cst_7 {dimension_numbers = #tpu.dot_dimension_numbers<[1], [0], [0], [1], [0, 0, 1, 1], [], []>} : vector<48x128xbf16>, vector<128x128xbf16>, vector<48x128xf32> -> vector<48x128xf32>
    %9 = arith.addf %0, %8 : vector<48x128xf32>
    %c0_8 = arith.constant 0 : index
    %c0_9 = arith.constant 0 : index
    %c128 = arith.constant 128 : index
    %10 = vector.load %arg2[%c0_8, %c0_9, %c128] : memref<2x30x512xbf16, #tpu.memory_space<vmem>>, vector<1x24x128xbf16>
    %11 = vector.shape_cast %10 : vector<1x24x128xbf16> to vector<24x128xbf16>
    %c1_10 = arith.constant 1 : index
    %c0_11 = arith.constant 0 : index
    %c128_12 = arith.constant 128 : index
    %12 = vector.load %arg2[%c1_10, %c0_11, %c128_12] : memref<2x30x512xbf16, #tpu.memory_space<vmem>>, vector<1x24x128xbf16>
    %13 = vector.shape_cast %12 : vector<1x24x128xbf16> to vector<24x128xbf16>
    %14 = tpu.concatenate %11, %13 in 0 : vector<24x128xbf16>, vector<24x128xbf16> -> vector<48x128xbf16>
    %c1_13 = arith.constant 1 : index
    %c0_14 = arith.constant 0 : index
    %c0_15 = arith.constant 0 : index
    %15 = vector.load %arg3[%c1_13, %c0_14, %c0_15] : memref<9x128x128xbf16, #tpu.memory_space<vmem>>, vector<1x128x128xbf16>
    %16 = vector.shape_cast %15 : vector<1x128x128xbf16> to vector<128x128xbf16>
    %cst_16 = arith.constant dense<0.000000e+00> : vector<48x128xf32>
    %17 = tpu.matmul %14, %16, %cst_16 {dimension_numbers = #tpu.dot_dimension_numbers<[1], [0], [0], [1], [0, 0, 1, 1], [], []>} : vector<48x128xbf16>, vector<128x128xbf16>, vector<48x128xf32> -> vector<48x128xf32>
    %18 = arith.addf %9, %17 : vector<48x128xf32>
    %c0_17 = arith.constant 0 : index
    %c1_18 = arith.constant 1 : index
    %c0_19 = arith.constant 0 : index
    %19 = vector.load %arg2[%c0_17, %c1_18, %c0_19] : memref<2x30x512xbf16, #tpu.memory_space<vmem>>, vector<1x24x128xbf16>
    %20 = vector.shape_cast %19 : vector<1x24x128xbf16> to vector<24x128xbf16>
    %c1_20 = arith.constant 1 : index
    %c1_21 = arith.constant 1 : index
    %c0_22 = arith.constant 0 : index
    %21 = vector.load %arg2[%c1_20, %c1_21, %c0_22] : memref<2x30x512xbf16, #tpu.memory_space<vmem>>, vector<1x24x128xbf16>
    %22 = vector.shape_cast %21 : vector<1x24x128xbf16> to vector<24x128xbf16>
    %23 = tpu.concatenate %20, %22 in 0 : vector<24x128xbf16>, vector<24x128xbf16> -> vector<48x128xbf16>
    %c2 = arith.constant 2 : index
    %c0_23 = arith.constant 0 : index
    %c0_24 = arith.constant 0 : index
    %24 = vector.load %arg3[%c2, %c0_23, %c0_24] : memref<9x128x128xbf16, #tpu.memory_space<vmem>>, vector<1x128x128xbf16>
    %25 = vector.shape_cast %24 : vector<1x128x128xbf16> to vector<128x128xbf16>
    %cst_25 = arith.constant dense<0.000000e+00> : vector<48x128xf32>
    %26 = tpu.matmul %23, %25, %cst_25 {dimension_numbers = #tpu.dot_dimension_numbers<[1], [0], [0], [1], [0, 0, 1, 1], [], []>} : vector<48x128xbf16>, vector<128x128xbf16>, vector<48x128xf32> -> vector<48x128xf32>
    %27 = arith.addf %18, %26 : vector<48x128xf32>
    %c0_26 = arith.constant 0 : index
    %c0_27 = arith.constant 0 : index
    %c256 = arith.constant 256 : index
    %28 = vector.load %arg2[%c0_26, %c0_27, %c256] : memref<2x30x512xbf16, #tpu.memory_space<vmem>>, vector<1x24x128xbf16>
    %29 = vector.shape_cast %28 : vector<1x24x128xbf16> to vector<24x128xbf16>
    %c1_28 = arith.constant 1 : index
    %c0_29 = arith.constant 0 : index
    %c256_30 = arith.constant 256 : index
    %30 = vector.load %arg2[%c1_28, %c0_29, %c256_30] : memref<2x30x512xbf16, #tpu.memory_space<vmem>>, vector<1x24x128xbf16>
    %31 = vector.shape_cast %30 : vector<1x24x128xbf16> to vector<24x128xbf16>
    %32 = tpu.concatenate %29, %31 in 0 : vector<24x128xbf16>, vector<24x128xbf16> -> vector<48x128xbf16>
    %c3 = arith.constant 3 : index
    %c0_31 = arith.constant 0 : index
    %c0_32 = arith.constant 0 : index
    %33 = vector.load %arg3[%c3, %c0_31, %c0_32] : memref<9x128x128xbf16, #tpu.memory_space<vmem>>, vector<1x128x128xbf16>
    %34 = vector.shape_cast %33 : vector<1x128x128xbf16> to vector<128x128xbf16>
    %cst_33 = arith.constant dense<0.000000e+00> : vector<48x128xf32>
    %35 = tpu.matmul %32, %34, %cst_33 {dimension_numbers = #tpu.dot_dimension_numbers<[1], [0], [0], [1], [0, 0, 1, 1], [], []>} : vector<48x128xbf16>, vector<128x128xbf16>, vector<48x128xf32> -> vector<48x128xf32>
    %36 = arith.addf %27, %35 : vector<48x128xf32>
    %c0_34 = arith.constant 0 : index
    %c0_35 = arith.constant 0 : index
    %c384 = arith.constant 384 : index
    %37 = vector.load %arg2[%c0_34, %c0_35, %c384] : memref<2x30x512xbf16, #tpu.memory_space<vmem>>, vector<1x24x128xbf16>
    %38 = vector.shape_cast %37 : vector<1x24x128xbf16> to vector<24x128xbf16>
    %c1_36 = arith.constant 1 : index
    %c0_37 = arith.constant 0 : index
    %c384_38 = arith.constant 384 : index
    %39 = vector.load %arg2[%c1_36, %c0_37, %c384_38] : memref<2x30x512xbf16, #tpu.memory_space<vmem>>, vector<1x24x128xbf16>
    %40 = vector.shape_cast %39 : vector<1x24x128xbf16> to vector<24x128xbf16>
    %41 = tpu.concatenate %38, %40 in 0 : vector<24x128xbf16>, vector<24x128xbf16> -> vector<48x128xbf16>
    %c4 = arith.constant 4 : index
    %c0_39 = arith.constant 0 : index
    %c0_40 = arith.constant 0 : index
    %42 = vector.load %arg3[%c4, %c0_39, %c0_40] : memref<9x128x128xbf16, #tpu.memory_space<vmem>>, vector<1x128x128xbf16>
    %43 = vector.shape_cast %42 : vector<1x128x128xbf16> to vector<128x128xbf16>
    %cst_41 = arith.constant dense<0.000000e+00> : vector<48x128xf32>
    %44 = tpu.matmul %41, %43, %cst_41 {dimension_numbers = #tpu.dot_dimension_numbers<[1], [0], [0], [1], [0, 0, 1, 1], [], []>} : vector<48x128xbf16>, vector<128x128xbf16>, vector<48x128xf32> -> vector<48x128xf32>
    %45 = arith.addf %36, %44 : vector<48x128xf32>
    %c0_42 = arith.constant 0 : index
    %c1_43 = arith.constant 1 : index
    %c256_44 = arith.constant 256 : index
    %46 = vector.load %arg2[%c0_42, %c1_43, %c256_44] : memref<2x30x512xbf16, #tpu.memory_space<vmem>>, vector<1x24x128xbf16>
    %47 = vector.shape_cast %46 : vector<1x24x128xbf16> to vector<24x128xbf16>
    %c1_45 = arith.constant 1 : index
    %c1_46 = arith.constant 1 : index
    %c256_47 = arith.constant 256 : index
    %48 = vector.load %arg2[%c1_45, %c1_46, %c256_47] : memref<2x30x512xbf16, #tpu.memory_space<vmem>>, vector<1x24x128xbf16>
    %49 = vector.shape_cast %48 : vector<1x24x128xbf16> to vector<24x128xbf16>
    %50 = tpu.concatenate %47, %49 in 0 : vector<24x128xbf16>, vector<24x128xbf16> -> vector<48x128xbf16>
    %c5 = arith.constant 5 : index
    %c0_48 = arith.constant 0 : index
    %c0_49 = arith.constant 0 : index
    %51 = vector.load %arg3[%c5, %c0_48, %c0_49] : memref<9x128x128xbf16, #tpu.memory_space<vmem>>, vector<1x128x128xbf16>
    %52 = vector.shape_cast %51 : vector<1x128x128xbf16> to vector<128x128xbf16>
    %cst_50 = arith.constant dense<0.000000e+00> : vector<48x128xf32>
    %53 = tpu.matmul %50, %52, %cst_50 {dimension_numbers = #tpu.dot_dimension_numbers<[1], [0], [0], [1], [0, 0, 1, 1], [], []>} : vector<48x128xbf16>, vector<128x128xbf16>, vector<48x128xf32> -> vector<48x128xf32>
    %54 = arith.addf %45, %53 : vector<48x128xf32>
    %c0_51 = arith.constant 0 : index
    %c5_52 = arith.constant 5 : index
    %c0_53 = arith.constant 0 : index
    %55 = vector.load %arg2[%c0_51, %c5_52, %c0_53] : memref<2x30x512xbf16, #tpu.memory_space<vmem>>, vector<1x24x128xbf16>
    %56 = vector.shape_cast %55 : vector<1x24x128xbf16> to vector<24x128xbf16>
    %c1_54 = arith.constant 1 : index
    %c5_55 = arith.constant 5 : index
    %c0_56 = arith.constant 0 : index
    %57 = vector.load %arg2[%c1_54, %c5_55, %c0_56] : memref<2x30x512xbf16, #tpu.memory_space<vmem>>, vector<1x24x128xbf16>
    %58 = vector.shape_cast %57 : vector<1x24x128xbf16> to vector<24x128xbf16>
    %59 = tpu.concatenate %56, %58 in 0 : vector<24x128xbf16>, vector<24x128xbf16> -> vector<48x128xbf16>
    %c6 = arith.constant 6 : index
    %c0_57 = arith.constant 0 : index
    %c0_58 = arith.constant 0 : index
    %60 = vector.load %arg3[%c6, %c0_57, %c0_58] : memref<9x128x128xbf16, #tpu.memory_space<vmem>>, vector<1x128x128xbf16>
    %61 = vector.shape_cast %60 : vector<1x128x128xbf16> to vector<128x128xbf16>
    %cst_59 = arith.constant dense<0.000000e+00> : vector<48x128xf32>
    %62 = tpu.matmul %59, %61, %cst_59 {dimension_numbers = #tpu.dot_dimension_numbers<[1], [0], [0], [1], [0, 0, 1, 1], [], []>} : vector<48x128xbf16>, vector<128x128xbf16>, vector<48x128xf32> -> vector<48x128xf32>
    %63 = arith.addf %54, %62 : vector<48x128xf32>
    %c0_60 = arith.constant 0 : index
    %c5_61 = arith.constant 5 : index
    %c128_62 = arith.constant 128 : index
    %64 = vector.load %arg2[%c0_60, %c5_61, %c128_62] : memref<2x30x512xbf16, #tpu.memory_space<vmem>>, vector<1x24x128xbf16>
    %65 = vector.shape_cast %64 : vector<1x24x128xbf16> to vector<24x128xbf16>
    %c1_63 = arith.constant 1 : index
    %c5_64 = arith.constant 5 : index
    %c128_65 = arith.constant 128 : index
    %66 = vector.load %arg2[%c1_63, %c5_64, %c128_65] : memref<2x30x512xbf16, #tpu.memory_space<vmem>>, vector<1x24x128xbf16>
    %67 = vector.shape_cast %66 : vector<1x24x128xbf16> to vector<24x128xbf16>
    %68 = tpu.concatenate %65, %67 in 0 : vector<24x128xbf16>, vector<24x128xbf16> -> vector<48x128xbf16>
    %c7 = arith.constant 7 : index
    %c0_66 = arith.constant 0 : index
    %c0_67 = arith.constant 0 : index
    %69 = vector.load %arg3[%c7, %c0_66, %c0_67] : memref<9x128x128xbf16, #tpu.memory_space<vmem>>, vector<1x128x128xbf16>
    %70 = vector.shape_cast %69 : vector<1x128x128xbf16> to vector<128x128xbf16>
    %cst_68 = arith.constant dense<0.000000e+00> : vector<48x128xf32>
    %71 = tpu.matmul %68, %70, %cst_68 {dimension_numbers = #tpu.dot_dimension_numbers<[1], [0], [0], [1], [0, 0, 1, 1], [], []>} : vector<48x128xbf16>, vector<128x128xbf16>, vector<48x128xf32> -> vector<48x128xf32>
    %72 = arith.addf %63, %71 : vector<48x128xf32>
    %c0_69 = arith.constant 0 : index
    %c6_70 = arith.constant 6 : index
    %c0_71 = arith.constant 0 : index
    %73 = vector.load %arg2[%c0_69, %c6_70, %c0_71] : memref<2x30x512xbf16, #tpu.memory_space<vmem>>, vector<1x24x128xbf16>
    %74 = vector.shape_cast %73 : vector<1x24x128xbf16> to vector<24x128xbf16>
    %c1_72 = arith.constant 1 : index
    %c6_73 = arith.constant 6 : index
    %c0_74 = arith.constant 0 : index
    %75 = vector.load %arg2[%c1_72, %c6_73, %c0_74] : memref<2x30x512xbf16, #tpu.memory_space<vmem>>, vector<1x24x128xbf16>
    %76 = vector.shape_cast %75 : vector<1x24x128xbf16> to vector<24x128xbf16>
    %77 = tpu.concatenate %74, %76 in 0 : vector<24x128xbf16>, vector<24x128xbf16> -> vector<48x128xbf16>
    %c8 = arith.constant 8 : index
    %c0_75 = arith.constant 0 : index
    %c0_76 = arith.constant 0 : index
    %78 = vector.load %arg3[%c8, %c0_75, %c0_76] : memref<9x128x128xbf16, #tpu.memory_space<vmem>>, vector<1x128x128xbf16>
    %79 = vector.shape_cast %78 : vector<1x128x128xbf16> to vector<128x128xbf16>
    %cst_77 = arith.constant dense<0.000000e+00> : vector<48x128xf32>
    %80 = tpu.matmul %77, %79, %cst_77 {dimension_numbers = #tpu.dot_dimension_numbers<[1], [0], [0], [1], [0, 0, 1, 1], [], []>} : vector<48x128xbf16>, vector<128x128xbf16>, vector<48x128xf32> -> vector<48x128xf32>
    %81 = arith.addf %72, %80 : vector<48x128xf32>
    %c0_78 = arith.constant 0 : index
    %c0_79 = arith.constant 0 : index
    %82 = vector.load %arg4[%c0_78, %c0_79] : memref<1x128xf32, #tpu.memory_space<vmem>>, vector<1x128xf32>
    %83 = vector.broadcast %82 : vector<1x128xf32> to vector<48x128xf32>
    %84 = arith.addf %81, %83 : vector<48x128xf32>
    %85 = vector.extract_strided_slice %84 {offsets = [0, 0], sizes = [24, 128], strides = [1, 1]} : vector<48x128xf32> to vector<24x128xf32>
    %c0_80 = arith.constant 0 : index
    %c0_81 = arith.constant 0 : index
    %c0_82 = arith.constant 0 : index
    %86 = vector.load %arg5[%c0_80, %c0_81, %c0_82] : memref<2x24x128xf32, #tpu.memory_space<vmem>>, vector<1x24x128xf32>
    %87 = vector.shape_cast %86 : vector<1x24x128xf32> to vector<24x128xf32>
    %88 = vector.shape_cast %85 : vector<24x128xf32> to vector<1x24x128xf32>
    tpu.vector_store %arg5[%c0_80, %c0_81, %c0_82], %88 {strides = array<i32>} : memref<2x24x128xf32, #tpu.memory_space<vmem>>, vector<1x24x128xf32>,
    %89 = vector.extract_strided_slice %84 {offsets = [24, 0], sizes = [24, 128], strides = [1, 1]} : vector<48x128xf32> to vector<24x128xf32>
    %c1_83 = arith.constant 1 : index
    %c0_84 = arith.constant 0 : index
    %c0_85 = arith.constant 0 : index
    %90 = vector.load %arg5[%c1_83, %c0_84, %c0_85] : memref<2x24x128xf32, #tpu.memory_space<vmem>>, vector<1x24x128xf32>
    %91 = vector.shape_cast %90 : vector<1x24x128xf32> to vector<24x128xf32>
    %92 = vector.shape_cast %89 : vector<24x128xf32> to vector<1x24x128xf32>
    tpu.vector_store %arg5[%c1_83, %c0_84, %c0_85], %92 {strides = array<i32>} : memref<2x24x128xf32, #tpu.memory_space<vmem>>, vector<1x24x128xf32>,
    return
  }
  func.func @transform_0(%arg0: i32, %arg1: i32) -> (i32, i32, i32) {
    %c0_i32 = arith.constant 0 : i32
    %c0_i32_0 = arith.constant 0 : i32
    %c0_i32_1 = arith.constant 0 : i32
    return %arg0, %c0_i32, %c0_i32_0 : i32, i32, i32
  }
  func.func @transform_1(%arg0: i32, %arg1: i32) -> (i32, i32, i32) {
    %c0_i32 = arith.constant 0 : i32
    %c0_i32_0 = arith.constant 0 : i32
    %c0_i32_1 = arith.constant 0 : i32
    return %c0_i32, %c0_i32_0, %arg1 : i32, i32, i32
  }
  func.func @transform_2(%arg0: i32, %arg1: i32) -> (i32, i32) {
    %c0_i32 = arith.constant 0 : i32
    %c0_i32_0 = arith.constant 0 : i32
    return %c0_i32, %arg1 : i32, i32
  }
  func.func @transform_3(%arg0: i32, %arg1: i32) -> (i32, i32, i32) {
    %c0_i32 = arith.constant 0 : i32
    %c0_i32_0 = arith.constant 0 : i32
    return %arg0, %c0_i32, %arg1 : i32, i32, i32
  }
}

</mosaic_0001>

<llo_original>
// kernel: last_level_p6p7_forward.3
$region0: #{last_level_p6p7_forward.3}
  #allocation0 [shape = 'u32[]', space=smem, size = 0x4, offset = 0x4, fixed_abs, tag = 'smem constant byte address 0x4 - core index']
  #allocation1 [shape = 'u32[144,128]{1,0:T(1,128)}', space=vmem, size = 0x12000, scoped, tag = 'internal scratch']
  %s0 = inlined_call_operand.vmem [shape: bf16[2,30,512], index: 0, kind: input, shape index: {}]
  %s1 = inlined_call_operand.vmem [shape: bf16[9,128,128], index: 1, kind: input, shape index: {}]
  %s2 = inlined_call_operand.vmem [shape: f32[1,128], index: 2, kind: input, shape index: {}]
  %s3 = inlined_call_operand.vmem [shape: f32[2,24,128], index: 3, kind: output, shape index: {}]
  %s4 = sld [smem:[#allocation0]]
  $region22: #{last_level_p6p7_forward.3} parent=0
    _
  %s6 = ssub.s32 1, %s4
  %s7 = scalar_select 0, %s6, %s4
  // Predicated region
  $region2: #{last_level_p6p7_forward.3} parent=0 // pred_check
    _
  $region3: #{last_level_p6p7_forward.3} parent=0 // pred_check_branch
    %9 = sbr.rel (0) target = $region5
  $region4: #{last_level_p6p7_forward.3} parent=0 // pred_region
    _
  $region5: #{last_level_p6p7_forward.3} parent=0 // pred_fallthru
    _
  // Predicated region
  $region6: #{last_level_p6p7_forward.3} parent=0 // pred_check
    _
  $region7: #{last_level_p6p7_forward.3} parent=0 // pred_check_branch
    %11 = sbr.rel (0) target = $region9
  $region8: #{last_level_p6p7_forward.3} parent=0 // pred_region
    _
  $region9: #{last_level_p6p7_forward.3} parent=0 // pred_fallthru
    _
  // Predicated region
  $region10: #{last_level_p6p7_forward.3} parent=0 // pred_check
    _
  $region11: #{last_level_p6p7_forward.3} parent=0 // pred_check_branch
    %13 = sbr.rel (0) target = $region13
  $region12: #{last_level_p6p7_forward.3} parent=0 // pred_region
    _
  $region13: #{last_level_p6p7_forward.3} parent=0 // pred_fallthru
    _
  %v15 = vld [vmem:[%s0] sm:$0xf]
  %v16 = vld [vmem:[%s0 + $0x10] sm:$0xf]
  %v17 = vld [vmem:[%s0 + $0x20] sm:$0xf]
  %s18 = scalar_lea.vmem %s0, 64
  %v19 = vld [vmem:[%s18] sm:$0xf]
  %v20 = vld [vmem:[%s18 + $0x10] sm:$0xf]
  %v21 = vld [vmem:[%s18 + $0x20] sm:$0xf]
  %v25 = vunpack.c.l.b16 %v15
  %v26 = vunpack.c.l.b16 %v16
  %v27 = vunpack.c.l.b16 %v17
  %v28 = vpack.c.b16 %v26, %v25
  %v29 = vpack.c.b16 %v27, %v27
  %v34 = vunpack.c.l.b16 %v19
  %v35 = vunpack.c.l.b16 %v20
  %v36 = vunpack.c.l.b16 %v21
  %v37 = vpack.c.b16 %v34, %v34
  %v38 = vpack.c.b16 %v36, %v35
  %vm40 = vcmask 1043456
  %v43 = vsel %vm40, %v29, %v37
  %v45 = vld [vmem:[%s1] sm:$0xf]
  %v46 = vld [vmem:[%s1 + $0x4] sm:$0xf]
  %v47 = vld [vmem:[%s1 + $0x8] sm:$0xf]
  %v48 = vld [vmem:[%s1 + $0xc] sm:$0xf]
  %v49 = vld [vmem:[%s1 + $0x10] sm:$0xf]
  %v50 = vld [vmem:[%s1 + $0x14] sm:$0xf]
  %v51 = vld [vmem:[%s1 + $0x18] sm:$0xf]
  %v52 = vld [vmem:[%s1 + $0x1c] sm:$0xf]
  %v53 = vld [vmem:[%s1 + $0x20] sm:$0xf]
  %v54 = vld [vmem:[%s1 + $0x24] sm:$0xf]
  %v55 = vld [vmem:[%s1 + $0x28] sm:$0xf]
  %v56 = vld [vmem:[%s1 + $0x2c] sm:$0xf]
  %v57 = vld [vmem:[%s1 + $0x30] sm:$0xf]
  %v58 = vld [vmem:[%s1 + $0x34] sm:$0xf]
  %v59 = vld [vmem:[%s1 + $0x38] sm:$0xf]
  %v60 = vld [vmem:[%s1 + $0x3c] sm:$0xf]
  %v61 = vld [vmem:[%s0 + $0x4] sm:$0xf]
  %v62 = vld [vmem:[%s0 + $0x14] sm:$0xf]
  %v63 = vld [vmem:[%s0 + $0x24] sm:$0xf]
  %v64 = vld [vmem:[%s18 + $0x4] sm:$0xf]
  %v65 = vld [vmem:[%s18 + $0x14] sm:$0xf]
  %v66 = vld [vmem:[%s18 + $0x24] sm:$0xf]
  %v70 = vunpack.c.l.b16 %v61
  %v71 = vunpack.c.l.b16 %v62
  %v72 = vunpack.c.l.b16 %v63
  %v73 = vpack.c.b16 %v71, %v70
  %v74 = vpack.c.b16 %v72, %v72
  %v79 = vunpack.c.l.b16 %v64
  %v80 = vunpack.c.l.b16 %v65
  %v81 = vunpack.c.l.b16 %v66
  %v82 = vpack.c.b16 %v79, %v79
  %v83 = vpack.c.b16 %v81, %v80
  %v87 = vsel %vm40, %v74, %v82
  %s89 = scalar_lea.vmem %s1, 64
  %v90 = vld [vmem:[%s89] sm:$0xf]
  %v91 = vld [vmem:[%s89 + $0x4] sm:$0xf]
  %v92 = vld [vmem:[%s89 + $0x8] sm:$0xf]
  %v93 = vld [vmem:[%s89 + $0xc] sm:$0xf]
  %v94 = vld [vmem:[%s89 + $0x10] sm:$0xf]
  %v95 = vld [vmem:[%s89 + $0x14] sm:$0xf]
  %v96 = vld [vmem:[%s89 + $0x18] sm:$0xf]
  %v97 = vld [vmem:[%s89 + $0x1c] sm:$0xf]
  %v98 = vld [vmem:[%s89 + $0x20] sm:$0xf]
  %v99 = vld [vmem:[%s89 + $0x24] sm:$0xf]
  %v100 = vld [vmem:[%s89 + $0x28] sm:$0xf]
  %v101 = vld [vmem:[%s89 + $0x2c] sm:$0xf]
  %v102 = vld [vmem:[%s89 + $0x30] sm:$0xf]
  %v103 = vld [vmem:[%s89 + $0x34] sm:$0xf]
  %v104 = vld [vmem:[%s89 + $0x38] sm:$0xf]
  %v105 = vld [vmem:[%s89 + $0x3c] sm:$0xf]
  %v122 = vunpack.c.l.b16 %v90
  %v123 = vunpack.c.l.b16 %v91
  %v124 = vunpack.c.l.b16 %v92
  %v125 = vunpack.c.l.b16 %v93
  %v126 = vunpack.c.l.b16 %v94
  %v127 = vunpack.c.l.b16 %v95
  %v128 = vunpack.c.l.b16 %v96
  %v129 = vunpack.c.l.b16 %v97
  %v130 = vunpack.c.l.b16 %v98
  %v131 = vunpack.c.l.b16 %v99
  %v132 = vunpack.c.l.b16 %v100
  %v133 = vunpack.c.l.b16 %v101
  %v134 = vunpack.c.l.b16 %v102
  %v135 = vunpack.c.l.b16 %v103
  %v136 = vunpack.c.l.b16 %v104
  %v137 = vunpack.c.l.b16 %v105
  %v138 = vpack.c.b16 %v123, %v122
  %v139 = vpack.c.b16 %v125, %v124
  %v140 = vpack.c.b16 %v127, %v126
  %v141 = vpack.c.b16 %v129, %v128
  %v142 = vpack.c.b16 %v131, %v130
  %v143 = vpack.c.b16 %v133, %v132
  %v144 = vpack.c.b16 %v135, %v134
  %v145 = vpack.c.b16 %v137, %v136
  %154 = vmatprep.subr.bf16.mxu0 0
  %155 = vmatpush1.bf16.msra.mxu0 %v145
  %156 = vmatprep.subr.bf16.mxu0 0
  %157 = vmatpush1.bf16.msra.mxu0 %v144
  %158 = vmatprep.subr.bf16.mxu0 0
  %159 = vmatpush1.bf16.msra.mxu0 %v143
  %160 = vmatprep.subr.bf16.mxu0 0
  %161 = vmatpush1.bf16.msra.mxu0 %v142
  %162 = vmatprep.subr.bf16.mxu0 0
  %163 = vmatpush1.bf16.msra.mxu0 %v141
  %164 = vmatprep.subr.bf16.mxu0 0
  %165 = vmatpush1.bf16.msra.mxu0 %v140
  %166 = vmatprep.subr.bf16.mxu0 0
  %167 = vmatpush1.bf16.msra.mxu0 %v139
  %168 = vmatprep.subr.bf16.mxu0 0
  %169 = vmatpush1.bf16.msra.mxu0 %v138
  %170 = vmatprep.subr.bf16.mxu0 0
  %171 = vmatpush2.bf16.msra.mxu0 0
  %172 = vmatprep.subr.bf16.mxu0 0
  %173 = vmatpush2.bf16.msra.mxu0 0
  %174 = vmatprep.subr.bf16.mxu0 0
  %175 = vmatpush2.bf16.msra.mxu0 0
  %176 = vmatprep.subr.bf16.mxu0 0
  %177 = vmatpush2.bf16.msra.mxu0 0
  %178 = vmatprep.subr.bf16.mxu0 0
  %179 = vmatpush2.bf16.msra.mxu0 0
  %180 = vmatprep.subr.bf16.mxu0 0
  %181 = vmatpush2.bf16.msra.mxu0 0
  %182 = vmatprep.subr.bf16.mxu0 0
  %183 = vmatpush2.bf16.msra.mxu0 0
  %184 = vmatprep.subr.bf16.mxu0 0
  %185 = vmatpush2.bf16.msra.mxu0 0
  %186 = vmatprep.mubr.bf16.mxu0 0
  %187 = vmatmul.mubr.bf16.gmra.mxu0 %v73
  %v188 = vpop.f32.mrf.mxu0
  %v189 = vadd.f32 0.0, %v188
  %v190 = vpop.f32.mrf.mxu0
  %v191 = vpop.f32.mrf.mxu0
  %v192 = vadd.f32 0.0, %v191
  %v193 = vpop.f32.mrf.mxu0
  %194 = vmatprep.mubr.bf16.mxu0 0
  %195 = vmatmul.mubr.bf16.gmra.mxu0 %v87
  %v196 = vpop.f32.mrf.mxu0
  %v197 = vadd.f32 0.0, %v196
  %v198 = vpop.f32.mrf.mxu0
  %v199 = vpop.f32.mrf.mxu0
  %v200 = vadd.f32 0.0, %v199
  %v201 = vpop.f32.mrf.mxu0
  %202 = vmatprep.mubr.bf16.mxu0 0
  %203 = vmatmul.mubr.bf16.gmra.mxu0 %v83
  %v204 = vpop.f32.mrf.mxu0
  %v205 = vadd.f32 0.0, %v204
  %v206 = vpop.f32.mrf.mxu0
  %v207 = vpop.f32.mrf.mxu0
  %v208 = vadd.f32 0.0, %v207
  %v209 = vpop.f32.mrf.mxu0
  %210 = vdwg.mxu0
  %v227 = vunpack.c.l.b16 %v45
  %v228 = vunpack.c.l.b16 %v46
  %v229 = vunpack.c.l.b16 %v47
  %v230 = vunpack.c.l.b16 %v48
  %v231 = vunpack.c.l.b16 %v49
  %v232 = vunpack.c.l.b16 %v50
  %v233 = vunpack.c.l.b16 %v51
  %v234 = vunpack.c.l.b16 %v52
  %v235 = vunpack.c.l.b16 %v53
  %v236 = vunpack.c.l.b16 %v54
  %v237 = vunpack.c.l.b16 %v55
  %v238 = vunpack.c.l.b16 %v56
  %v239 = vunpack.c.l.b16 %v57
  %v240 = vunpack.c.l.b16 %v58
  %v241 = vunpack.c.l.b16 %v59
  %v242 = vunpack.c.l.b16 %v60
  %v243 = vpack.c.b16 %v228, %v227
  %v244 = vpack.c.b16 %v230, %v229
  %v245 = vpack.c.b16 %v232, %v231
  %v246 = vpack.c.b16 %v234, %v233
  %v247 = vpack.c.b16 %v236, %v235
  %v248 = vpack.c.b16 %v238, %v237
  %v249 = vpack.c.b16 %v240, %v239
  %v250 = vpack.c.b16 %v242, %v241
  %259 = vmatprep.subr.bf16.mxu0 0
  %260 = vmatpush1.bf16.msra.mxu0 %v250
  %261 = vmatprep.subr.bf16.mxu0 0
  %262 = vmatpush1.bf16.msra.mxu0 %v249
  %263 = vmatprep.subr.bf16.mxu0 0
  %264 = vmatpush1.bf16.msra.mxu0 %v248
  %265 = vmatprep.subr.bf16.mxu0 0
  %266 = vmatpush1.bf16.msra.mxu0 %v247
  %267 = vmatprep.subr.bf16.mxu0 0
  %268 = vmatpush1.bf16.msra.mxu0 %v246
  %269 = vmatprep.subr.bf16.mxu0 0
  %270 = vmatpush1.bf16.msra.mxu0 %v245
  %271 = vmatprep.subr.bf16.mxu0 0
  %272 = vmatpush1.bf16.msra.mxu0 %v244
  %273 = vmatprep.subr.bf16.mxu0 0
  %274 = vmatpush1.bf16.msra.mxu0 %v243
  %275 = vmatprep.subr.bf16.mxu0 0
  %276 = vmatpush2.bf16.msra.mxu0 0
  %277 = vmatprep.subr.bf16.mxu0 0
  %278 = vmatpush2.bf16.msra.mxu0 0
  %279 = vmatprep.subr.bf16.mxu0 0
  %280 = vmatpush2.bf16.msra.mxu0 0
  %281 = vmatprep.subr.bf16.mxu0 0
  %282 = vmatpush2.bf16.msra.mxu0 0
  %283 = vmatprep.subr.bf16.mxu0 0
  %284 = vmatpush2.bf16.msra.mxu0 0
  %285 = vmatprep.subr.bf16.mxu0 0
  %286 = vmatpush2.bf16.msra.mxu0 0
  %287 = vmatprep.subr.bf16.mxu0 0
  %288 = vmatpush2.bf16.msra.mxu0 0
  %289 = vmatprep.subr.bf16.mxu0 0
  %290 = vmatpush2.bf16.msra.mxu0 0
  %291 = vmatprep.mubr.bf16.mxu0 0
  %292 = vmatmul.mubr.bf16.gmra.mxu0 %v28
  %v293 = vpop.f32.mrf.mxu0
  %v294 = vadd.f32 %v189, %v293
  %v295 = vpop.f32.mrf.mxu0
  %v296 = vpop.f32.mrf.mxu0
  %v297 = vadd.f32 %v192, %v296
  %v298 = vpop.f32.mrf.mxu0
  %299 = vmatprep.mubr.bf16.mxu0 0
  %300 = vmatmul.mubr.bf16.gmra.mxu0 %v43
  %v301 = vpop.f32.mrf.mxu0
  %v302 = vadd.f32 %v197, %v301
  %v303 = vpop.f32.mrf.mxu0
  %v304 = vpop.f32.mrf.mxu0
  %v305 = vadd.f32 %v200, %v304
  %v306 = vpop.f32.mrf.mxu0
  %307 = vmatprep.mubr.bf16.mxu0 0
  %308 = vmatmul.mubr.bf16.gmra.mxu0 %v38
  %v309 = vpop.f32.mrf.mxu0
  %v310 = vadd.f32 %v205, %v309
  %v311 = vpop.f32.mrf.mxu0
  %v312 = vpop.f32.mrf.mxu0
  %v313 = vadd.f32 %v208, %v312
  %v314 = vpop.f32.mrf.mxu0
  %315 = vdwg.mxu0
  %v316 = vld [vmem:[%s0] sm:$0xf]
  %v317 = vld [vmem:[%s0 + $0x10] sm:$0xf]
  %v318 = vld [vmem:[%s0 + $0x20] sm:$0xf]
  %v319 = vld [vmem:[%s0 + $0x30] sm:$0x1]
  %v320 = vld [vmem:[%s18] sm:$0xf]
  %v321 = vld [vmem:[%s18 + $0x10] sm:$0xf]
  %v322 = vld [vmem:[%s18 + $0x20] sm:$0xf]
  %v323 = vld [vmem:[%s18 + $0x30] sm:$0x1]
  %v328 = vunpack.c.l.b16 %v316
  %v329 = vunpack.c.l.b16 %v317
  %v330 = vunpack.c.l.b16 %v318
  %v331 = vunpack.c.l.b16 %v319
  %v332 = vpack.c.b16 %v329, %v328
  %v333 = vpack.c.b16 %v331, %v330
  %vm334 = vsmask.f32 7424
  %v336 = vshrl.u32 %v332, 16
  %v338 = vshll.u32 %v332, 16
  %v340 = vrot.slane %v338, 1
  %v341 = vor.u32 %v336, %v340
  %v343 = vshll.u32 %v333, 16
  %v345 = vrot.slane %v343, 1
  %v346 = vsel %vm334, %v341, %v345
  %v347 = vshrl.u32 %v333, 16
  %v349 = vor.u32 %v347, %v345
  %v355 = vunpack.c.l.b16 %v320
  %v356 = vunpack.c.l.b16 %v321
  %v357 = vunpack.c.l.b16 %v322
  %v358 = vunpack.c.l.b16 %v323
  %v359 = vpack.c.b16 %v356, %v355
  %v360 = vpack.c.b16 %v358, %v357
  %vm361 = vsmask.f32 3328
  %v363 = vshrl.u32 %v359, 16
  %v365 = vrot.slane %v363, 4
  %v366 = vshll.u32 %v359, 16
  %v368 = vrot.slane %v366, 5
  %v369 = vor.u32 %v365, %v368
  %v371 = vshrl.u32 %v360, 16
  %v373 = vrot.slane %v371, 4
  %v374 = vshll.u32 %v360, 16
  %v376 = vrot.slane %v374, 5
  %v377 = vor.u32 %v373, %v376
  %v378 = vsel %vm361, %v369, %v377
  %v382 = vsel %vm40, %v349, %v369
  %s384 = scalar_lea.vmem %s1, 128
  %v385 = vld [vmem:[%s384] sm:$0xf]
  %v386 = vld [vmem:[%s384 + $0x4] sm:$0xf]
  %v387 = vld [vmem:[%s384 + $0x8] sm:$0xf]
  %v388 = vld [vmem:[%s384 + $0xc] sm:$0xf]
  %v389 = vld [vmem:[%s384 + $0x10] sm:$0xf]
  %v390 = vld [vmem:[%s384 + $0x14] sm:$0xf]
  %v391 = vld [vmem:[%s384 + $0x18] sm:$0xf]
  %v392 = vld [vmem:[%s384 + $0x1c] sm:$0xf]
  %v393 = vld [vmem:[%s384 + $0x20] sm:$0xf]
  %v394 = vld [vmem:[%s384 + $0x24] sm:$0xf]
  %v395 = vld [vmem:[%s384 + $0x28] sm:$0xf]
  %v396 = vld [vmem:[%s384 + $0x2c] sm:$0xf]
  %v397 = vld [vmem:[%s384 + $0x30] sm:$0xf]
  %v398 = vld [vmem:[%s384 + $0x34] sm:$0xf]
  %v399 = vld [vmem:[%s384 + $0x38] sm:$0xf]
  %v400 = vld [vmem:[%s384 + $0x3c] sm:$0xf]
  %v417 = vunpack.c.l.b16 %v385
  %v418 = vunpack.c.l.b16 %v386
  %v419 = vunpack.c.l.b16 %v387
  %v420 = vunpack.c.l.b16 %v388
  %v421 = vunpack.c.l.b16 %v389
  %v422 = vunpack.c.l.b16 %v390
  %v423 = vunpack.c.l.b16 %v391
  %v424 = vunpack.c.l.b16 %v392
  %v425 = vunpack.c.l.b16 %v393
  %v426 = vunpack.c.l.b16 %v394
  %v427 = vunpack.c.l.b16 %v395
  %v428 = vunpack.c.l.b16 %v396
  %v429 = vunpack.c.l.b16 %v397
  %v430 = vunpack.c.l.b16 %v398
  %v431 = vunpack.c.l.b16 %v399
  %v432 = vunpack.c.l.b16 %v400
  %v433 = vpack.c.b16 %v418, %v417
  %v434 = vpack.c.b16 %v420, %v419
  %v435 = vpack.c.b16 %v422, %v421
  %v436 = vpack.c.b16 %v424, %v423
  %v437 = vpack.c.b16 %v426, %v425
  %v438 = vpack.c.b16 %v428, %v427
  %v439 = vpack.c.b16 %v430, %v429
  %v440 = vpack.c.b16 %v432, %v431
  %449 = vmatprep.subr.bf16.mxu0 0
  %450 = vmatpush1.bf16.msra.mxu0 %v440
  %451 = vmatprep.subr.bf16.mxu0 0
  %452 = vmatpush1.bf16.msra.mxu0 %v439
  %453 = vmatprep.subr.bf16.mxu0 0
  %454 = vmatpush1.bf16.msra.mxu0 %v438
  %455 = vmatprep.subr.bf16.mxu0 0
  %456 = vmatpush1.bf16.msra.mxu0 %v437
  %457 = vmatprep.subr.bf16.mxu0 0
  %458 = vmatpush1.bf16.msra.mxu0 %v436
  %459 = vmatprep.subr.bf16.mxu0 0
  %460 = vmatpush1.bf16.msra.mxu0 %v435
  %461 = vmatprep.subr.bf16.mxu0 0
  %462 = vmatpush1.bf16.msra.mxu0 %v434
  %463 = vmatprep.subr.bf16.mxu0 0
  %464 = vmatpush1.bf16.msra.mxu0 %v433
  %465 = vmatprep.subr.bf16.mxu0 0
  %466 = vmatpush2.bf16.msra.mxu0 0
  %467 = vmatprep.subr.bf16.mxu0 0
  %468 = vmatpush2.bf16.msra.mxu0 0
  %469 = vmatprep.subr.bf16.mxu0 0
  %470 = vmatpush2.bf16.msra.mxu0 0
  %471 = vmatprep.subr.bf16.mxu0 0
  %472 = vmatpush2.bf16.msra.mxu0 0
  %473 = vmatprep.subr.bf16.mxu0 0
  %474 = vmatpush2.bf16.msra.mxu0 0
  %475 = vmatprep.subr.bf16.mxu0 0
  %476 = vmatpush2.bf16.msra.mxu0 0
  %477 = vmatprep.subr.bf16.mxu0 0
  %478 = vmatpush2.bf16.msra.mxu0 0
  %479 = vmatprep.subr.bf16.mxu0 0
  %480 = vmatpush2.bf16.msra.mxu0 0
  %481 = vmatprep.mubr.bf16.mxu0 0
  %482 = vmatmul.mubr.bf16.gmra.mxu0 %v346
  %v483 = vpop.f32.mrf.mxu0
  %v484 = vadd.f32 0.0, %v483
  %v485 = vpop.f32.mrf.mxu0
  %v486 = vpop.f32.mrf.mxu0
  %v487 = vadd.f32 0.0, %v486
  %v488 = vpop.f32.mrf.mxu0
  %489 = vmatprep.mubr.bf16.mxu0 0
  %490 = vmatmul.mubr.bf16.gmra.mxu0 %v382
  %v491 = vpop.f32.mrf.mxu0
  %v492 = vadd.f32 0.0, %v491
  %v493 = vpop.f32.mrf.mxu0
  %v494 = vpop.f32.mrf.mxu0
  %v495 = vadd.f32 0.0, %v494
  %v496 = vpop.f32.mrf.mxu0
  %497 = vmatprep.mubr.bf16.mxu0 0
  %498 = vmatmul.mubr.bf16.gmra.mxu0 %v378
  %v499 = vpop.f32.mrf.mxu0
  %v500 = vadd.f32 0.0, %v499
  %v501 = vpop.f32.mrf.mxu0
  %v502 = vpop.f32.mrf.mxu0
  %v503 = vadd.f32 0.0, %v502
  %v504 = vpop.f32.mrf.mxu0
  %505 = vdwg.mxu0
  %v506 = vadd.f32 %v294, %v484
  %v507 = vadd.f32 %v297, %v487
  %v508 = vadd.f32 %v302, %v492
  %v509 = vadd.f32 %v305, %v495
  %v510 = vadd.f32 %v310, %v500
  %v511 = vadd.f32 %v313, %v503
  %v512 = vld [vmem:[%s0 + $0x8] sm:$0xf]
  %v513 = vld [vmem:[%s0 + $0x18] sm:$0xf]
  %v514 = vld [vmem:[%s0 + $0x28] sm:$0xf]
  %v515 = vld [vmem:[%s18 + $0x8] sm:$0xf]
  %v516 = vld [vmem:[%s18 + $0x18] sm:$0xf]
  %v517 = vld [vmem:[%s18 + $0x28] sm:$0xf]
  %v521 = vunpack.c.l.b16 %v512
  %v522 = vunpack.c.l.b16 %v513
  %v523 = vunpack.c.l.b16 %v514
  %v524 = vpack.c.b16 %v522, %v521
  %v525 = vpack.c.b16 %v523, %v523
  %v530 = vunpack.c.l.b16 %v515
  %v531 = vunpack.c.l.b16 %v516
  %v532 = vunpack.c.l.b16 %v517
  %v533 = vpack.c.b16 %v530, %v530
  %v534 = vpack.c.b16 %v532, %v531
  %v538 = vsel %vm40, %v525, %v533
  %s540 = scalar_lea.vmem %s1, 192
  %v541 = vld [vmem:[%s540] sm:$0xf]
  %v542 = vld [vmem:[%s540 + $0x4] sm:$0xf]
  %v543 = vld [vmem:[%s540 + $0x8] sm:$0xf]
  %v544 = vld [vmem:[%s540 + $0xc] sm:$0xf]
  %v545 = vld [vmem:[%s540 + $0x10] sm:$0xf]
  %v546 = vld [vmem:[%s540 + $0x14] sm:$0xf]
  %v547 = vld [vmem:[%s540 + $0x18] sm:$0xf]
  %v548 = vld [vmem:[%s540 + $0x1c] sm:$0xf]
  %v549 = vld [vmem:[%s540 + $0x20] sm:$0xf]
  %v550 = vld [vmem:[%s540 + $0x24] sm:$0xf]
  %v551 = vld [vmem:[%s540 + $0x28] sm:$0xf]
  %v552 = vld [vmem:[%s540 + $0x2c] sm:$0xf]
  %v553 = vld [vmem:[%s540 + $0x30] sm:$0xf]
  %v554 = vld [vmem:[%s540 + $0x34] sm:$0xf]
  %v555 = vld [vmem:[%s540 + $0x38] sm:$0xf]
  %v556 = vld [vmem:[%s540 + $0x3c] sm:$0xf]
  %v573 = vunpack.c.l.b16 %v541
  %v574 = vunpack.c.l.b16 %v542
  %v575 = vunpack.c.l.b16 %v543
  %v576 = vunpack.c.l.b16 %v544
  %v577 = vunpack.c.l.b16 %v545
  %v578 = vunpack.c.l.b16 %v546
  %v579 = vunpack.c.l.b16 %v547
  %v580 = vunpack.c.l.b16 %v548
  %v581 = vunpack.c.l.b16 %v549
  %v582 = vunpack.c.l.b16 %v550
  %v583 = vunpack.c.l.b16 %v551
  %v584 = vunpack.c.l.b16 %v552
  %v585 = vunpack.c.l.b16 %v553
  %v586 = vunpack.c.l.b16 %v554
  %v587 = vunpack.c.l.b16 %v555
  %v588 = vunpack.c.l.b16 %v556
  %v589 = vpack.c.b16 %v574, %v573
  %v590 = vpack.c.b16 %v576, %v575
  %v591 = vpack.c.b16 %v578, %v577
  %v592 = vpack.c.b16 %v580, %v579
  %v593 = vpack.c.b16 %v582, %v581
  %v594 = vpack.c.b16 %v584, %v583
  %v595 = vpack.c.b16 %v586, %v585
  %v596 = vpack.c.b16 %v588, %v587
  %605 = vmatprep.subr.bf16.mxu0 0
  %606 = vmatpush1.bf16.msra.mxu0 %v596
  %607 = vmatprep.subr.bf16.mxu0 0
  %608 = vmatpush1.bf16.msra.mxu0 %v595
  %609 = vmatprep.subr.bf16.mxu0 0
  %610 = vmatpush1.bf16.msra.mxu0 %v594
  %611 = vmatprep.subr.bf16.mxu0 0
  %612 = vmatpush1.bf16.msra.mxu0 %v593
  %613 = vmatprep.subr.bf16.mxu0 0
  %614 = vmatpush1.bf16.msra.mxu0 %v592
  %615 = vmatprep.subr.bf16.mxu0 0
  %616 = vmatpush1.bf16.msra.mxu0 %v591
  %617 = vmatprep.subr.bf16.mxu0 0
  %618 = vmatpush1.bf16.msra.mxu0 %v590
  %619 = vmatprep.subr.bf16.mxu0 0
  %620 = vmatpush1.bf16.msra.mxu0 %v589
  %621 = vmatprep.subr.bf16.mxu0 0
  %622 = vmatpush2.bf16.msra.mxu0 0
  %623 = vmatprep.subr.bf16.mxu0 0
  %624 = vmatpush2.bf16.msra.mxu0 0
  %625 = vmatprep.subr.bf16.mxu0 0
  %626 = vmatpush2.bf16.msra.mxu0 0
  %627 = vmatprep.subr.bf16.mxu0 0
  %628 = vmatpush2.bf16.msra.mxu0 0
  %629 = vmatprep.subr.bf16.mxu0 0
  %630 = vmatpush2.bf16.msra.mxu0 0
  %631 = vmatprep.subr.bf16.mxu0 0
  %632 = vmatpush2.bf16.msra.mxu0 0
  %633 = vmatprep.subr.bf16.mxu0 0
  %634 = vmatpush2.bf16.msra.mxu0 0
  %635 = vmatprep.subr.bf16.mxu0 0
  %636 = vmatpush2.bf16.msra.mxu0 0
  %637 = vmatprep.mubr.bf16.mxu0 0
  %638 = vmatmul.mubr.bf16.gmra.mxu0 %v524
  %v639 = vpop.f32.mrf.mxu0
  %v640 = vadd.f32 0.0, %v639
  %v641 = vpop.f32.mrf.mxu0
  %v642 = vpop.f32.mrf.mxu0
  %v643 = vadd.f32 0.0, %v642
  %v644 = vpop.f32.mrf.mxu0
  %645 = vmatprep.mubr.bf16.mxu0 0
  %646 = vmatmul.mubr.bf16.gmra.mxu0 %v538
  %v647 = vpop.f32.mrf.mxu0
  %v648 = vadd.f32 0.0, %v647
  %v649 = vpop.f32.mrf.mxu0
  %v650 = vpop.f32.mrf.mxu0
  %v651 = vadd.f32 0.0, %v650
  %v652 = vpop.f32.mrf.mxu0
  %653 = vmatprep.mubr.bf16.mxu0 0
  %654 = vmatmul.mubr.bf16.gmra.mxu0 %v534
  %v655 = vpop.f32.mrf.mxu0
  %v656 = vadd.f32 0.0, %v655
  %v657 = vpop.f32.mrf.mxu0
  %v658 = vpop.f32.mrf.mxu0
  %v659 = vadd.f32 0.0, %v658
  %v660 = vpop.f32.mrf.mxu0
  %661 = vdwg.mxu0
  %v662 = vadd.f32 %v506, %v640
  %v663 = vadd.f32 %v507, %v643
  %v664 = vadd.f32 %v508, %v648
  %v665 = vadd.f32 %v509, %v651
  %v666 = vadd.f32 %v510, %v656
  %v667 = vadd.f32 %v511, %v659
  %v668 = vld [vmem:[%s0 + $0xc] sm:$0xf]
  %v669 = vld [vmem:[%s0 + $0x1c] sm:$0xf]
  %v670 = vld [vmem:[%s0 + $0x2c] sm:$0xf]
  %v671 = vld [vmem:[%s18 + $0xc] sm:$0xf]
  %v672 = vld [vmem:[%s18 + $0x1c] sm:$0xf]
  %v673 = vld [vmem:[%s18 + $0x2c] sm:$0xf]
  %v677 = vunpack.c.l.b16 %v668
  %v678 = vunpack.c.l.b16 %v669
  %v679 = vunpack.c.l.b16 %v670
  %v680 = vpack.c.b16 %v678, %v677
  %v681 = vpack.c.b16 %v679, %v679
  %v686 = vunpack.c.l.b16 %v671
  %v687 = vunpack.c.l.b16 %v672
  %v688 = vunpack.c.l.b16 %v673
  %v689 = vpack.c.b16 %v686, %v686
  %v690 = vpack.c.b16 %v688, %v687
  %v694 = vsel %vm40, %v681, %v689
  %s696 = scalar_lea.vmem %s1, 256
  %v697 = vld [vmem:[%s696] sm:$0xf]
  %v698 = vld [vmem:[%s696 + $0x4] sm:$0xf]
  %v699 = vld [vmem:[%s696 + $0x8] sm:$0xf]
  %v700 = vld [vmem:[%s696 + $0xc] sm:$0xf]
  %v701 = vld [vmem:[%s696 + $0x10] sm:$0xf]
  %v702 = vld [vmem:[%s696 + $0x14] sm:$0xf]
  %v703 = vld [vmem:[%s696 + $0x18] sm:$0xf]
  %v704 = vld [vmem:[%s696 + $0x1c] sm:$0xf]
  %v705 = vld [vmem:[%s696 + $0x20] sm:$0xf]
  %v706 = vld [vmem:[%s696 + $0x24] sm:$0xf]
  %v707 = vld [vmem:[%s696 + $0x28] sm:$0xf]
  %v708 = vld [vmem:[%s696 + $0x2c] sm:$0xf]
  %v709 = vld [vmem:[%s696 + $0x30] sm:$0xf]
  %v710 = vld [vmem:[%s696 + $0x34] sm:$0xf]
  %v711 = vld [vmem:[%s696 + $0x38] sm:$0xf]
  %v712 = vld [vmem:[%s696 + $0x3c] sm:$0xf]
  %v729 = vunpack.c.l.b16 %v697
  %v730 = vunpack.c.l.b16 %v698
  %v731 = vunpack.c.l.b16 %v699
  %v732 = vunpack.c.l.b16 %v700
  %v733 = vunpack.c.l.b16 %v701
  %v734 = vunpack.c.l.b16 %v702
  %v735 = vunpack.c.l.b16 %v703
  %v736 = vunpack.c.l.b16 %v704
  %v737 = vunpack.c.l.b16 %v705
  %v738 = vunpack.c.l.b16 %v706
  %v739 = vunpack.c.l.b16 %v707
  %v740 = vunpack.c.l.b16 %v708
  %v741 = vunpack.c.l.b16 %v709
  %v742 = vunpack.c.l.b16 %v710
  %v743 = vunpack.c.l.b16 %v711
  %v744 = vunpack.c.l.b16 %v712
  %v745 = vpack.c.b16 %v730, %v729
  %v746 = vpack.c.b16 %v732, %v731
  %v747 = vpack.c.b16 %v734, %v733
  %v748 = vpack.c.b16 %v736, %v735
  %v749 = vpack.c.b16 %v738, %v737
  %v750 = vpack.c.b16 %v740, %v739
  %v751 = vpack.c.b16 %v742, %v741
  %v752 = vpack.c.b16 %v744, %v743
  %761 = vmatprep.subr.bf16.mxu0 0
  %762 = vmatpush1.bf16.msra.mxu0 %v752
  %763 = vmatprep.subr.bf16.mxu0 0
  %764 = vmatpush1.bf16.msra.mxu0 %v751
  %765 = vmatprep.subr.bf16.mxu0 0
  %766 = vmatpush1.bf16.msra.mxu0 %v750
  %767 = vmatprep.subr.bf16.mxu0 0
  %768 = vmatpush1.bf16.msra.mxu0 %v749
  %769 = vmatprep.subr.bf16.mxu0 0
  %770 = vmatpush1.bf16.msra.mxu0 %v748
  %771 = vmatprep.subr.bf16.mxu0 0
  %772 = vmatpush1.bf16.msra.mxu0 %v747
  %773 = vmatprep.subr.bf16.mxu0 0
  %774 = vmatpush1.bf16.msra.mxu0 %v746
  %775 = vmatprep.subr.bf16.mxu0 0
  %776 = vmatpush1.bf16.msra.mxu0 %v745
  %777 = vmatprep.subr.bf16.mxu0 0
  %778 = vmatpush2.bf16.msra.mxu0 0
  %779 = vmatprep.subr.bf16.mxu0 0
  %780 = vmatpush2.bf16.msra.mxu0 0
  %781 = vmatprep.subr.bf16.mxu0 0
  %782 = vmatpush2.bf16.msra.mxu0 0
  %783 = vmatprep.subr.bf16.mxu0 0
  %784 = vmatpush2.bf16.msra.mxu0 0
  %785 = vmatprep.subr.bf16.mxu0 0
  %786 = vmatpush2.bf16.msra.mxu0 0
  %787 = vmatprep.subr.bf16.mxu0 0
  %788 = vmatpush2.bf16.msra.mxu0 0
  %789 = vmatprep.subr.bf16.mxu0 0
  %790 = vmatpush2.bf16.msra.mxu0 0
  %791 = vmatprep.subr.bf16.mxu0 0
  %792 = vmatpush2.bf16.msra.mxu0 0
  %793 = vmatprep.mubr.bf16.mxu0 0
  %794 = vmatmul.mubr.bf16.gmra.mxu0 %v680
  %v795 = vpop.f32.mrf.mxu0
  %v796 = vadd.f32 0.0, %v795
  %v797 = vpop.f32.mrf.mxu0
  %v798 = vpop.f32.mrf.mxu0
  %v799 = vadd.f32 0.0, %v798
  %v800 = vpop.f32.mrf.mxu0
  %801 = vmatprep.mubr.bf16.mxu0 0
  %802 = vmatmul.mubr.bf16.gmra.mxu0 %v694
  %v803 = vpop.f32.mrf.mxu0
  %v804 = vadd.f32 0.0, %v803
  %v805 = vpop.f32.mrf.mxu0
  %v806 = vpop.f32.mrf.mxu0
  %v807 = vadd.f32 0.0, %v806
  %v808 = vpop.f32.mrf.mxu0
  %809 = vmatprep.mubr.bf16.mxu0 0
  %810 = vmatmul.mubr.bf16.gmra.mxu0 %v690
  %v811 = vpop.f32.mrf.mxu0
  %v812 = vadd.f32 0.0, %v811
  %v813 = vpop.f32.mrf.mxu0
  %v814 = vpop.f32.mrf.mxu0
  %v815 = vadd.f32 0.0, %v814
  %v816 = vpop.f32.mrf.mxu0
  %817 = vdwg.mxu0
  %v818 = vadd.f32 %v662, %v796
  %v819 = vadd.f32 %v663, %v799
  %v820 = vadd.f32 %v664, %v804
  %v821 = vadd.f32 %v665, %v807
  %v822 = vadd.f32 %v666, %v812
  %v823 = vadd.f32 %v667, %v815
  %v824 = vld [vmem:[%s0 + $0x8] sm:$0xf]
  %v825 = vld [vmem:[%s0 + $0x18] sm:$0xf]
  %v826 = vld [vmem:[%s0 + $0x28] sm:$0xf]
  %v827 = vld [vmem:[%s0 + $0x38] sm:$0x1]
  %v828 = vld [vmem:[%s18 + $0x8] sm:$0xf]
  %v829 = vld [vmem:[%s18 + $0x18] sm:$0xf]
  %v830 = vld [vmem:[%s18 + $0x28] sm:$0xf]
  %v831 = vld [vmem:[%s18 + $0x38] sm:$0x1]
  %v836 = vunpack.c.l.b16 %v824
  %v837 = vunpack.c.l.b16 %v825
  %v838 = vunpack.c.l.b16 %v826
  %v839 = vunpack.c.l.b16 %v827
  %v840 = vpack.c.b16 %v837, %v836
  %v841 = vpack.c.b16 %v839, %v838
  %v843 = vshrl.u32 %v840, 16
  %v845 = vshll.u32 %v840, 16
  %v847 = vrot.slane %v845, 1
  %v848 = vor.u32 %v843, %v847
  %v850 = vshll.u32 %v841, 16
  %v852 = vrot.slane %v850, 1
  %v853 = vsel %vm334, %v848, %v852
  %v854 = vshrl.u32 %v841, 16
  %v856 = vor.u32 %v854, %v852
  %v862 = vunpack.c.l.b16 %v828
  %v863 = vunpack.c.l.b16 %v829
  %v864 = vunpack.c.l.b16 %v830
  %v865 = vunpack.c.l.b16 %v831
  %v866 = vpack.c.b16 %v863, %v862
  %v867 = vpack.c.b16 %v865, %v864
  %v869 = vshrl.u32 %v866, 16
  %v871 = vrot.slane %v869, 4
  %v872 = vshll.u32 %v866, 16
  %v874 = vrot.slane %v872, 5
  %v875 = vor.u32 %v871, %v874
  %v877 = vshrl.u32 %v867, 16
  %v879 = vrot.slane %v877, 4
  %v880 = vshll.u32 %v867, 16
  %v882 = vrot.slane %v880, 5
  %v883 = vor.u32 %v879, %v882
  %v884 = vsel %vm361, %v875, %v883
  %v888 = vsel %vm40, %v856, %v875
  %s890 = scalar_lea.vmem %s1, 320
  %v891 = vld [vmem:[%s890] sm:$0xf]
  %v892 = vld [vmem:[%s890 + $0x4] sm:$0xf]
  %v893 = vld [vmem:[%s890 + $0x8] sm:$0xf]
  %v894 = vld [vmem:[%s890 + $0xc] sm:$0xf]
  %v895 = vld [vmem:[%s890 + $0x10] sm:$0xf]
  %v896 = vld [vmem:[%s890 + $0x14] sm:$0xf]
  %v897 = vld [vmem:[%s890 + $0x18] sm:$0xf]
  %v898 = vld [vmem:[%s890 + $0x1c] sm:$0xf]
  %v899 = vld [vmem:[%s890 + $0x20] sm:$0xf]
  %v900 = vld [vmem:[%s890 + $0x24] sm:$0xf]
  %v901 = vld [vmem:[%s890 + $0x28] sm:$0xf]
  %v902 = vld [vmem:[%s890 + $0x2c] sm:$0xf]
  %v903 = vld [vmem:[%s890 + $0x30] sm:$0xf]
  %v904 = vld [vmem:[%s890 + $0x34] sm:$0xf]
  %v905 = vld [vmem:[%s890 + $0x38] sm:$0xf]
  %v906 = vld [vmem:[%s890 + $0x3c] sm:$0xf]
  %v923 = vunpack.c.l.b16 %v891
  %v924 = vunpack.c.l.b16 %v892
  %v925 = vunpack.c.l.b16 %v893
  %v926 = vunpack.c.l.b16 %v894
  %v927 = vunpack.c.l.b16 %v895
  %v928 = vunpack.c.l.b16 %v896
  %v929 = vunpack.c.l.b16 %v897
  %v930 = vunpack.c.l.b16 %v898
  %v931 = vunpack.c.l.b16 %v899
  %v932 = vunpack.c.l.b16 %v900
  %v933 = vunpack.c.l.b16 %v901
  %v934 = vunpack.c.l.b16 %v902
  %v935 = vunpack.c.l.b16 %v903
  %v936 = vunpack.c.l.b16 %v904
  %v937 = vunpack.c.l.b16 %v905
  %v938 = vunpack.c.l.b16 %v906
  %v939 = vpack.c.b16 %v924, %v923
  %v940 = vpack.c.b16 %v926, %v925
  %v941 = vpack.c.b16 %v928, %v927
  %v942 = vpack.c.b16 %v930, %v929
  %v943 = vpack.c.b16 %v932, %v931
  %v944 = vpack.c.b16 %v934, %v933
  %v945 = vpack.c.b16 %v936, %v935
  %v946 = vpack.c.b16 %v938, %v937
  %955 = vmatprep.subr.bf16.mxu0 0
  %956 = vmatpush1.bf16.msra.mxu0 %v946
  %957 = vmatprep.subr.bf16.mxu0 0
  %958 = vmatpush1.bf16.msra.mxu0 %v945
  %959 = vmatprep.subr.bf16.mxu0 0
  %960 = vmatpush1.bf16.msra.mxu0 %v944
  %961 = vmatprep.subr.bf16.mxu0 0
  %962 = vmatpush1.bf16.msra.mxu0 %v943
  %963 = vmatprep.subr.bf16.mxu0 0
  %964 = vmatpush1.bf16.msra.mxu0 %v942
  %965 = vmatprep.subr.bf16.mxu0 0
  %966 = vmatpush1.bf16.msra.mxu0 %v941
  %967 = vmatprep.subr.bf16.mxu0 0
  %968 = vmatpush1.bf16.msra.mxu0 %v940
  %969 = vmatprep.subr.bf16.mxu0 0
  %970 = vmatpush1.bf16.msra.mxu0 %v939
  %971 = vmatprep.subr.bf16.mxu0 0
  %972 = vmatpush2.bf16.msra.mxu0 0
  %973 = vmatprep.subr.bf16.mxu0 0
  %974 = vmatpush2.bf16.msra.mxu0 0
  %975 = vmatprep.subr.bf16.mxu0 0
  %976 = vmatpush2.bf16.msra.mxu0 0
  %977 = vmatprep.subr.bf16.mxu0 0
  %978 = vmatpush2.bf16.msra.mxu0 0
  %979 = vmatprep.subr.bf16.mxu0 0
  %980 = vmatpush2.bf16.msra.mxu0 0
  %981 = vmatprep.subr.bf16.mxu0 0
  %982 = vmatpush2.bf16.msra.mxu0 0
  %983 = vmatprep.subr.bf16.mxu0 0
  %984 = vmatpush2.bf16.msra.mxu0 0
  %985 = vmatprep.subr.bf16.mxu0 0
  %986 = vmatpush2.bf16.msra.mxu0 0
  %987 = vmatprep.mubr.bf16.mxu0 0
  %988 = vmatmul.mubr.bf16.gmra.mxu0 %v853
  %v989 = vpop.f32.mrf.mxu0
  %v990 = vadd.f32 0.0, %v989
  %v991 = vpop.f32.mrf.mxu0
  %v992 = vpop.f32.mrf.mxu0
  %v993 = vadd.f32 0.0, %v992
  %v994 = vpop.f32.mrf.mxu0
  %995 = vmatprep.mubr.bf16.mxu0 0
  %996 = vmatmul.mubr.bf16.gmra.mxu0 %v888
  %v997 = vpop.f32.mrf.mxu0
  %v998 = vadd.f32 0.0, %v997
  %v999 = vpop.f32.mrf.mxu0
  %v1000 = vpop.f32.mrf.mxu0
  %v1001 = vadd.f32 0.0, %v1000
  %v1002 = vpop.f32.mrf.mxu0
  %1003 = vmatprep.mubr.bf16.mxu0 0
  %1004 = vmatmul.mubr.bf16.gmra.mxu0 %v884
  %v1005 = vpop.f32.mrf.mxu0
  %v1006 = vadd.f32 0.0, %v1005
  %v1007 = vpop.f32.mrf.mxu0
  %v1008 = vpop.f32.mrf.mxu0
  %v1009 = vadd.f32 0.0, %v1008
  %v1010 = vpop.f32.mrf.mxu0
  %1011 = vdwg.mxu0
  %v1012 = vadd.f32 %v818, %v990
  %v1013 = vadd.f32 %v819, %v993
  %v1014 = vadd.f32 %v820, %v998
  %v1015 = vadd.f32 %v821, %v1001
  %v1016 = vadd.f32 %v822, %v1006
  %v1017 = vadd.f32 %v823, %v1009
  %v1018 = vld [vmem:[%s0] sm:$0xc]
  %v1019 = vld [vmem:[%s0 + $0x30] sm:$0x7]
  %v1020 = vld [vmem:[%s18] sm:$0xc]
  %v1021 = vld [vmem:[%s18 + $0x30] sm:$0x7]
  %v1024 = vunpack.c.l.b16 %v1018
  %v1025 = vunpack.c.l.b16 %v1019
  %v1026 = vpack.c.b16 %v329, %v1024
  %v1027 = vpack.c.b16 %v1025, %v330
  %vm1028 = vsmask.f32 5376
  %v1030 = vshrl.u32 %v1026, 16
  %v1032 = vrot.slane %v1030, 2
  %v1033 = vshll.u32 %v1026, 16
  %v1035 = vrot.slane %v1033, 3
  %v1036 = vor.u32 %v1032, %v1035
  %v1038 = vshrl.u32 %v1027, 16
  %v1040 = vrot.slane %v1038, 2
  %v1041 = vshll.u32 %v1027, 16
  %v1043 = vrot.slane %v1041, 3
  %v1044 = vor.u32 %v1040, %v1043
  %v1045 = vsel %vm1028, %v1036, %v1044
  %v1049 = vunpack.c.l.b16 %v1020
  %v1050 = vunpack.c.l.b16 %v1021
  %v1051 = vpack.c.b16 %v356, %v1049
  %v1052 = vpack.c.b16 %v1050, %v357
  %vm1053 = vsmask.f32 1280
  %v1055 = vshrl.u32 %v1051, 16
  %v1057 = vrot.slane %v1055, 6
  %v1058 = vshll.u32 %v1051, 16
  %v1060 = vrot.slane %v1058, 7
  %v1061 = vor.u32 %v1057, %v1060
  %v1063 = vshrl.u32 %v1052, 16
  %v1065 = vrot.slane %v1063, 6
  %v1066 = vshll.u32 %v1052, 16
  %v1068 = vrot.slane %v1066, 7
  %v1069 = vor.u32 %v1065, %v1068
  %v1070 = vsel %vm1053, %v1061, %v1069
  %v1074 = vsel %vm40, %v1044, %v1061
  %s1076 = scalar_lea.vmem %s1, 384
  %v1077 = vld [vmem:[%s1076] sm:$0xf]
  %v1078 = vld [vmem:[%s1076 + $0x4] sm:$0xf]
  %v1079 = vld [vmem:[%s1076 + $0x8] sm:$0xf]
  %v1080 = vld [vmem:[%s1076 + $0xc] sm:$0xf]
  %v1081 = vld [vmem:[%s1076 + $0x10] sm:$0xf]
  %v1082 = vld [vmem:[%s1076 + $0x14] sm:$0xf]
  %v1083 = vld [vmem:[%s1076 + $0x18] sm:$0xf]
  %v1084 = vld [vmem:[%s1076 + $0x1c] sm:$0xf]
  %v1085 = vld [vmem:[%s1076 + $0x20] sm:$0xf]
  %v1086 = vld [vmem:[%s1076 + $0x24] sm:$0xf]
  %v1087 = vld [vmem:[%s1076 + $0x28] sm:$0xf]
  %v1088 = vld [vmem:[%s1076 + $0x2c] sm:$0xf]
  %v1089 = vld [vmem:[%s1076 + $0x30] sm:$0xf]
  %v1090 = vld [vmem:[%s1076 + $0x34] sm:$0xf]
  %v1091 = vld [vmem:[%s1076 + $0x38] sm:$0xf]
  %v1092 = vld [vmem:[%s1076 + $0x3c] sm:$0xf]
  %v1109 = vunpack.c.l.b16 %v1077
  %v1110 = vunpack.c.l.b16 %v1078
  %v1111 = vunpack.c.l.b16 %v1079
  %v1112 = vunpack.c.l.b16 %v1080
  %v1113 = vunpack.c.l.b16 %v1081
  %v1114 = vunpack.c.l.b16 %v1082
  %v1115 = vunpack.c.l.b16 %v1083
  %v1116 = vunpack.c.l.b16 %v1084
  %v1117 = vunpack.c.l.b16 %v1085
  %v1118 = vunpack.c.l.b16 %v1086
  %v1119 = vunpack.c.l.b16 %v1087
  %v1120 = vunpack.c.l.b16 %v1088
  %v1121 = vunpack.c.l.b16 %v1089
  %v1122 = vunpack.c.l.b16 %v1090
  %v1123 = vunpack.c.l.b16 %v1091
  %v1124 = vunpack.c.l.b16 %v1092
  %v1125 = vpack.c.b16 %v1110, %v1109
  %v1126 = vpack.c.b16 %v1112, %v1111
  %v1127 = vpack.c.b16 %v1114, %v1113
  %v1128 = vpack.c.b16 %v1116, %v1115
  %v1129 = vpack.c.b16 %v1118, %v1117
  %v1130 = vpack.c.b16 %v1120, %v1119
  %v1131 = vpack.c.b16 %v1122, %v1121
  %v1132 = vpack.c.b16 %v1124, %v1123
  %1141 = vmatprep.subr.bf16.mxu0 0
  %1142 = vmatpush1.bf16.msra.mxu0 %v1132
  %1143 = vmatprep.subr.bf16.mxu0 0
  %1144 = vmatpush1.bf16.msra.mxu0 %v1131
  %1145 = vmatprep.subr.bf16.mxu0 0
  %1146 = vmatpush1.bf16.msra.mxu0 %v1130
  %1147 = vmatprep.subr.bf16.mxu0 0
  %1148 = vmatpush1.bf16.msra.mxu0 %v1129
  %1149 = vmatprep.subr.bf16.mxu0 0
  %1150 = vmatpush1.bf16.msra.mxu0 %v1128
  %1151 = vmatprep.subr.bf16.mxu0 0
  %1152 = vmatpush1.bf16.msra.mxu0 %v1127
  %1153 = vmatprep.subr.bf16.mxu0 0
  %1154 = vmatpush1.bf16.msra.mxu0 %v1126
  %1155 = vmatprep.subr.bf16.mxu0 0
  %1156 = vmatpush1.bf16.msra.mxu0 %v1125
  %1157 = vmatprep.subr.bf16.mxu0 0
  %1158 = vmatpush2.bf16.msra.mxu0 0
  %1159 = vmatprep.subr.bf16.mxu0 0
  %1160 = vmatpush2.bf16.msra.mxu0 0
  %1161 = vmatprep.subr.bf16.mxu0 0
  %1162 = vmatpush2.bf16.msra.mxu0 0
  %1163 = vmatprep.subr.bf16.mxu0 0
  %1164 = vmatpush2.bf16.msra.mxu0 0
  %1165 = vmatprep.subr.bf16.mxu0 0
  %1166 = vmatpush2.bf16.msra.mxu0 0
  %1167 = vmatprep.subr.bf16.mxu0 0
  %1168 = vmatpush2.bf16.msra.mxu0 0
  %1169 = vmatprep.subr.bf16.mxu0 0
  %1170 = vmatpush2.bf16.msra.mxu0 0
  %1171 = vmatprep.subr.bf16.mxu0 0
  %1172 = vmatpush2.bf16.msra.mxu0 0
  %1173 = vmatprep.mubr.bf16.mxu0 0
  %1174 = vmatmul.mubr.bf16.gmra.mxu0 %v1045
  %v1175 = vpop.f32.mrf.mxu0
  %v1176 = vadd.f32 0.0, %v1175
  %v1177 = vpop.f32.mrf.mxu0
  %v1178 = vpop.f32.mrf.mxu0
  %v1179 = vadd.f32 0.0, %v1178
  %v1180 = vpop.f32.mrf.mxu0
  %1181 = vmatprep.mubr.bf16.mxu0 0
  %1182 = vmatmul.mubr.bf16.gmra.mxu0 %v1074
  %v1183 = vpop.f32.mrf.mxu0
  %v1184 = vadd.f32 0.0, %v1183
  %v1185 = vpop.f32.mrf.mxu0
  %v1186 = vpop.f32.mrf.mxu0
  %v1187 = vadd.f32 0.0, %v1186
  %v1188 = vpop.f32.mrf.mxu0
  %1189 = vmatprep.mubr.bf16.mxu0 0
  %1190 = vmatmul.mubr.bf16.gmra.mxu0 %v1070
  %v1191 = vpop.f32.mrf.mxu0
  %v1192 = vadd.f32 0.0, %v1191
  %v1193 = vpop.f32.mrf.mxu0
  %v1194 = vpop.f32.mrf.mxu0
  %v1195 = vadd.f32 0.0, %v1194
  %v1196 = vpop.f32.mrf.mxu0
  %1197 = vdwg.mxu0
  %v1198 = vadd.f32 %v1012, %v1176
  %v1199 = vadd.f32 %v1013, %v1179
  %v1200 = vadd.f32 %v1014, %v1184
  %v1201 = vadd.f32 %v1015, %v1187
  %v1202 = vadd.f32 %v1016, %v1192
  %v1203 = vadd.f32 %v1017, %v1195
  %v1204 = vld [vmem:[%s0 + $0x4] sm:$0xc]
  %v1205 = vld [vmem:[%s0 + $0x14] sm:$0xf]
  %v1206 = vld [vmem:[%s0 + $0x24] sm:$0xf]
  %v1207 = vld [vmem:[%s0 + $0x34] sm:$0x7]
  %v1208 = vld [vmem:[%s18 + $0x4] sm:$0xc]
  %v1209 = vld [vmem:[%s18 + $0x14] sm:$0xf]
  %v1210 = vld [vmem:[%s18 + $0x24] sm:$0xf]
  %v1211 = vld [vmem:[%s18 + $0x34] sm:$0x7]
  %v1216 = vunpack.c.l.b16 %v1204
  %v1217 = vunpack.c.l.b16 %v1205
  %v1218 = vunpack.c.l.b16 %v1206
  %v1219 = vunpack.c.l.b16 %v1207
  %v1220 = vpack.c.b16 %v1217, %v1216
  %v1221 = vpack.c.b16 %v1219, %v1218
  %v1223 = vshrl.u32 %v1220, 16
  %v1225 = vrot.slane %v1223, 2
  %v1226 = vshll.u32 %v1220, 16
  %v1228 = vrot.slane %v1226, 3
  %v1229 = vor.u32 %v1225, %v1228
  %v1231 = vshrl.u32 %v1221, 16
  %v1233 = vrot.slane %v1231, 2
  %v1234 = vshll.u32 %v1221, 16
  %v1236 = vrot.slane %v1234, 3
  %v1237 = vor.u32 %v1233, %v1236
  %v1238 = vsel %vm1028, %v1229, %v1237
  %v1244 = vunpack.c.l.b16 %v1208
  %v1245 = vunpack.c.l.b16 %v1209
  %v1246 = vunpack.c.l.b16 %v1210
  %v1247 = vunpack.c.l.b16 %v1211
  %v1248 = vpack.c.b16 %v1245, %v1244
  %v1249 = vpack.c.b16 %v1247, %v1246
  %v1251 = vshrl.u32 %v1248, 16
  %v1253 = vrot.slane %v1251, 6
  %v1254 = vshll.u32 %v1248, 16
  %v1256 = vrot.slane %v1254, 7
  %v1257 = vor.u32 %v1253, %v1256
  %v1259 = vshrl.u32 %v1249, 16
  %v1261 = vrot.slane %v1259, 6
  %v1262 = vshll.u32 %v1249, 16
  %v1264 = vrot.slane %v1262, 7
  %v1265 = vor.u32 %v1261, %v1264
  %v1266 = vsel %vm1053, %v1257, %v1265
  %v1270 = vsel %vm40, %v1237, %v1257
  %s1272 = scalar_lea.vmem %s1, 448
  %v1273 = vld [vmem:[%s1272] sm:$0xf]
  %v1274 = vld [vmem:[%s1272 + $0x4] sm:$0xf]
  %v1275 = vld [vmem:[%s1272 + $0x8] sm:$0xf]
  %v1276 = vld [vmem:[%s1272 + $0xc] sm:$0xf]
  %v1277 = vld [vmem:[%s1272 + $0x10] sm:$0xf]
  %v1278 = vld [vmem:[%s1272 + $0x14] sm:$0xf]
  %v1279 = vld [vmem:[%s1272 + $0x18] sm:$0xf]
  %v1280 = vld [vmem:[%s1272 + $0x1c] sm:$0xf]
  %v1281 = vld [vmem:[%s1272 + $0x20] sm:$0xf]
  %v1282 = vld [vmem:[%s1272 + $0x24] sm:$0xf]
  %v1283 = vld [vmem:[%s1272 + $0x28] sm:$0xf]
  %v1284 = vld [vmem:[%s1272 + $0x2c] sm:$0xf]
  %v1285 = vld [vmem:[%s1272 + $0x30] sm:$0xf]
  %v1286 = vld [vmem:[%s1272 + $0x34] sm:$0xf]
  %v1287 = vld [vmem:[%s1272 + $0x38] sm:$0xf]
  %v1288 = vld [vmem:[%s1272 + $0x3c] sm:$0xf]
  %v1305 = vunpack.c.l.b16 %v1273
  %v1306 = vunpack.c.l.b16 %v1274
  %v1307 = vunpack.c.l.b16 %v1275
  %v1308 = vunpack.c.l.b16 %v1276
  %v1309 = vunpack.c.l.b16 %v1277
  %v1310 = vunpack.c.l.b16 %v1278
  %v1311 = vunpack.c.l.b16 %v1279
  %v1312 = vunpack.c.l.b16 %v1280
  %v1313 = vunpack.c.l.b16 %v1281
  %v1314 = vunpack.c.l.b16 %v1282
  %v1315 = vunpack.c.l.b16 %v1283
  %v1316 = vunpack.c.l.b16 %v1284
  %v1317 = vunpack.c.l.b16 %v1285
  %v1318 = vunpack.c.l.b16 %v1286
  %v1319 = vunpack.c.l.b16 %v1287
  %v1320 = vunpack.c.l.b16 %v1288
  %v1321 = vpack.c.b16 %v1306, %v1305
  %v1322 = vpack.c.b16 %v1308, %v1307
  %v1323 = vpack.c.b16 %v1310, %v1309
  %v1324 = vpack.c.b16 %v1312, %v1311
  %v1325 = vpack.c.b16 %v1314, %v1313
  %v1326 = vpack.c.b16 %v1316, %v1315
  %v1327 = vpack.c.b16 %v1318, %v1317
  %v1328 = vpack.c.b16 %v1320, %v1319
  %1337 = vmatprep.subr.bf16.mxu0 0
  %1338 = vmatpush1.bf16.msra.mxu0 %v1328
  %1339 = vmatprep.subr.bf16.mxu0 0
  %1340 = vmatpush1.bf16.msra.mxu0 %v1327
  %1341 = vmatprep.subr.bf16.mxu0 0
  %1342 = vmatpush1.bf16.msra.mxu0 %v1326
  %1343 = vmatprep.subr.bf16.mxu0 0
  %1344 = vmatpush1.bf16.msra.mxu0 %v1325
  %1345 = vmatprep.subr.bf16.mxu0 0
  %1346 = vmatpush1.bf16.msra.mxu0 %v1324
  %1347 = vmatprep.subr.bf16.mxu0 0
  %1348 = vmatpush1.bf16.msra.mxu0 %v1323
  %1349 = vmatprep.subr.bf16.mxu0 0
  %1350 = vmatpush1.bf16.msra.mxu0 %v1322
  %1351 = vmatprep.subr.bf16.mxu0 0
  %1352 = vmatpush1.bf16.msra.mxu0 %v1321
  %1353 = vmatprep.subr.bf16.mxu0 0
  %1354 = vmatpush2.bf16.msra.mxu0 0
  %1355 = vmatprep.subr.bf16.mxu0 0
  %1356 = vmatpush2.bf16.msra.mxu0 0
  %1357 = vmatprep.subr.bf16.mxu0 0
  %1358 = vmatpush2.bf16.msra.mxu0 0
  %1359 = vmatprep.subr.bf16.mxu0 0
  %1360 = vmatpush2.bf16.msra.mxu0 0
  %1361 = vmatprep.subr.bf16.mxu0 0
  %1362 = vmatpush2.bf16.msra.mxu0 0
  %1363 = vmatprep.subr.bf16.mxu0 0
  %1364 = vmatpush2.bf16.msra.mxu0 0
  %1365 = vmatprep.subr.bf16.mxu0 0
  %1366 = vmatpush2.bf16.msra.mxu0 0
  %1367 = vmatprep.subr.bf16.mxu0 0
  %1368 = vmatpush2.bf16.msra.mxu0 0
  %1369 = vmatprep.mubr.bf16.mxu0 0
  %1370 = vmatmul.mubr.bf16.gmra.mxu0 %v1238
  %v1371 = vpop.f32.mrf.mxu0
  %v1372 = vadd.f32 0.0, %v1371
  %v1373 = vpop.f32.mrf.mxu0
  %v1374 = vpop.f32.mrf.mxu0
  %v1375 = vadd.f32 0.0, %v1374
  %v1376 = vpop.f32.mrf.mxu0
  %1377 = vmatprep.mubr.bf16.mxu0 0
  %1378 = vmatmul.mubr.bf16.gmra.mxu0 %v1270
  %v1379 = vpop.f32.mrf.mxu0
  %v1380 = vadd.f32 0.0, %v1379
  %v1381 = vpop.f32.mrf.mxu0
  %v1382 = vpop.f32.mrf.mxu0
  %v1383 = vadd.f32 0.0, %v1382
  %v1384 = vpop.f32.mrf.mxu0
  %1385 = vmatprep.mubr.bf16.mxu0 0
  %1386 = vmatmul.mubr.bf16.gmra.mxu0 %v1266
  %v1387 = vpop.f32.mrf.mxu0
  %v1388 = vadd.f32 0.0, %v1387
  %v1389 = vpop.f32.mrf.mxu0
  %v1390 = vpop.f32.mrf.mxu0
  %v1391 = vadd.f32 0.0, %v1390
  %v1392 = vpop.f32.mrf.mxu0
  %1393 = vdwg.mxu0
  %v1394 = vadd.f32 %v1198, %v1372
  %v1395 = vadd.f32 %v1199, %v1375
  %v1396 = vadd.f32 %v1200, %v1380
  %v1397 = vadd.f32 %v1201, %v1383
  %v1398 = vadd.f32 %v1202, %v1388
  %v1399 = vadd.f32 %v1203, %v1391
  %v1400 = vld [vmem:[%s0] sm:$0x8]
  %v1401 = vld [vmem:[%s18] sm:$0x8]
  %v1403 = vunpack.c.l.b16 %v1400
  %v1404 = vpack.c.b16 %v329, %v1403
  %vm1405 = vcmask 1044480
  %v1406 = vrot.slane %v1404, 3
  %v1407 = vrot.slane %v1027, 3
  %v1408 = vsel %vm1405, %v1406, %v1407
  %v1411 = vunpack.c.l.b16 %v1401
  %v1412 = vpack.c.b16 %v356, %v1411
  %vm1413 = vcmask 1040384
  %v1414 = vrot.slane %v1412, 7
  %v1415 = vrot.slane %v1052, 7
  %v1416 = vsel %vm1413, %v1414, %v1415
  %v1420 = vsel %vm40, %v1407, %v1414
  %s1422 = scalar_lea.vmem %s1, 512
  %v1423 = vld [vmem:[%s1422] sm:$0xf]
  %v1424 = vld [vmem:[%s1422 + $0x4] sm:$0xf]
  %v1425 = vld [vmem:[%s1422 + $0x8] sm:$0xf]
  %v1426 = vld [vmem:[%s1422 + $0xc] sm:$0xf]
  %v1427 = vld [vmem:[%s1422 + $0x10] sm:$0xf]
  %v1428 = vld [vmem:[%s1422 + $0x14] sm:$0xf]
  %v1429 = vld [vmem:[%s1422 + $0x18] sm:$0xf]
  %v1430 = vld [vmem:[%s1422 + $0x1c] sm:$0xf]
  %v1431 = vld [vmem:[%s1422 + $0x20] sm:$0xf]
  %v1432 = vld [vmem:[%s1422 + $0x24] sm:$0xf]
  %v1433 = vld [vmem:[%s1422 + $0x28] sm:$0xf]
  %v1434 = vld [vmem:[%s1422 + $0x2c] sm:$0xf]
  %v1435 = vld [vmem:[%s1422 + $0x30] sm:$0xf]
  %v1436 = vld [vmem:[%s1422 + $0x34] sm:$0xf]
  %v1437 = vld [vmem:[%s1422 + $0x38] sm:$0xf]
  %v1438 = vld [vmem:[%s1422 + $0x3c] sm:$0xf]
  %v1455 = vunpack.c.l.b16 %v1423
  %v1456 = vunpack.c.l.b16 %v1424
  %v1457 = vunpack.c.l.b16 %v1425
  %v1458 = vunpack.c.l.b16 %v1426
  %v1459 = vunpack.c.l.b16 %v1427
  %v1460 = vunpack.c.l.b16 %v1428
  %v1461 = vunpack.c.l.b16 %v1429
  %v1462 = vunpack.c.l.b16 %v1430
  %v1463 = vunpack.c.l.b16 %v1431
  %v1464 = vunpack.c.l.b16 %v1432
  %v1465 = vunpack.c.l.b16 %v1433
  %v1466 = vunpack.c.l.b16 %v1434
  %v1467 = vunpack.c.l.b16 %v1435
  %v1468 = vunpack.c.l.b16 %v1436
  %v1469 = vunpack.c.l.b16 %v1437
  %v1470 = vunpack.c.l.b16 %v1438
  %v1471 = vpack.c.b16 %v1456, %v1455
  %v1472 = vpack.c.b16 %v1458, %v1457
  %v1473 = vpack.c.b16 %v1460, %v1459
  %v1474 = vpack.c.b16 %v1462, %v1461
  %v1475 = vpack.c.b16 %v1464, %v1463
  %v1476 = vpack.c.b16 %v1466, %v1465
  %v1477 = vpack.c.b16 %v1468, %v1467
  %v1478 = vpack.c.b16 %v1470, %v1469
  %1487 = vmatprep.subr.bf16.mxu0 0
  %1488 = vmatpush1.bf16.msra.mxu0 %v1478
  %1489 = vmatprep.subr.bf16.mxu0 0
  %1490 = vmatpush1.bf16.msra.mxu0 %v1477
  %1491 = vmatprep.subr.bf16.mxu0 0
  %1492 = vmatpush1.bf16.msra.mxu0 %v1476
  %1493 = vmatprep.subr.bf16.mxu0 0
  %1494 = vmatpush1.bf16.msra.mxu0 %v1475
  %1495 = vmatprep.subr.bf16.mxu0 0
  %1496 = vmatpush1.bf16.msra.mxu0 %v1474
  %1497 = vmatprep.subr.bf16.mxu0 0
  %1498 = vmatpush1.bf16.msra.mxu0 %v1473
  %1499 = vmatprep.subr.bf16.mxu0 0
  %1500 = vmatpush1.bf16.msra.mxu0 %v1472
  %1501 = vmatprep.subr.bf16.mxu0 0
  %1502 = vmatpush1.bf16.msra.mxu0 %v1471
  %1503 = vmatprep.subr.bf16.mxu0 0
  %1504 = vmatpush2.bf16.msra.mxu0 0
  %1505 = vmatprep.subr.bf16.mxu0 0
  %1506 = vmatpush2.bf16.msra.mxu0 0
  %1507 = vmatprep.subr.bf16.mxu0 0
  %1508 = vmatpush2.bf16.msra.mxu0 0
  %1509 = vmatprep.subr.bf16.mxu0 0
  %1510 = vmatpush2.bf16.msra.mxu0 0
  %1511 = vmatprep.subr.bf16.mxu0 0
  %1512 = vmatpush2.bf16.msra.mxu0 0
  %1513 = vmatprep.subr.bf16.mxu0 0
  %1514 = vmatpush2.bf16.msra.mxu0 0
  %1515 = vmatprep.subr.bf16.mxu0 0
  %1516 = vmatpush2.bf16.msra.mxu0 0
  %1517 = vmatprep.subr.bf16.mxu0 0
  %1518 = vmatpush2.bf16.msra.mxu0 0
  %1519 = vmatprep.mubr.bf16.mxu0 0
  %1520 = vmatmul.mubr.bf16.gmra.mxu0 %v1408
  %v1521 = vpop.f32.mrf.mxu0
  %v1522 = vadd.f32 0.0, %v1521
  %v1523 = vpop.f32.mrf.mxu0
  %v1524 = vpop.f32.mrf.mxu0
  %v1525 = vadd.f32 0.0, %v1524
  %v1526 = vpop.f32.mrf.mxu0
  %1527 = vmatprep.mubr.bf16.mxu0 0
  %1528 = vmatmul.mubr.bf16.gmra.mxu0 %v1420
  %v1529 = vpop.f32.mrf.mxu0
  %v1530 = vadd.f32 0.0, %v1529
  %v1531 = vpop.f32.mrf.mxu0
  %v1532 = vpop.f32.mrf.mxu0
  %v1533 = vadd.f32 0.0, %v1532
  %v1534 = vpop.f32.mrf.mxu0
  %1535 = vmatprep.mubr.bf16.mxu0 0
  %1536 = vmatmul.mubr.bf16.gmra.mxu0 %v1416
  %v1537 = vpop.f32.mrf.mxu0
  %v1538 = vadd.f32 0.0, %v1537
  %v1539 = vpop.f32.mrf.mxu0
  %v1540 = vpop.f32.mrf.mxu0
  %v1541 = vadd.f32 0.0, %v1540
  %v1542 = vpop.f32.mrf.mxu0
  %1543 = vdwg.mxu0
  %v1544 = vadd.f32 %v1394, %v1522
  %v1545 = vadd.f32 %v1395, %v1525
  %v1546 = vadd.f32 %v1396, %v1530
  %v1547 = vadd.f32 %v1397, %v1533
  %v1548 = vadd.f32 %v1398, %v1538
  %v1549 = vadd.f32 %v1399, %v1541
  %v1550 = vld [vmem:[%s2] sm:$0x1]
  %v1552 = vlaneseq
  %v1553 = vshrl.u32 %v1552, 7
  %v1554 = vsub.s32 0, %v1553
  %v1555 = vrot.slane %v1550, %v1554
  %v1557 = vadd.f32 %v1544, %v1555
  %v1558 = vadd.f32 %v1545, %v1555
  %v1559 = vadd.f32 %v1546, %v1555
  %v1560 = vadd.f32 %v1547, %v1555
  %v1561 = vadd.f32 %v1548, %v1555
  %v1562 = vadd.f32 %v1549, %v1555
  %1563 = vst [vmem:[%s3] sm:$0xff] %v1557
  %1564 = vst [vmem:[%s3 + $0x8] sm:$0xff] %v1558
  %1565 = vst [vmem:[%s3 + $0x10] sm:$0xff] %v1559
  %s1566 = scalar_lea.vmem %s3, 24
  %1567 = vst [vmem:[%s1566] sm:$0xff] %v1560
  %1568 = vst [vmem:[%s1566 + $0x8] sm:$0xff] %v1561
  %1569 = vst [vmem:[%s1566 + $0x10] sm:$0xff] %v1562
  // Predicated region
  $region14: #{last_level_p6p7_forward.3} parent=0 // pred_check
    _
  $region15: #{last_level_p6p7_forward.3} parent=0 // pred_check_branch
    %1571 = sbr.rel (0) target = $region17
  $region16: #{last_level_p6p7_forward.3} parent=0 // pred_region
    _
  $region17: #{last_level_p6p7_forward.3} parent=0 // pred_fallthru
    _
  // Predicated region
  $region18: #{last_level_p6p7_forward.3} parent=0 // pred_check
    _
  $region19: #{last_level_p6p7_forward.3} parent=0 // pred_check_branch
    %1573 = sbr.rel (0) target = $region21
  $region20: #{last_level_p6p7_forward.3} parent=0 // pred_region
    _
  $region21: #{last_level_p6p7_forward.3} parent=0 // pred_fallthru
    _

// kernel: last_level_p6p7_forward.2
$region0: #{last_level_p6p7_forward.2}
  #allocation0 [shape = 'u32[]', space=smem, size = 0x4, offset = 0x4, fixed_abs, tag = 'smem constant byte address 0x4 - core index']
  #allocation1 [shape = 'u32[144,128]{1,0:T(1,128)}', space=vmem, size = 0x12000, scoped, tag = 'internal scratch']
  %s0 = inlined_call_operand.vmem [shape: bf16[2,90,512], index: 0, kind: input, shape index: {}]
  %s1 = inlined_call_operand.vmem [shape: bf16[9,128,128], index: 1, kind: input, shape index: {}]
  %s2 = inlined_call_operand.vmem [shape: f32[1,128], index: 2, kind: input, shape index: {}]
  %s3 = inlined_call_operand.vmem [shape: f32[2,72,128], index: 3, kind: output, shape index: {}]
  %s4 = sld [smem:[#allocation0]]
  $region45: #{last_level_p6p7_forward.2} parent=0
    _
  %s6 = ssub.s32 1, %s4
  %s7 = scalar_select 0, %s6, %s4
  loop: start=0, step=1, limit=4
  $region2: #{last_level_p6p7_forward.2} parent=0 // loop_pre_header
    _
  $region3: #{last_level_p6p7_forward.2} parent=0 // loop_header
    %s9 = sphi 0, %s13
    %p10 = scmp.ge.s32.totalorder %s9, 4
    %s16 = sphi 0, %s28
    %s17 = sphi 0, %s24
    %s18 = sphi 0, %s16
    %s19 = sphi 0, %s17
    %s20 = sphi 0, %s18
    %s21 = sphi 0, %s19
    %s31 = sphi 0, %s33
    %s34 = sphi 0, %s31
    %s35 = sphi 0, %s34
    %s51 = sphi 0, %s35
    %s57 = sphi 0, %s59
    %s60 = sphi 0, %s57
    %s61 = sphi 0, %s60
    %s77 = sphi 0, %s61
    %s83 = sphi 0, %s85
    %s86 = sphi 0, %s83
    %s87 = sphi 0, %s86
    %s103 = sphi 0, %s87
    %s111 = sphi 0, %s113
    %s114 = sphi 0, %s111
    %s115 = sphi 0, %s114
    %s131 = sphi 0, %s115
  $region4: #{last_level_p6p7_forward.2} parent=0 // loop_header_branch
    %12 = sbr.rel (%p10) target = $region8
  $region5: #{last_level_p6p7_forward.2} parent=0 // loop_body
    %s14 = ssub.s32 %s9, 1
    %s15 = ssub.s32 %s9, 2
    %s22 = sadd.s32 1, %s17
    %p23 = scmp.ge.s32.totalorder %s22, 1
    %s24 = scalar_select %p23, 0, %s22
    %s25 = sadd.s32 1, %s16
    %s26 = scalar_select %p23, %s25, %s16
    %p27 = scmp.ge.s32.totalorder %s26, 2
    %s28 = scalar_select %p27, 0, %s26
    %s29 = ssub.s32 %s16, %s28
    %p30 = scmp.eq.s32.totalorder %s29, 0
    %s32 = sadd.s32 %s31, 1
    %s33 = scalar_select %p30, %s31, %s32
    %p36 = pneg %p30
    %p37 = scmp.eq.s32.totalorder %s9, 1
    %p38 = por %p36, %p37
    %p39 = scmp.ne.s32.totalorder %s31, %s34
    %p40 = scmp.eq.s32.totalorder %s9, 0
    %p41 = por %p39, %p40
    %p42 = scmp.ne.s32.totalorder %s31, %s34
    %p43 = scmp.eq.s32.totalorder %s14, 1
    %p44 = por %p42, %p43
    %p45 = scmp.ne.s32.totalorder %s34, %s35
    %p46 = scmp.eq.s32.totalorder %s14, 0
    %p47 = por %p45, %p46
    %p48 = scmp.ne.s32.totalorder %s34, %s35
    %p49 = scmp.eq.s32.totalorder %s15, 1
    %p50 = por %p48, %p49
    %p52 = scmp.ne.s32.totalorder %s35, %s51
    %p53 = scmp.eq.s32.totalorder %s15, 0
    %p54 = por %p52, %p53
    %s55 = ssub.s32 %s17, %s24
    %p56 = scmp.eq.s32.totalorder %s55, 0
    %s58 = sadd.s32 %s57, 1
    %s59 = scalar_select %p56, %s57, %s58
    %p62 = pneg %p56
    %p63 = scmp.eq.s32.totalorder %s9, 1
    %p64 = por %p62, %p63
    %p65 = scmp.ne.s32.totalorder %s57, %s60
    %p66 = scmp.eq.s32.totalorder %s9, 0
    %p67 = por %p65, %p66
    %p68 = scmp.ne.s32.totalorder %s57, %s60
    %p69 = scmp.eq.s32.totalorder %s14, 1
    %p70 = por %p68, %p69
    %p71 = scmp.ne.s32.totalorder %s60, %s61
    %p72 = scmp.eq.s32.totalorder %s14, 0
    %p73 = por %p71, %p72
    %p74 = scmp.ne.s32.totalorder %s60, %s61
    %p75 = scmp.eq.s32.totalorder %s15, 1
    %p76 = por %p74, %p75
    %p78 = scmp.ne.s32.totalorder %s61, %s77
    %p79 = scmp.eq.s32.totalorder %s15, 0
    %p80 = por %p78, %p79
    %s81 = ssub.s32 %s17, %s24
    %p82 = scmp.eq.s32.totalorder %s81, 0
    %s84 = sadd.s32 %s83, 1
    %s85 = scalar_select %p82, %s83, %s84
    %p88 = pneg %p82
    %p89 = scmp.eq.s32.totalorder %s9, 1
    %p90 = por %p88, %p89
    %p91 = scmp.ne.s32.totalorder %s83, %s86
    %p92 = scmp.eq.s32.totalorder %s9, 0
    %p93 = por %p91, %p92
    %p94 = scmp.ne.s32.totalorder %s83, %s86
    %p95 = scmp.eq.s32.totalorder %s14, 1
    %p96 = por %p94, %p95
    %p97 = scmp.ne.s32.totalorder %s86, %s87
    %p98 = scmp.eq.s32.totalorder %s14, 0
    %p99 = por %p97, %p98
    %p100 = scmp.ne.s32.totalorder %s86, %s87
    %p101 = scmp.eq.s32.totalorder %s15, 1
    %p102 = por %p100, %p101
    %p104 = scmp.ne.s32.totalorder %s87, %s103
    %p105 = scmp.eq.s32.totalorder %s15, 0
    %p106 = por %p104, %p105
    %s107 = ssub.s32 %s16, %s28
    %s108 = ssub.s32 %s17, %s24
    %s109 = sor.u32 %s107, %s108
    %p110 = scmp.eq.s32.totalorder %s109, 0
    %s112 = sadd.s32 %s111, 1
    %s113 = scalar_select %p110, %s111, %s112
    %p116 = pneg %p110
    %p117 = scmp.eq.s32.totalorder %s9, 1
    %p118 = por %p116, %p117
    %p119 = scmp.ne.s32.totalorder %s111, %s114
    %p120 = scmp.eq.s32.totalorder %s9, 0
    %p121 = por %p119, %p120
    %p122 = scmp.ne.s32.totalorder %s111, %s114
    %p123 = scmp.eq.s32.totalorder %s14, 1
    %p124 = por %p122, %p123
    %p125 = scmp.ne.s32.totalorder %s114, %s115
    %p126 = scmp.eq.s32.totalorder %s14, 0
    %p127 = por %p125, %p126
    %p128 = scmp.ne.s32.totalorder %s114, %s115
    %p129 = scmp.eq.s32.totalorder %s15, 1
    %p130 = por %p128, %p129
    %p132 = scmp.ne.s32.totalorder %s115, %s131
    %p133 = scmp.eq.s32.totalorder %s15, 0
    %p134 = por %p132, %p133
    %p135 = scmp.le.s32.totalorder 1, %s9
    %p136 = scmp.lt.s32.totalorder %s9, 3
    %p137 = pnand %p135, %p136
    %p138 = pneg %p137
    // Predicated region
    $region9: #{last_level_p6p7_forward.2} parent=5 // pred_check
      _
    $region10: #{last_level_p6p7_forward.2} parent=5 // pred_check_branch
      %140 = sbr.rel (%p137) target = $region12
    $region11: #{last_level_p6p7_forward.2} parent=5 // pred_region
      %s141 = ssub.s32 %s9, 1
      // Predicated region
      $region13: #{last_level_p6p7_forward.2} parent=11 // pred_check
        %p142 = pneg %p73
      $region14: #{last_level_p6p7_forward.2} parent=11 // pred_check_branch
        %144 = sbr.rel (%p142) target = $region16
      $region15: #{last_level_p6p7_forward.2} parent=11 // pred_region
        %p145 = scmp.lt.s32.totalorder %s19, 0
        %s146 = scalar_select %p145, %s19, 0
        %s147 = smul.addr %s146, 4
        %s148 = scalar_lea.vmem %s1, %s147
      $region16: #{last_level_p6p7_forward.2} parent=11 // pred_fallthru
        _
      // Predicated region
      $region17: #{last_level_p6p7_forward.2} parent=11 // pred_check
        %p149 = pneg %p99
      $region18: #{last_level_p6p7_forward.2} parent=11 // pred_check_branch
        %151 = sbr.rel (%p149) target = $region20
      $region19: #{last_level_p6p7_forward.2} parent=11 // pred_region
        %p152 = scmp.lt.s32.totalorder %s19, 0
        %s153 = scalar_select %p152, %s19, 0
        %s154 = scalar_lea.vmem %s2, %s153
      $region20: #{last_level_p6p7_forward.2} parent=11 // pred_fallthru
        _
    $region12: #{last_level_p6p7_forward.2} parent=5 // pred_fallthru
      _
    %p155 = scmp.lt.s32.totalorder %s9, 2
    // Predicated region
    $region21: #{last_level_p6p7_forward.2} parent=5 // pred_check
      %p156 = pneg %p155
    $region22: #{last_level_p6p7_forward.2} parent=5 // pred_check_branch
      %158 = sbr.rel (%p156) target = $region24
    $region23: #{last_level_p6p7_forward.2} parent=5 // pred_region
      // Predicated region
      $region25: #{last_level_p6p7_forward.2} parent=23 // pred_check
        %p159 = pneg %p41
      $region26: #{last_level_p6p7_forward.2} parent=23 // pred_check_branch
        %161 = sbr.rel (%p159) target = $region28
      $region27: #{last_level_p6p7_forward.2} parent=23 // pred_region
        %p162 = scmp.lt.s32.totalorder %s16, 1
        %s163 = scalar_select %p162, %s16, 1
        %s164 = smul.addr %s163, 48
        %s165 = smul.addr %s164, 4
        %s166 = scalar_lea.vmem %s0, %s165
      $region28: #{last_level_p6p7_forward.2} parent=23 // pred_fallthru
        _
    $region24: #{last_level_p6p7_forward.2} parent=5 // pred_fallthru
      _
    %p167 = scmp.le.s32.totalorder 1, %s9
    %p168 = scmp.lt.s32.totalorder %s9, 3
    %p169 = pnand %p167, %p168
    %p170 = pneg %p169
    // Predicated region
    $region29: #{last_level_p6p7_forward.2} parent=5 // pred_check
      _
    $region30: #{last_level_p6p7_forward.2} parent=5 // pred_check_branch
      %172 = sbr.rel (%p169) target = $region32
    $region31: #{last_level_p6p7_forward.2} parent=5 // pred_region
      %s173 = ssub.s32 %s9, 1
      %p174 = scmp.lt.s32.totalorder %s18, 1
      %s175 = scalar_select %p174, %s18, 1
      %s176 = smul.addr %s175, 48
      %s177 = smul.addr %s176, 4
      %s178 = scalar_lea.vmem %s0, %s177
      %p179 = pneg %p47
      %p180 = pneg %p44
      %p181 = scmp.lt.s32.totalorder %s19, 0
      %s182 = scalar_select %p181, %s19, 0
      %s183 = smul.addr %s182, 4
      %s184 = scalar_lea.vmem %s1, %s183
      %p185 = pneg %p73
      %p186 = pneg %p70
      %p187 = scmp.lt.s32.totalorder %s19, 0
      %s188 = scalar_select %p187, %s19, 0
      %s189 = scalar_lea.vmem %s2, %s188
      %p190 = pneg %p99
      %p191 = pneg %p96
      %p192 = pneg %p127
      %p193 = pneg %p124
      %p194 = scmp.lt.s32.totalorder %s18, 1
      %s195 = scalar_select %p194, %s18, 1
      %p196 = scmp.lt.s32.totalorder %s19, 0
      %s197 = scalar_select %p196, %s19, 0
      %s198 = smul.addr %s195, 9
      %s199 = sadd.s32 %s197, %s198
      %s200 = smul.addr %s199, 8
      %s201 = scalar_lea.vmem %s3, %s200
      %p202 = scmp.lt.s32.totalorder %s18, 1
      %s203 = scalar_select %p202, %s18, 1
      %s204 = smul.addr %s203, 48
      %s205 = smul.addr %s204, 4
      %s206 = scalar_lea.vmem %s0, %s205
      %p207 = scmp.lt.s32.totalorder %s19, 0
      %s208 = scalar_select %p207, %s19, 0
      %s209 = smul.addr %s208, 4
      %s210 = scalar_lea.vmem %s1, %s209
      %p211 = scmp.lt.s32.totalorder %s19, 0
      %s212 = scalar_select %p211, %s19, 0
      %s213 = scalar_lea.vmem %s2, %s212
      %p214 = scmp.lt.s32.totalorder %s18, 1
      %s215 = scalar_select %p214, %s18, 1
      %p216 = scmp.lt.s32.totalorder %s19, 0
      %s217 = scalar_select %p216, %s19, 0
      %s218 = smul.addr %s215, 9
      %s219 = sadd.s32 %s217, %s218
      %s220 = smul.addr %s219, 8
      %s221 = scalar_lea.vmem %s3, %s220
      %v223 = vld [vmem:[%s206] sm:$0xf]
      %v224 = vld [vmem:[%s206 + $0x10] sm:$0xf]
      %v225 = vld [vmem:[%s206 + $0x20] sm:$0xf]
      %v226 = vld [vmem:[%s206 + $0x30] sm:$0xf]
      %v227 = vld [vmem:[%s206 + $0x40] sm:$0xf]
      %v228 = vld [vmem:[%s206 + $0x50] sm:$0xf]
      %v229 = vld [vmem:[%s206 + $0x60] sm:$0xf]
      %v230 = vld [vmem:[%s206 + $0x70] sm:$0xf]
      %v231 = vld [vmem:[%s206 + $0x80] sm:$0xf]
      %v232 = vld [vmem:[%s210] sm:$0xf]
      %v233 = vld [vmem:[%s210 + $0x4] sm:$0xf]
      %v234 = vld [vmem:[%s210 + $0x8] sm:$0xf]
      %v235 = vld [vmem:[%s210 + $0xc] sm:$0xf]
      %v236 = vld [vmem:[%s210 + $0x10] sm:$0xf]
      %v237 = vld [vmem:[%s210 + $0x14] sm:$0xf]
      %v238 = vld [vmem:[%s210 + $0x18] sm:$0xf]
      %v239 = vld [vmem:[%s210 + $0x1c] sm:$0xf]
      %v240 = vld [vmem:[%s210 + $0x20] sm:$0xf]
      %v241 = vld [vmem:[%s210 + $0x24] sm:$0xf]
      %v242 = vld [vmem:[%s210 + $0x28] sm:$0xf]
      %v243 = vld [vmem:[%s210 + $0x2c] sm:$0xf]
      %v244 = vld [vmem:[%s210 + $0x30] sm:$0xf]
      %v245 = vld [vmem:[%s210 + $0x34] sm:$0xf]
      %v246 = vld [vmem:[%s210 + $0x38] sm:$0xf]
      %v247 = vld [vmem:[%s210 + $0x3c] sm:$0xf]
      %v248 = vld [vmem:[%s206 + $0x4] sm:$0xf]
      %v249 = vld [vmem:[%s206 + $0x14] sm:$0xf]
      %v250 = vld [vmem:[%s206 + $0x24] sm:$0xf]
      %v251 = vld [vmem:[%s206 + $0x34] sm:$0xf]
      %v252 = vld [vmem:[%s206 + $0x44] sm:$0xf]
      %v253 = vld [vmem:[%s206 + $0x54] sm:$0xf]
      %v254 = vld [vmem:[%s206 + $0x64] sm:$0xf]
      %v255 = vld [vmem:[%s206 + $0x74] sm:$0xf]
      %v256 = vld [vmem:[%s206 + $0x84] sm:$0xf]
      %s257 = scalar_lea.vmem %s210, 64
      %v258 = vld [vmem:[%s257] sm:$0xf]
      %v259 = vld [vmem:[%s257 + $0x4] sm:$0xf]
      %v260 = vld [vmem:[%s257 + $0x8] sm:$0xf]
      %v261 = vld [vmem:[%s257 + $0xc] sm:$0xf]
      %v262 = vld [vmem:[%s257 + $0x10] sm:$0xf]
      %v263 = vld [vmem:[%s257 + $0x14] sm:$0xf]
      %v264 = vld [vmem:[%s257 + $0x18] sm:$0xf]
      %v265 = vld [vmem:[%s257 + $0x1c] sm:$0xf]
      %v266 = vld [vmem:[%s257 + $0x20] sm:$0xf]
      %v267 = vld [vmem:[%s257 + $0x24] sm:$0xf]
      %v268 = vld [vmem:[%s257 + $0x28] sm:$0xf]
      %v269 = vld [vmem:[%s257 + $0x2c] sm:$0xf]
      %v270 = vld [vmem:[%s257 + $0x30] sm:$0xf]
      %v271 = vld [vmem:[%s257 + $0x34] sm:$0xf]
      %v272 = vld [vmem:[%s257 + $0x38] sm:$0xf]
      %v273 = vld [vmem:[%s257 + $0x3c] sm:$0xf]
      %v283 = vunpack.c.l.b16 %v248
      %v284 = vunpack.c.l.b16 %v249
      %v285 = vunpack.c.l.b16 %v250
      %v286 = vunpack.c.l.b16 %v251
      %v287 = vunpack.c.l.b16 %v252
      %v288 = vunpack.c.l.b16 %v253
      %v289 = vunpack.c.l.b16 %v254
      %v290 = vunpack.c.l.b16 %v255
      %v291 = vunpack.c.l.b16 %v256
      %v292 = vpack.c.b16 %v284, %v283
      %v293 = vpack.c.b16 %v286, %v285
      %v294 = vpack.c.b16 %v288, %v287
      %v295 = vpack.c.b16 %v290, %v289
      %v296 = vpack.c.b16 %v291, %v291
      %v318 = vunpack.c.l.b16 %v258
      %v319 = vunpack.c.l.b16 %v259
      %v320 = vunpack.c.l.b16 %v260
      %v321 = vunpack.c.l.b16 %v261
      %v322 = vunpack.c.l.b16 %v262
      %v323 = vunpack.c.l.b16 %v263
      %v324 = vunpack.c.l.b16 %v264
      %v325 = vunpack.c.l.b16 %v265
      %v326 = vunpack.c.l.b16 %v266
      %v327 = vunpack.c.l.b16 %v267
      %v328 = vunpack.c.l.b16 %v268
      %v329 = vunpack.c.l.b16 %v269
      %v330 = vunpack.c.l.b16 %v270
      %v331 = vunpack.c.l.b16 %v271
      %v332 = vunpack.c.l.b16 %v272
      %v333 = vunpack.c.l.b16 %v273
      %v334 = vpack.c.b16 %v319, %v318
      %v335 = vpack.c.b16 %v321, %v320
      %v336 = vpack.c.b16 %v323, %v322
      %v337 = vpack.c.b16 %v325, %v324
      %v338 = vpack.c.b16 %v327, %v326
      %v339 = vpack.c.b16 %v329, %v328
      %v340 = vpack.c.b16 %v331, %v330
      %v341 = vpack.c.b16 %v333, %v332
      %350 = vmatprep.subr.bf16.mxu0 0
      %351 = vmatpush1.bf16.msra.mxu0 %v341
      %352 = vmatprep.subr.bf16.mxu0 0
      %353 = vmatpush1.bf16.msra.mxu0 %v340
      %354 = vmatprep.subr.bf16.mxu0 0
      %355 = vmatpush1.bf16.msra.mxu0 %v339
      %356 = vmatprep.subr.bf16.mxu0 0
      %357 = vmatpush1.bf16.msra.mxu0 %v338
      %358 = vmatprep.subr.bf16.mxu0 0
      %359 = vmatpush1.bf16.msra.mxu0 %v337
      %360 = vmatprep.subr.bf16.mxu0 0
      %361 = vmatpush1.bf16.msra.mxu0 %v336
      %362 = vmatprep.subr.bf16.mxu0 0
      %363 = vmatpush1.bf16.msra.mxu0 %v335
      %364 = vmatprep.subr.bf16.mxu0 0
      %365 = vmatpush1.bf16.msra.mxu0 %v334
      %366 = vmatprep.subr.bf16.mxu0 0
      %367 = vmatpush2.bf16.msra.mxu0 0
      %368 = vmatprep.subr.bf16.mxu0 0
      %369 = vmatpush2.bf16.msra.mxu0 0
      %370 = vmatprep.subr.bf16.mxu0 0
      %371 = vmatpush2.bf16.msra.mxu0 0
      %372 = vmatprep.subr.bf16.mxu0 0
      %373 = vmatpush2.bf16.msra.mxu0 0
      %374 = vmatprep.subr.bf16.mxu0 0
      %375 = vmatpush2.bf16.msra.mxu0 0
      %376 = vmatprep.subr.bf16.mxu0 0
      %377 = vmatpush2.bf16.msra.mxu0 0
      %378 = vmatprep.subr.bf16.mxu0 0
      %379 = vmatpush2.bf16.msra.mxu0 0
      %380 = vmatprep.subr.bf16.mxu0 0
      %381 = vmatpush2.bf16.msra.mxu0 0
      %382 = vmatprep.mubr.bf16.mxu0 0
      %383 = vmatmul.mubr.bf16.gmra.mxu0 %v292
      %v384 = vpop.f32.mrf.mxu0
      %v385 = vadd.f32 0.0, %v384
      %v386 = vpop.f32.mrf.mxu0
      %v387 = vpop.f32.mrf.mxu0
      %v388 = vadd.f32 0.0, %v387
      %v389 = vpop.f32.mrf.mxu0
      %390 = vmatprep.mubr.bf16.mxu0 0
      %391 = vmatmul.mubr.bf16.gmra.mxu0 %v293
      %v392 = vpop.f32.mrf.mxu0
      %v393 = vadd.f32 0.0, %v392
      %v394 = vpop.f32.mrf.mxu0
      %v395 = vpop.f32.mrf.mxu0
      %v396 = vadd.f32 0.0, %v395
      %v397 = vpop.f32.mrf.mxu0
      %398 = vmatprep.mubr.bf16.mxu0 0
      %399 = vmatmul.mubr.bf16.gmra.mxu0 %v294
      %v400 = vpop.f32.mrf.mxu0
      %v401 = vadd.f32 0.0, %v400
      %v402 = vpop.f32.mrf.mxu0
      %v403 = vpop.f32.mrf.mxu0
      %v404 = vadd.f32 0.0, %v403
      %v405 = vpop.f32.mrf.mxu0
      %406 = vmatprep.mubr.bf16.mxu0 0
      %407 = vmatmul.mubr.bf16.gmra.mxu0 %v295
      %v408 = vpop.f32.mrf.mxu0
      %v409 = vadd.f32 0.0, %v408
      %v410 = vpop.f32.mrf.mxu0
      %v411 = vpop.f32.mrf.mxu0
      %v412 = vadd.f32 0.0, %v411
      %v413 = vpop.f32.mrf.mxu0
      %414 = vmatprep.mubr.bf16.mxu0 0
      %415 = vmatmul.mubr.bf16.gmra.mxu0 %v296
      %v416 = vpop.f32.mrf.mxu0
      %v417 = vadd.f32 0.0, %v416
      %v418 = vpop.f32.mrf.mxu0
      %v419 = vpop.f32.mrf.mxu0
      %v420 = vpop.f32.mrf.mxu0
      %421 = vdwg.mxu0
      %v431 = vunpack.c.l.b16 %v223
      %v432 = vunpack.c.l.b16 %v224
      %v433 = vunpack.c.l.b16 %v225
      %v434 = vunpack.c.l.b16 %v226
      %v435 = vunpack.c.l.b16 %v227
      %v436 = vunpack.c.l.b16 %v228
      %v437 = vunpack.c.l.b16 %v229
      %v438 = vunpack.c.l.b16 %v230
      %v439 = vunpack.c.l.b16 %v231
      %v440 = vpack.c.b16 %v432, %v431
      %v441 = vpack.c.b16 %v434, %v433
      %v442 = vpack.c.b16 %v436, %v435
      %v443 = vpack.c.b16 %v438, %v437
      %v444 = vpack.c.b16 %v439, %v439
      %v466 = vunpack.c.l.b16 %v232
      %v467 = vunpack.c.l.b16 %v233
      %v468 = vunpack.c.l.b16 %v234
      %v469 = vunpack.c.l.b16 %v235
      %v470 = vunpack.c.l.b16 %v236
      %v471 = vunpack.c.l.b16 %v237
      %v472 = vunpack.c.l.b16 %v238
      %v473 = vunpack.c.l.b16 %v239
      %v474 = vunpack.c.l.b16 %v240
      %v475 = vunpack.c.l.b16 %v241
      %v476 = vunpack.c.l.b16 %v242
      %v477 = vunpack.c.l.b16 %v243
      %v478 = vunpack.c.l.b16 %v244
      %v479 = vunpack.c.l.b16 %v245
      %v480 = vunpack.c.l.b16 %v246
      %v481 = vunpack.c.l.b16 %v247
      %v482 = vpack.c.b16 %v467, %v466
      %v483 = vpack.c.b16 %v469, %v468
      %v484 = vpack.c.b16 %v471, %v470
      %v485 = vpack.c.b16 %v473, %v472
      %v486 = vpack.c.b16 %v475, %v474
      %v487 = vpack.c.b16 %v477, %v476
      %v488 = vpack.c.b16 %v479, %v478
      %v489 = vpack.c.b16 %v481, %v480
      %498 = vmatprep.subr.bf16.mxu0 0
      %499 = vmatpush1.bf16.msra.mxu0 %v489
      %500 = vmatprep.subr.bf16.mxu0 0
      %501 = vmatpush1.bf16.msra.mxu0 %v488
      %502 = vmatprep.subr.bf16.mxu0 0
      %503 = vmatpush1.bf16.msra.mxu0 %v487
      %504 = vmatprep.subr.bf16.mxu0 0
      %505 = vmatpush1.bf16.msra.mxu0 %v486
      %506 = vmatprep.subr.bf16.mxu0 0
      %507 = vmatpush1.bf16.msra.mxu0 %v485
      %508 = vmatprep.subr.bf16.mxu0 0
      %509 = vmatpush1.bf16.msra.mxu0 %v484
      %510 = vmatprep.subr.bf16.mxu0 0
      %511 = vmatpush1.bf16.msra.mxu0 %v483
      %512 = vmatprep.subr.bf16.mxu0 0
      %513 = vmatpush1.bf16.msra.mxu0 %v482
      %514 = vmatprep.subr.bf16.mxu0 0
      %515 = vmatpush2.bf16.msra.mxu0 0
      %516 = vmatprep.subr.bf16.mxu0 0
      %517 = vmatpush2.bf16.msra.mxu0 0
      %518 = vmatprep.subr.bf16.mxu0 0
      %519 = vmatpush2.bf16.msra.mxu0 0
      %520 = vmatprep.subr.bf16.mxu0 0
      %521 = vmatpush2.bf16.msra.mxu0 0
      %522 = vmatprep.subr.bf16.mxu0 0
      %523 = vmatpush2.bf16.msra.mxu0 0
      %524 = vmatprep.subr.bf16.mxu0 0
      %525 = vmatpush2.bf16.msra.mxu0 0
      %526 = vmatprep.subr.bf16.mxu0 0
      %527 = vmatpush2.bf16.msra.mxu0 0
      %528 = vmatprep.subr.bf16.mxu0 0
      %529 = vmatpush2.bf16.msra.mxu0 0
      %530 = vmatprep.mubr.bf16.mxu0 0
      %531 = vmatmul.mubr.bf16.gmra.mxu0 %v440
      %v532 = vpop.f32.mrf.mxu0
      %v533 = vadd.f32 %v385, %v532
      %v534 = vpop.f32.mrf.mxu0
      %v535 = vpop.f32.mrf.mxu0
      %v536 = vadd.f32 %v388, %v535
      %v537 = vpop.f32.mrf.mxu0
      %538 = vmatprep.mubr.bf16.mxu0 0
      %539 = vmatmul.mubr.bf16.gmra.mxu0 %v441
      %v540 = vpop.f32.mrf.mxu0
      %v541 = vadd.f32 %v393, %v540
      %v542 = vpop.f32.mrf.mxu0
      %v543 = vpop.f32.mrf.mxu0
      %v544 = vadd.f32 %v396, %v543
      %v545 = vpop.f32.mrf.mxu0
      %546 = vmatprep.mubr.bf16.mxu0 0
      %547 = vmatmul.mubr.bf16.gmra.mxu0 %v442
      %v548 = vpop.f32.mrf.mxu0
      %v549 = vadd.f32 %v401, %v548
      %v550 = vpop.f32.mrf.mxu0
      %v551 = vpop.f32.mrf.mxu0
      %v552 = vadd.f32 %v404, %v551
      %v553 = vpop.f32.mrf.mxu0
      %554 = vmatprep.mubr.bf16.mxu0 0
      %555 = vmatmul.mubr.bf16.gmra.mxu0 %v443
      %v556 = vpop.f32.mrf.mxu0
      %v557 = vadd.f32 %v409, %v556
      %v558 = vpop.f32.mrf.mxu0
      %v559 = vpop.f32.mrf.mxu0
      %v560 = vadd.f32 %v412, %v559
      %v561 = vpop.f32.mrf.mxu0
      %562 = vmatprep.mubr.bf16.mxu0 0
      %563 = vmatmul.mubr.bf16.gmra.mxu0 %v444
      %v564 = vpop.f32.mrf.mxu0
      %v565 = vadd.f32 %v417, %v564
      %v566 = vpop.f32.mrf.mxu0
      %v567 = vpop.f32.mrf.mxu0
      %v568 = vpop.f32.mrf.mxu0
      %569 = vdwg.mxu0
      %v570 = vld [vmem:[%s206] sm:$0xf]
      %v571 = vld [vmem:[%s206 + $0x10] sm:$0xf]
      %v572 = vld [vmem:[%s206 + $0x20] sm:$0xf]
      %v573 = vld [vmem:[%s206 + $0x30] sm:$0xf]
      %v574 = vld [vmem:[%s206 + $0x40] sm:$0xf]
      %v575 = vld [vmem:[%s206 + $0x50] sm:$0xf]
      %v576 = vld [vmem:[%s206 + $0x60] sm:$0xf]
      %v577 = vld [vmem:[%s206 + $0x70] sm:$0xf]
      %v578 = vld [vmem:[%s206 + $0x80] sm:$0xf]
      %v579 = vld [vmem:[%s206 + $0x90] sm:$0x1]
      %s580 = scalar_lea.vmem %s210, 128
      %v581 = vld [vmem:[%s580] sm:$0xf]
      %v582 = vld [vmem:[%s580 + $0x4] sm:$0xf]
      %v583 = vld [vmem:[%s580 + $0x8] sm:$0xf]
      %v584 = vld [vmem:[%s580 + $0xc] sm:$0xf]
      %v585 = vld [vmem:[%s580 + $0x10] sm:$0xf]
      %v586 = vld [vmem:[%s580 + $0x14] sm:$0xf]
      %v587 = vld [vmem:[%s580 + $0x18] sm:$0xf]
      %v588 = vld [vmem:[%s580 + $0x1c] sm:$0xf]
      %v589 = vld [vmem:[%s580 + $0x20] sm:$0xf]
      %v590 = vld [vmem:[%s580 + $0x24] sm:$0xf]
      %v591 = vld [vmem:[%s580 + $0x28] sm:$0xf]
      %v592 = vld [vmem:[%s580 + $0x2c] sm:$0xf]
      %v593 = vld [vmem:[%s580 + $0x30] sm:$0xf]
      %v594 = vld [vmem:[%s580 + $0x34] sm:$0xf]
      %v595 = vld [vmem:[%s580 + $0x38] sm:$0xf]
      %v596 = vld [vmem:[%s580 + $0x3c] sm:$0xf]
      %v607 = vunpack.c.l.b16 %v570
      %v608 = vunpack.c.l.b16 %v571
      %v609 = vunpack.c.l.b16 %v572
      %v610 = vunpack.c.l.b16 %v573
      %v611 = vunpack.c.l.b16 %v574
      %v612 = vunpack.c.l.b16 %v575
      %v613 = vunpack.c.l.b16 %v576
      %v614 = vunpack.c.l.b16 %v577
      %v615 = vunpack.c.l.b16 %v578
      %v616 = vunpack.c.l.b16 %v579
      %v617 = vpack.c.b16 %v608, %v607
      %v618 = vpack.c.b16 %v610, %v609
      %v619 = vpack.c.b16 %v612, %v611
      %v620 = vpack.c.b16 %v614, %v613
      %v621 = vpack.c.b16 %v616, %v615
      %vm622 = vsmask.f32 7424
      %v624 = vshrl.u32 %v617, 16
      %v626 = vshll.u32 %v617, 16
      %v628 = vrot.slane %v626, 1
      %v629 = vor.u32 %v624, %v628
      %v631 = vshll.u32 %v618, 16
      %v633 = vrot.slane %v631, 1
      %v634 = vsel %vm622, %v629, %v633
      %v635 = vshrl.u32 %v618, 16
      %v637 = vor.u32 %v635, %v633
      %v639 = vshll.u32 %v619, 16
      %v641 = vrot.slane %v639, 1
      %v642 = vsel %vm622, %v637, %v641
      %v643 = vshrl.u32 %v619, 16
      %v645 = vor.u32 %v643, %v641
      %v647 = vshll.u32 %v620, 16
      %v649 = vrot.slane %v647, 1
      %v650 = vsel %vm622, %v645, %v649
      %v651 = vshrl.u32 %v620, 16
      %v653 = vor.u32 %v651, %v649
      %v655 = vshll.u32 %v621, 16
      %v657 = vrot.slane %v655, 1
      %v658 = vsel %vm622, %v653, %v657
      %v659 = vshrl.u32 %v621, 16
      %v661 = vor.u32 %v659, %v657
      %v683 = vunpack.c.l.b16 %v581
      %v684 = vunpack.c.l.b16 %v582
      %v685 = vunpack.c.l.b16 %v583
      %v686 = vunpack.c.l.b16 %v584
      %v687 = vunpack.c.l.b16 %v585
      %v688 = vunpack.c.l.b16 %v586
      %v689 = vunpack.c.l.b16 %v587
      %v690 = vunpack.c.l.b16 %v588
      %v691 = vunpack.c.l.b16 %v589
      %v692 = vunpack.c.l.b16 %v590
      %v693 = vunpack.c.l.b16 %v591
      %v694 = vunpack.c.l.b16 %v592
      %v695 = vunpack.c.l.b16 %v593
      %v696 = vunpack.c.l.b16 %v594
      %v697 = vunpack.c.l.b16 %v595
      %v698 = vunpack.c.l.b16 %v596
      %v699 = vpack.c.b16 %v684, %v683
      %v700 = vpack.c.b16 %v686, %v685
      %v701 = vpack.c.b16 %v688, %v687
      %v702 = vpack.c.b16 %v690, %v689
      %v703 = vpack.c.b16 %v692, %v691
      %v704 = vpack.c.b16 %v694, %v693
      %v705 = vpack.c.b16 %v696, %v695
      %v706 = vpack.c.b16 %v698, %v697
      %715 = vmatprep.subr.bf16.mxu0 0
      %716 = vmatpush1.bf16.msra.mxu0 %v706
      %717 = vmatprep.subr.bf16.mxu0 0
      %718 = vmatpush1.bf16.msra.mxu0 %v705
      %719 = vmatprep.subr.bf16.mxu0 0
      %720 = vmatpush1.bf16.msra.mxu0 %v704
      %721 = vmatprep.subr.bf16.mxu0 0
      %722 = vmatpush1.bf16.msra.mxu0 %v703
      %723 = vmatprep.subr.bf16.mxu0 0
      %724 = vmatpush1.bf16.msra.mxu0 %v702
      %725 = vmatprep.subr.bf16.mxu0 0
      %726 = vmatpush1.bf16.msra.mxu0 %v701
      %727 = vmatprep.subr.bf16.mxu0 0
      %728 = vmatpush1.bf16.msra.mxu0 %v700
      %729 = vmatprep.subr.bf16.mxu0 0
      %730 = vmatpush1.bf16.msra.mxu0 %v699
      %731 = vmatprep.subr.bf16.mxu0 0
      %732 = vmatpush2.bf16.msra.mxu0 0
      %733 = vmatprep.subr.bf16.mxu0 0
      %734 = vmatpush2.bf16.msra.mxu0 0
      %735 = vmatprep.subr.bf16.mxu0 0
      %736 = vmatpush2.bf16.msra.mxu0 0
      %737 = vmatprep.subr.bf16.mxu0 0
      %738 = vmatpush2.bf16.msra.mxu0 0
      %739 = vmatprep.subr.bf16.mxu0 0
      %740 = vmatpush2.bf16.msra.mxu0 0
      %741 = vmatprep.subr.bf16.mxu0 0
      %742 = vmatpush2.bf16.msra.mxu0 0
      %743 = vmatprep.subr.bf16.mxu0 0
      %744 = vmatpush2.bf16.msra.mxu0 0
      %745 = vmatprep.subr.bf16.mxu0 0
      %746 = vmatpush2.bf16.msra.mxu0 0
      %747 = vmatprep.mubr.bf16.mxu0 0
      %748 = vmatmul.mubr.bf16.gmra.mxu0 %v634
      %v749 = vpop.f32.mrf.mxu0
      %v750 = vadd.f32 0.0, %v749
      %v751 = vpop.f32.mrf.mxu0
      %v752 = vpop.f32.mrf.mxu0
      %v753 = vadd.f32 0.0, %v752
      %v754 = vpop.f32.mrf.mxu0
      %755 = vmatprep.mubr.bf16.mxu0 0
      %756 = vmatmul.mubr.bf16.gmra.mxu0 %v642
      %v757 = vpop.f32.mrf.mxu0
      %v758 = vadd.f32 0.0, %v757
      %v759 = vpop.f32.mrf.mxu0
      %v760 = vpop.f32.mrf.mxu0
      %v761 = vadd.f32 0.0, %v760
      %v762 = vpop.f32.mrf.mxu0
      %763 = vmatprep.mubr.bf16.mxu0 0
      %764 = vmatmul.mubr.bf16.gmra.mxu0 %v650
      %v765 = vpop.f32.mrf.mxu0
      %v766 = vadd.f32 0.0, %v765
      %v767 = vpop.f32.mrf.mxu0
      %v768 = vpop.f32.mrf.mxu0
      %v769 = vadd.f32 0.0, %v768
      %v770 = vpop.f32.mrf.mxu0
      %771 = vmatprep.mubr.bf16.mxu0 0
      %772 = vmatmul.mubr.bf16.gmra.mxu0 %v658
      %v773 = vpop.f32.mrf.mxu0
      %v774 = vadd.f32 0.0, %v773
      %v775 = vpop.f32.mrf.mxu0
      %v776 = vpop.f32.mrf.mxu0
      %v777 = vadd.f32 0.0, %v776
      %v778 = vpop.f32.mrf.mxu0
      %779 = vmatprep.mubr.bf16.mxu0 0
      %780 = vmatmul.mubr.bf16.gmra.mxu0 %v661
      %v781 = vpop.f32.mrf.mxu0
      %v782 = vadd.f32 0.0, %v781
      %v783 = vpop.f32.mrf.mxu0
      %v784 = vpop.f32.mrf.mxu0
      %v785 = vpop.f32.mrf.mxu0
      %786 = vdwg.mxu0
      %v787 = vadd.f32 %v533, %v750
      %v788 = vadd.f32 %v536, %v753
      %v789 = vadd.f32 %v541, %v758
      %v790 = vadd.f32 %v544, %v761
      %v791 = vadd.f32 %v549, %v766
      %v792 = vadd.f32 %v552, %v769
      %v793 = vadd.f32 %v557, %v774
      %v794 = vadd.f32 %v560, %v777
      %v795 = vadd.f32 %v565, %v782
      %v796 = vld [vmem:[%s206 + $0x8] sm:$0xf]
      %v797 = vld [vmem:[%s206 + $0x18] sm:$0xf]
      %v798 = vld [vmem:[%s206 + $0x28] sm:$0xf]
      %v799 = vld [vmem:[%s206 + $0x38] sm:$0xf]
      %v800 = vld [vmem:[%s206 + $0x48] sm:$0xf]
      %v801 = vld [vmem:[%s206 + $0x58] sm:$0xf]
      %v802 = vld [vmem:[%s206 + $0x68] sm:$0xf]
      %v803 = vld [vmem:[%s206 + $0x78] sm:$0xf]
      %v804 = vld [vmem:[%s206 + $0x88] sm:$0xf]
      %s805 = scalar_lea.vmem %s210, 192
      %v806 = vld [vmem:[%s805] sm:$0xf]
      %v807 = vld [vmem:[%s805 + $0x4] sm:$0xf]
      %v808 = vld [vmem:[%s805 + $0x8] sm:$0xf]
      %v809 = vld [vmem:[%s805 + $0xc] sm:$0xf]
      %v810 = vld [vmem:[%s805 + $0x10] sm:$0xf]
      %v811 = vld [vmem:[%s805 + $0x14] sm:$0xf]
      %v812 = vld [vmem:[%s805 + $0x18] sm:$0xf]
      %v813 = vld [vmem:[%s805 + $0x1c] sm:$0xf]
      %v814 = vld [vmem:[%s805 + $0x20] sm:$0xf]
      %v815 = vld [vmem:[%s805 + $0x24] sm:$0xf]
      %v816 = vld [vmem:[%s805 + $0x28] sm:$0xf]
      %v817 = vld [vmem:[%s805 + $0x2c] sm:$0xf]
      %v818 = vld [vmem:[%s805 + $0x30] sm:$0xf]
      %v819 = vld [vmem:[%s805 + $0x34] sm:$0xf]
      %v820 = vld [vmem:[%s805 + $0x38] sm:$0xf]
      %v821 = vld [vmem:[%s805 + $0x3c] sm:$0xf]
      %v831 = vunpack.c.l.b16 %v796
      %v832 = vunpack.c.l.b16 %v797
      %v833 = vunpack.c.l.b16 %v798
      %v834 = vunpack.c.l.b16 %v799
      %v835 = vunpack.c.l.b16 %v800
      %v836 = vunpack.c.l.b16 %v801
      %v837 = vunpack.c.l.b16 %v802
      %v838 = vunpack.c.l.b16 %v803
      %v839 = vunpack.c.l.b16 %v804
      %v840 = vpack.c.b16 %v832, %v831
      %v841 = vpack.c.b16 %v834, %v833
      %v842 = vpack.c.b16 %v836, %v835
      %v843 = vpack.c.b16 %v838, %v837
      %v844 = vpack.c.b16 %v839, %v839
      %v866 = vunpack.c.l.b16 %v806
      %v867 = vunpack.c.l.b16 %v807
      %v868 = vunpack.c.l.b16 %v808
      %v869 = vunpack.c.l.b16 %v809
      %v870 = vunpack.c.l.b16 %v810
      %v871 = vunpack.c.l.b16 %v811
      %v872 = vunpack.c.l.b16 %v812
      %v873 = vunpack.c.l.b16 %v813
      %v874 = vunpack.c.l.b16 %v814
      %v875 = vunpack.c.l.b16 %v815
      %v876 = vunpack.c.l.b16 %v816
      %v877 = vunpack.c.l.b16 %v817
      %v878 = vunpack.c.l.b16 %v818
      %v879 = vunpack.c.l.b16 %v819
      %v880 = vunpack.c.l.b16 %v820
      %v881 = vunpack.c.l.b16 %v821
      %v882 = vpack.c.b16 %v867, %v866
      %v883 = vpack.c.b16 %v869, %v868
      %v884 = vpack.c.b16 %v871, %v870
      %v885 = vpack.c.b16 %v873, %v872
      %v886 = vpack.c.b16 %v875, %v874
      %v887 = vpack.c.b16 %v877, %v876
      %v888 = vpack.c.b16 %v879, %v878
      %v889 = vpack.c.b16 %v881, %v880
      %898 = vmatprep.subr.bf16.mxu0 0
      %899 = vmatpush1.bf16.msra.mxu0 %v889
      %900 = vmatprep.subr.bf16.mxu0 0
      %901 = vmatpush1.bf16.msra.mxu0 %v888
      %902 = vmatprep.subr.bf16.mxu0 0
      %903 = vmatpush1.bf16.msra.mxu0 %v887
      %904 = vmatprep.subr.bf16.mxu0 0
      %905 = vmatpush1.bf16.msra.mxu0 %v886
      %906 = vmatprep.subr.bf16.mxu0 0
      %907 = vmatpush1.bf16.msra.mxu0 %v885
      %908 = vmatprep.subr.bf16.mxu0 0
      %909 = vmatpush1.bf16.msra.mxu0 %v884
      %910 = vmatprep.subr.bf16.mxu0 0
      %911 = vmatpush1.bf16.msra.mxu0 %v883
      %912 = vmatprep.subr.bf16.mxu0 0
      %913 = vmatpush1.bf16.msra.mxu0 %v882
      %914 = vmatprep.subr.bf16.mxu0 0
      %915 = vmatpush2.bf16.msra.mxu0 0
      %916 = vmatprep.subr.bf16.mxu0 0
      %917 = vmatpush2.bf16.msra.mxu0 0
      %918 = vmatprep.subr.bf16.mxu0 0
      %919 = vmatpush2.bf16.msra.mxu0 0
      %920 = vmatprep.subr.bf16.mxu0 0
      %921 = vmatpush2.bf16.msra.mxu0 0
      %922 = vmatprep.subr.bf16.mxu0 0
      %923 = vmatpush2.bf16.msra.mxu0 0
      %924 = vmatprep.subr.bf16.mxu0 0
      %925 = vmatpush2.bf16.msra.mxu0 0
      %926 = vmatprep.subr.bf16.mxu0 0
      %927 = vmatpush2.bf16.msra.mxu0 0
      %928 = vmatprep.subr.bf16.mxu0 0
      %929 = vmatpush2.bf16.msra.mxu0 0
      %930 = vmatprep.mubr.bf16.mxu0 0
      %931 = vmatmul.mubr.bf16.gmra.mxu0 %v840
      %v932 = vpop.f32.mrf.mxu0
      %v933 = vadd.f32 0.0, %v932
      %v934 = vpop.f32.mrf.mxu0
      %v935 = vpop.f32.mrf.mxu0
      %v936 = vadd.f32 0.0, %v935
      %v937 = vpop.f32.mrf.mxu0
      %938 = vmatprep.mubr.bf16.mxu0 0
      %939 = vmatmul.mubr.bf16.gmra.mxu0 %v841
      %v940 = vpop.f32.mrf.mxu0
      %v941 = vadd.f32 0.0, %v940
      %v942 = vpop.f32.mrf.mxu0
      %v943 = vpop.f32.mrf.mxu0
      %v944 = vadd.f32 0.0, %v943
      %v945 = vpop.f32.mrf.mxu0
      %946 = vmatprep.mubr.bf16.mxu0 0
      %947 = vmatmul.mubr.bf16.gmra.mxu0 %v842
      %v948 = vpop.f32.mrf.mxu0
      %v949 = vadd.f32 0.0, %v948
      %v950 = vpop.f32.mrf.mxu0
      %v951 = vpop.f32.mrf.mxu0
      %v952 = vadd.f32 0.0, %v951
      %v953 = vpop.f32.mrf.mxu0
      %954 = vmatprep.mubr.bf16.mxu0 0
      %955 = vmatmul.mubr.bf16.gmra.mxu0 %v843
      %v956 = vpop.f32.mrf.mxu0
      %v957 = vadd.f32 0.0, %v956
      %v958 = vpop.f32.mrf.mxu0
      %v959 = vpop.f32.mrf.mxu0
      %v960 = vadd.f32 0.0, %v959
      %v961 = vpop.f32.mrf.mxu0
      %962 = vmatprep.mubr.bf16.mxu0 0
      %963 = vmatmul.mubr.bf16.gmra.mxu0 %v844
      %v964 = vpop.f32.mrf.mxu0
      %v965 = vadd.f32 0.0, %v964
      %v966 = vpop.f32.mrf.mxu0
      %v967 = vpop.f32.mrf.mxu0
      %v968 = vpop.f32.mrf.mxu0
      %969 = vdwg.mxu0
      %v970 = vadd.f32 %v787, %v933
      %v971 = vadd.f32 %v788, %v936
      %v972 = vadd.f32 %v789, %v941
      %v973 = vadd.f32 %v790, %v944
      %v974 = vadd.f32 %v791, %v949
      %v975 = vadd.f32 %v792, %v952
      %v976 = vadd.f32 %v793, %v957
      %v977 = vadd.f32 %v794, %v960
      %v978 = vadd.f32 %v795, %v965
      %v979 = vld [vmem:[%s206 + $0xc] sm:$0xf]
      %v980 = vld [vmem:[%s206 + $0x1c] sm:$0xf]
      %v981 = vld [vmem:[%s206 + $0x2c] sm:$0xf]
      %v982 = vld [vmem:[%s206 + $0x3c] sm:$0xf]
      %v983 = vld [vmem:[%s206 + $0x4c] sm:$0xf]
      %v984 = vld [vmem:[%s206 + $0x5c] sm:$0xf]
      %v985 = vld [vmem:[%s206 + $0x6c] sm:$0xf]
      %v986 = vld [vmem:[%s206 + $0x7c] sm:$0xf]
      %v987 = vld [vmem:[%s206 + $0x8c] sm:$0xf]
      %s988 = scalar_lea.vmem %s210, 256
      %v989 = vld [vmem:[%s988] sm:$0xf]
      %v990 = vld [vmem:[%s988 + $0x4] sm:$0xf]
      %v991 = vld [vmem:[%s988 + $0x8] sm:$0xf]
      %v992 = vld [vmem:[%s988 + $0xc] sm:$0xf]
      %v993 = vld [vmem:[%s988 + $0x10] sm:$0xf]
      %v994 = vld [vmem:[%s988 + $0x14] sm:$0xf]
      %v995 = vld [vmem:[%s988 + $0x18] sm:$0xf]
      %v996 = vld [vmem:[%s988 + $0x1c] sm:$0xf]
      %v997 = vld [vmem:[%s988 + $0x20] sm:$0xf]
      %v998 = vld [vmem:[%s988 + $0x24] sm:$0xf]
      %v999 = vld [vmem:[%s988 + $0x28] sm:$0xf]
      %v1000 = vld [vmem:[%s988 + $0x2c] sm:$0xf]
      %v1001 = vld [vmem:[%s988 + $0x30] sm:$0xf]
      %v1002 = vld [vmem:[%s988 + $0x34] sm:$0xf]
      %v1003 = vld [vmem:[%s988 + $0x38] sm:$0xf]
      %v1004 = vld [vmem:[%s988 + $0x3c] sm:$0xf]
      %v1014 = vunpack.c.l.b16 %v979
      %v1015 = vunpack.c.l.b16 %v980
      %v1016 = vunpack.c.l.b16 %v981
      %v1017 = vunpack.c.l.b16 %v982
      %v1018 = vunpack.c.l.b16 %v983
      %v1019 = vunpack.c.l.b16 %v984
      %v1020 = vunpack.c.l.b16 %v985
      %v1021 = vunpack.c.l.b16 %v986
      %v1022 = vunpack.c.l.b16 %v987
      %v1023 = vpack.c.b16 %v1015, %v1014
      %v1024 = vpack.c.b16 %v1017, %v1016
      %v1025 = vpack.c.b16 %v1019, %v1018
      %v1026 = vpack.c.b16 %v1021, %v1020
      %v1027 = vpack.c.b16 %v1022, %v1022
      %v1049 = vunpack.c.l.b16 %v989
      %v1050 = vunpack.c.l.b16 %v990
      %v1051 = vunpack.c.l.b16 %v991
      %v1052 = vunpack.c.l.b16 %v992
      %v1053 = vunpack.c.l.b16 %v993
      %v1054 = vunpack.c.l.b16 %v994
      %v1055 = vunpack.c.l.b16 %v995
      %v1056 = vunpack.c.l.b16 %v996
      %v1057 = vunpack.c.l.b16 %v997
      %v1058 = vunpack.c.l.b16 %v998
      %v1059 = vunpack.c.l.b16 %v999
      %v1060 = vunpack.c.l.b16 %v1000
      %v1061 = vunpack.c.l.b16 %v1001
      %v1062 = vunpack.c.l.b16 %v1002
      %v1063 = vunpack.c.l.b16 %v1003
      %v1064 = vunpack.c.l.b16 %v1004
      %v1065 = vpack.c.b16 %v1050, %v1049
      %v1066 = vpack.c.b16 %v1052, %v1051
      %v1067 = vpack.c.b16 %v1054, %v1053
      %v1068 = vpack.c.b16 %v1056, %v1055
      %v1069 = vpack.c.b16 %v1058, %v1057
      %v1070 = vpack.c.b16 %v1060, %v1059
      %v1071 = vpack.c.b16 %v1062, %v1061
      %v1072 = vpack.c.b16 %v1064, %v1063
      %1081 = vmatprep.subr.bf16.mxu0 0
      %1082 = vmatpush1.bf16.msra.mxu0 %v1072
      %1083 = vmatprep.subr.bf16.mxu0 0
      %1084 = vmatpush1.bf16.msra.mxu0 %v1071
      %1085 = vmatprep.subr.bf16.mxu0 0
      %1086 = vmatpush1.bf16.msra.mxu0 %v1070
      %1087 = vmatprep.subr.bf16.mxu0 0
      %1088 = vmatpush1.bf16.msra.mxu0 %v1069
      %1089 = vmatprep.subr.bf16.mxu0 0
      %1090 = vmatpush1.bf16.msra.mxu0 %v1068
      %1091 = vmatprep.subr.bf16.mxu0 0
      %1092 = vmatpush1.bf16.msra.mxu0 %v1067
      %1093 = vmatprep.subr.bf16.mxu0 0
      %1094 = vmatpush1.bf16.msra.mxu0 %v1066
      %1095 = vmatprep.subr.bf16.mxu0 0
      %1096 = vmatpush1.bf16.msra.mxu0 %v1065
      %1097 = vmatprep.subr.bf16.mxu0 0
      %1098 = vmatpush2.bf16.msra.mxu0 0
      %1099 = vmatprep.subr.bf16.mxu0 0
      %1100 = vmatpush2.bf16.msra.mxu0 0
      %1101 = vmatprep.subr.bf16.mxu0 0
      %1102 = vmatpush2.bf16.msra.mxu0 0
      %1103 = vmatprep.subr.bf16.mxu0 0
      %1104 = vmatpush2.bf16.msra.mxu0 0
      %1105 = vmatprep.subr.bf16.mxu0 0
      %1106 = vmatpush2.bf16.msra.mxu0 0
      %1107 = vmatprep.subr.bf16.mxu0 0
      %1108 = vmatpush2.bf16.msra.mxu0 0
      %1109 = vmatprep.subr.bf16.mxu0 0
      %1110 = vmatpush2.bf16.msra.mxu0 0
      %1111 = vmatprep.subr.bf16.mxu0 0
      %1112 = vmatpush2.bf16.msra.mxu0 0
      %1113 = vmatprep.mubr.bf16.mxu0 0
      %1114 = vmatmul.mubr.bf16.gmra.mxu0 %v1023
      %v1115 = vpop.f32.mrf.mxu0
      %v1116 = vadd.f32 0.0, %v1115
      %v1117 = vpop.f32.mrf.mxu0
      %v1118 = vpop.f32.mrf.mxu0
      %v1119 = vadd.f32 0.0, %v1118
      %v1120 = vpop.f32.mrf.mxu0
      %1121 = vmatprep.mubr.bf16.mxu0 0
      %1122 = vmatmul.mubr.bf16.gmra.mxu0 %v1024
      %v1123 = vpop.f32.mrf.mxu0
      %v1124 = vadd.f32 0.0, %v1123
      %v1125 = vpop.f32.mrf.mxu0
      %v1126 = vpop.f32.mrf.mxu0
      %v1127 = vadd.f32 0.0, %v1126
      %v1128 = vpop.f32.mrf.mxu0
      %1129 = vmatprep.mubr.bf16.mxu0 0
      %1130 = vmatmul.mubr.bf16.gmra.mxu0 %v1025
      %v1131 = vpop.f32.mrf.mxu0
      %v1132 = vadd.f32 0.0, %v1131
      %v1133 = vpop.f32.mrf.mxu0
      %v1134 = vpop.f32.mrf.mxu0
      %v1135 = vadd.f32 0.0, %v1134
      %v1136 = vpop.f32.mrf.mxu0
      %1137 = vmatprep.mubr.bf16.mxu0 0
      %1138 = vmatmul.mubr.bf16.gmra.mxu0 %v1026
      %v1139 = vpop.f32.mrf.mxu0
      %v1140 = vadd.f32 0.0, %v1139
      %v1141 = vpop.f32.mrf.mxu0
      %v1142 = vpop.f32.mrf.mxu0
      %v1143 = vadd.f32 0.0, %v1142
      %v1144 = vpop.f32.mrf.mxu0
      %1145 = vmatprep.mubr.bf16.mxu0 0
      %1146 = vmatmul.mubr.bf16.gmra.mxu0 %v1027
      %v1147 = vpop.f32.mrf.mxu0
      %v1148 = vadd.f32 0.0, %v1147
      %v1149 = vpop.f32.mrf.mxu0
      %v1150 = vpop.f32.mrf.mxu0
      %v1151 = vpop.f32.mrf.mxu0
      %1152 = vdwg.mxu0
      %v1153 = vadd.f32 %v970, %v1116
      %v1154 = vadd.f32 %v971, %v1119
      %v1155 = vadd.f32 %v972, %v1124
      %v1156 = vadd.f32 %v973, %v1127
      %v1157 = vadd.f32 %v974, %v1132
      %v1158 = vadd.f32 %v975, %v1135
      %v1159 = vadd.f32 %v976, %v1140
      %v1160 = vadd.f32 %v977, %v1143
      %v1161 = vadd.f32 %v978, %v1148
      %v1162 = vld [vmem:[%s206 + $0x8] sm:$0xf]
      %v1163 = vld [vmem:[%s206 + $0x18] sm:$0xf]
      %v1164 = vld [vmem:[%s206 + $0x28] sm:$0xf]
      %v1165 = vld [vmem:[%s206 + $0x38] sm:$0xf]
      %v1166 = vld [vmem:[%s206 + $0x48] sm:$0xf]
      %v1167 = vld [vmem:[%s206 + $0x58] sm:$0xf]
      %v1168 = vld [vmem:[%s206 + $0x68] sm:$0xf]
      %v1169 = vld [vmem:[%s206 + $0x78] sm:$0xf]
      %v1170 = vld [vmem:[%s206 + $0x88] sm:$0xf]
      %v1171 = vld [vmem:[%s206 + $0x98] sm:$0x1]
      %s1172 = scalar_lea.vmem %s210, 320
      %v1173 = vld [vmem:[%s1172] sm:$0xf]
      %v1174 = vld [vmem:[%s1172 + $0x4] sm:$0xf]
      %v1175 = vld [vmem:[%s1172 + $0x8] sm:$0xf]
      %v1176 = vld [vmem:[%s1172 + $0xc] sm:$0xf]
      %v1177 = vld [vmem:[%s1172 + $0x10] sm:$0xf]
      %v1178 = vld [vmem:[%s1172 + $0x14] sm:$0xf]
      %v1179 = vld [vmem:[%s1172 + $0x18] sm:$0xf]
      %v1180 = vld [vmem:[%s1172 + $0x1c] sm:$0xf]
      %v1181 = vld [vmem:[%s1172 + $0x20] sm:$0xf]
      %v1182 = vld [vmem:[%s1172 + $0x24] sm:$0xf]
      %v1183 = vld [vmem:[%s1172 + $0x28] sm:$0xf]
      %v1184 = vld [vmem:[%s1172 + $0x2c] sm:$0xf]
      %v1185 = vld [vmem:[%s1172 + $0x30] sm:$0xf]
      %v1186 = vld [vmem:[%s1172 + $0x34] sm:$0xf]
      %v1187 = vld [vmem:[%s1172 + $0x38] sm:$0xf]
      %v1188 = vld [vmem:[%s1172 + $0x3c] sm:$0xf]
      %v1199 = vunpack.c.l.b16 %v1162
      %v1200 = vunpack.c.l.b16 %v1163
      %v1201 = vunpack.c.l.b16 %v1164
      %v1202 = vunpack.c.l.b16 %v1165
      %v1203 = vunpack.c.l.b16 %v1166
      %v1204 = vunpack.c.l.b16 %v1167
      %v1205 = vunpack.c.l.b16 %v1168
      %v1206 = vunpack.c.l.b16 %v1169
      %v1207 = vunpack.c.l.b16 %v1170
      %v1208 = vunpack.c.l.b16 %v1171
      %v1209 = vpack.c.b16 %v1200, %v1199
      %v1210 = vpack.c.b16 %v1202, %v1201
      %v1211 = vpack.c.b16 %v1204, %v1203
      %v1212 = vpack.c.b16 %v1206, %v1205
      %v1213 = vpack.c.b16 %v1208, %v1207
      %v1215 = vshrl.u32 %v1209, 16
      %v1217 = vshll.u32 %v1209, 16
      %v1219 = vrot.slane %v1217, 1
      %v1220 = vor.u32 %v1215, %v1219
      %v1222 = vshll.u32 %v1210, 16
      %v1224 = vrot.slane %v1222, 1
      %v1225 = vsel %vm622, %v1220, %v1224
      %v1226 = vshrl.u32 %v1210, 16
      %v1228 = vor.u32 %v1226, %v1224
      %v1230 = vshll.u32 %v1211, 16
      %v1232 = vrot.slane %v1230, 1
      %v1233 = vsel %vm622, %v1228, %v1232
      %v1234 = vshrl.u32 %v1211, 16
      %v1236 = vor.u32 %v1234, %v1232
      %v1238 = vshll.u32 %v1212, 16
      %v1240 = vrot.slane %v1238, 1
      %v1241 = vsel %vm622, %v1236, %v1240
      %v1242 = vshrl.u32 %v1212, 16
      %v1244 = vor.u32 %v1242, %v1240
      %v1246 = vshll.u32 %v1213, 16
      %v1248 = vrot.slane %v1246, 1
      %v1249 = vsel %vm622, %v1244, %v1248
      %v1250 = vshrl.u32 %v1213, 16
      %v1252 = vor.u32 %v1250, %v1248
      %v1274 = vunpack.c.l.b16 %v1173
      %v1275 = vunpack.c.l.b16 %v1174
      %v1276 = vunpack.c.l.b16 %v1175
      %v1277 = vunpack.c.l.b16 %v1176
      %v1278 = vunpack.c.l.b16 %v1177
      %v1279 = vunpack.c.l.b16 %v1178
      %v1280 = vunpack.c.l.b16 %v1179
      %v1281 = vunpack.c.l.b16 %v1180
      %v1282 = vunpack.c.l.b16 %v1181
      %v1283 = vunpack.c.l.b16 %v1182
      %v1284 = vunpack.c.l.b16 %v1183
      %v1285 = vunpack.c.l.b16 %v1184
      %v1286 = vunpack.c.l.b16 %v1185
      %v1287 = vunpack.c.l.b16 %v1186
      %v1288 = vunpack.c.l.b16 %v1187
      %v1289 = vunpack.c.l.b16 %v1188
      %v1290 = vpack.c.b16 %v1275, %v1274
      %v1291 = vpack.c.b16 %v1277, %v1276
      %v1292 = vpack.c.b16 %v1279, %v1278
      %v1293 = vpack.c.b16 %v1281, %v1280
      %v1294 = vpack.c.b16 %v1283, %v1282
      %v1295 = vpack.c.b16 %v1285, %v1284
      %v1296 = vpack.c.b16 %v1287, %v1286
      %v1297 = vpack.c.b16 %v1289, %v1288
      %1306 = vmatprep.subr.bf16.mxu0 0
      %1307 = vmatpush1.bf16.msra.mxu0 %v1297
      %1308 = vmatprep.subr.bf16.mxu0 0
      %1309 = vmatpush1.bf16.msra.mxu0 %v1296
      %1310 = vmatprep.subr.bf16.mxu0 0
      %1311 = vmatpush1.bf16.msra.mxu0 %v1295
      %1312 = vmatprep.subr.bf16.mxu0 0
      %1313 = vmatpush1.bf16.msra.mxu0 %v1294
      %1314 = vmatprep.subr.bf16.mxu0 0
      %1315 = vmatpush1.bf16.msra.mxu0 %v1293
      %1316 = vmatprep.subr.bf16.mxu0 0
      %1317 = vmatpush1.bf16.msra.mxu0 %v1292
      %1318 = vmatprep.subr.bf16.mxu0 0
      %1319 = vmatpush1.bf16.msra.mxu0 %v1291
      %1320 = vmatprep.subr.bf16.mxu0 0
      %1321 = vmatpush1.bf16.msra.mxu0 %v1290
      %1322 = vmatprep.subr.bf16.mxu0 0
      %1323 = vmatpush2.bf16.msra.mxu0 0
      %1324 = vmatprep.subr.bf16.mxu0 0
      %1325 = vmatpush2.bf16.msra.mxu0 0
      %1326 = vmatprep.subr.bf16.mxu0 0
      %1327 = vmatpush2.bf16.msra.mxu0 0
      %1328 = vmatprep.subr.bf16.mxu0 0
      %1329 = vmatpush2.bf16.msra.mxu0 0
      %1330 = vmatprep.subr.bf16.mxu0 0
      %1331 = vmatpush2.bf16.msra.mxu0 0
      %1332 = vmatprep.subr.bf16.mxu0 0
      %1333 = vmatpush2.bf16.msra.mxu0 0
      %1334 = vmatprep.subr.bf16.mxu0 0
      %1335 = vmatpush2.bf16.msra.mxu0 0
      %1336 = vmatprep.subr.bf16.mxu0 0
      %1337 = vmatpush2.bf16.msra.mxu0 0
      %1338 = vmatprep.mubr.bf16.mxu0 0
      %1339 = vmatmul.mubr.bf16.gmra.mxu0 %v1225
      %v1340 = vpop.f32.mrf.mxu0
      %v1341 = vadd.f32 0.0, %v1340
      %v1342 = vpop.f32.mrf.mxu0
      %v1343 = vpop.f32.mrf.mxu0
      %v1344 = vadd.f32 0.0, %v1343
      %v1345 = vpop.f32.mrf.mxu0
      %1346 = vmatprep.mubr.bf16.mxu0 0
      %1347 = vmatmul.mubr.bf16.gmra.mxu0 %v1233
      %v1348 = vpop.f32.mrf.mxu0
      %v1349 = vadd.f32 0.0, %v1348
      %v1350 = vpop.f32.mrf.mxu0
      %v1351 = vpop.f32.mrf.mxu0
      %v1352 = vadd.f32 0.0, %v1351
      %v1353 = vpop.f32.mrf.mxu0
      %1354 = vmatprep.mubr.bf16.mxu0 0
      %1355 = vmatmul.mubr.bf16.gmra.mxu0 %v1241
      %v1356 = vpop.f32.mrf.mxu0
      %v1357 = vadd.f32 0.0, %v1356
      %v1358 = vpop.f32.mrf.mxu0
      %v1359 = vpop.f32.mrf.mxu0
      %v1360 = vadd.f32 0.0, %v1359
      %v1361 = vpop.f32.mrf.mxu0
      %1362 = vmatprep.mubr.bf16.mxu0 0
      %1363 = vmatmul.mubr.bf16.gmra.mxu0 %v1249
      %v1364 = vpop.f32.mrf.mxu0
      %v1365 = vadd.f32 0.0, %v1364
      %v1366 = vpop.f32.mrf.mxu0
      %v1367 = vpop.f32.mrf.mxu0
      %v1368 = vadd.f32 0.0, %v1367
      %v1369 = vpop.f32.mrf.mxu0
      %1370 = vmatprep.mubr.bf16.mxu0 0
      %1371 = vmatmul.mubr.bf16.gmra.mxu0 %v1252
      %v1372 = vpop.f32.mrf.mxu0
      %v1373 = vadd.f32 0.0, %v1372
      %v1374 = vpop.f32.mrf.mxu0
      %v1375 = vpop.f32.mrf.mxu0
      %v1376 = vpop.f32.mrf.mxu0
      %1377 = vdwg.mxu0
      %v1378 = vadd.f32 %v1153, %v1341
      %v1379 = vadd.f32 %v1154, %v1344
      %v1380 = vadd.f32 %v1155, %v1349
      %v1381 = vadd.f32 %v1156, %v1352
      %v1382 = vadd.f32 %v1157, %v1357
      %v1383 = vadd.f32 %v1158, %v1360
      %v1384 = vadd.f32 %v1159, %v1365
      %v1385 = vadd.f32 %v1160, %v1368
      %v1386 = vadd.f32 %v1161, %v1373
      %v1387 = vld [vmem:[%s206 + $0x10] sm:$0xf]
      %v1388 = vld [vmem:[%s206 + $0x20] sm:$0xf]
      %v1389 = vld [vmem:[%s206 + $0x30] sm:$0xf]
      %v1390 = vld [vmem:[%s206 + $0x40] sm:$0xf]
      %v1391 = vld [vmem:[%s206 + $0x50] sm:$0xf]
      %v1392 = vld [vmem:[%s206 + $0x60] sm:$0xf]
      %v1393 = vld [vmem:[%s206 + $0x70] sm:$0xf]
      %v1394 = vld [vmem:[%s206 + $0x80] sm:$0xf]
      %v1395 = vld [vmem:[%s206 + $0x90] sm:$0xf]
      %v1396 = vld [vmem:[%s206 + $0xa0] sm:$0x1]
      %s1397 = scalar_lea.vmem %s210, 384
      %v1398 = vld [vmem:[%s1397] sm:$0xf]
      %v1399 = vld [vmem:[%s1397 + $0x4] sm:$0xf]
      %v1400 = vld [vmem:[%s1397 + $0x8] sm:$0xf]
      %v1401 = vld [vmem:[%s1397 + $0xc] sm:$0xf]
      %v1402 = vld [vmem:[%s1397 + $0x10] sm:$0xf]
      %v1403 = vld [vmem:[%s1397 + $0x14] sm:$0xf]
      %v1404 = vld [vmem:[%s1397 + $0x18] sm:$0xf]
      %v1405 = vld [vmem:[%s1397 + $0x1c] sm:$0xf]
      %v1406 = vld [vmem:[%s1397 + $0x20] sm:$0xf]
      %v1407 = vld [vmem:[%s1397 + $0x24] sm:$0xf]
      %v1408 = vld [vmem:[%s1397 + $0x28] sm:$0xf]
      %v1409 = vld [vmem:[%s1397 + $0x2c] sm:$0xf]
      %v1410 = vld [vmem:[%s1397 + $0x30] sm:$0xf]
      %v1411 = vld [vmem:[%s1397 + $0x34] sm:$0xf]
      %v1412 = vld [vmem:[%s1397 + $0x38] sm:$0xf]
      %v1413 = vld [vmem:[%s1397 + $0x3c] sm:$0xf]
      %v1424 = vunpack.c.l.b16 %v1387
      %v1425 = vunpack.c.l.b16 %v1388
      %v1426 = vunpack.c.l.b16 %v1389
      %v1427 = vunpack.c.l.b16 %v1390
      %v1428 = vunpack.c.l.b16 %v1391
      %v1429 = vunpack.c.l.b16 %v1392
      %v1430 = vunpack.c.l.b16 %v1393
      %v1431 = vunpack.c.l.b16 %v1394
      %v1432 = vunpack.c.l.b16 %v1395
      %v1433 = vunpack.c.l.b16 %v1396
      %v1434 = vpack.c.b16 %v1425, %v1424
      %v1435 = vpack.c.b16 %v1427, %v1426
      %v1436 = vpack.c.b16 %v1429, %v1428
      %v1437 = vpack.c.b16 %v1431, %v1430
      %v1438 = vpack.c.b16 %v1433, %v1432
      %v1440 = vshrl.u32 %v1434, 16
      %v1442 = vshll.u32 %v1434, 16
      %v1444 = vrot.slane %v1442, 1
      %v1445 = vor.u32 %v1440, %v1444
      %v1447 = vshll.u32 %v1435, 16
      %v1449 = vrot.slane %v1447, 1
      %v1450 = vsel %vm622, %v1445, %v1449
      %v1451 = vshrl.u32 %v1435, 16
      %v1453 = vor.u32 %v1451, %v1449
      %v1455 = vshll.u32 %v1436, 16
      %v1457 = vrot.slane %v1455, 1
      %v1458 = vsel %vm622, %v1453, %v1457
      %v1459 = vshrl.u32 %v1436, 16
      %v1461 = vor.u32 %v1459, %v1457
      %v1463 = vshll.u32 %v1437, 16
      %v1465 = vrot.slane %v1463, 1
      %v1466 = vsel %vm622, %v1461, %v1465
      %v1467 = vshrl.u32 %v1437, 16
      %v1469 = vor.u32 %v1467, %v1465
      %v1471 = vshll.u32 %v1438, 16
      %v1473 = vrot.slane %v1471, 1
      %v1474 = vsel %vm622, %v1469, %v1473
      %v1475 = vshrl.u32 %v1438, 16
      %v1477 = vor.u32 %v1475, %v1473
      %v1499 = vunpack.c.l.b16 %v1398
      %v1500 = vunpack.c.l.b16 %v1399
      %v1501 = vunpack.c.l.b16 %v1400
      %v1502 = vunpack.c.l.b16 %v1401
      %v1503 = vunpack.c.l.b16 %v1402
      %v1504 = vunpack.c.l.b16 %v1403
      %v1505 = vunpack.c.l.b16 %v1404
      %v1506 = vunpack.c.l.b16 %v1405
      %v1507 = vunpack.c.l.b16 %v1406
      %v1508 = vunpack.c.l.b16 %v1407
      %v1509 = vunpack.c.l.b16 %v1408
      %v1510 = vunpack.c.l.b16 %v1409
      %v1511 = vunpack.c.l.b16 %v1410
      %v1512 = vunpack.c.l.b16 %v1411
      %v1513 = vunpack.c.l.b16 %v1412
      %v1514 = vunpack.c.l.b16 %v1413
      %v1515 = vpack.c.b16 %v1500, %v1499
      %v1516 = vpack.c.b16 %v1502, %v1501
      %v1517 = vpack.c.b16 %v1504, %v1503
      %v1518 = vpack.c.b16 %v1506, %v1505
      %v1519 = vpack.c.b16 %v1508, %v1507
      %v1520 = vpack.c.b16 %v1510, %v1509
      %v1521 = vpack.c.b16 %v1512, %v1511
      %v1522 = vpack.c.b16 %v1514, %v1513
      %1531 = vmatprep.subr.bf16.mxu0 0
      %1532 = vmatpush1.bf16.msra.mxu0 %v1522
      %1533 = vmatprep.subr.bf16.mxu0 0
      %1534 = vmatpush1.bf16.msra.mxu0 %v1521
      %1535 = vmatprep.subr.bf16.mxu0 0
      %1536 = vmatpush1.bf16.msra.mxu0 %v1520
      %1537 = vmatprep.subr.bf16.mxu0 0
      %1538 = vmatpush1.bf16.msra.mxu0 %v1519
      %1539 = vmatprep.subr.bf16.mxu0 0
      %1540 = vmatpush1.bf16.msra.mxu0 %v1518
      %1541 = vmatprep.subr.bf16.mxu0 0
      %1542 = vmatpush1.bf16.msra.mxu0 %v1517
      %1543 = vmatprep.subr.bf16.mxu0 0
      %1544 = vmatpush1.bf16.msra.mxu0 %v1516
      %1545 = vmatprep.subr.bf16.mxu0 0
      %1546 = vmatpush1.bf16.msra.mxu0 %v1515
      %1547 = vmatprep.subr.bf16.mxu0 0
      %1548 = vmatpush2.bf16.msra.mxu0 0
      %1549 = vmatprep.subr.bf16.mxu0 0
      %1550 = vmatpush2.bf16.msra.mxu0 0
      %1551 = vmatprep.subr.bf16.mxu0 0
      %1552 = vmatpush2.bf16.msra.mxu0 0
      %1553 = vmatprep.subr.bf16.mxu0 0
      %1554 = vmatpush2.bf16.msra.mxu0 0
      %1555 = vmatprep.subr.bf16.mxu0 0
      %1556 = vmatpush2.bf16.msra.mxu0 0
      %1557 = vmatprep.subr.bf16.mxu0 0
      %1558 = vmatpush2.bf16.msra.mxu0 0
      %1559 = vmatprep.subr.bf16.mxu0 0
      %1560 = vmatpush2.bf16.msra.mxu0 0
      %1561 = vmatprep.subr.bf16.mxu0 0
      %1562 = vmatpush2.bf16.msra.mxu0 0
      %1563 = vmatprep.mubr.bf16.mxu0 0
      %1564 = vmatmul.mubr.bf16.gmra.mxu0 %v1450
      %v1565 = vpop.f32.mrf.mxu0
      %v1566 = vadd.f32 0.0, %v1565
      %v1567 = vpop.f32.mrf.mxu0
      %v1568 = vpop.f32.mrf.mxu0
      %v1569 = vadd.f32 0.0, %v1568
      %v1570 = vpop.f32.mrf.mxu0
      %1571 = vmatprep.mubr.bf16.mxu0 0
      %1572 = vmatmul.mubr.bf16.gmra.mxu0 %v1458
      %v1573 = vpop.f32.mrf.mxu0
      %v1574 = vadd.f32 0.0, %v1573
      %v1575 = vpop.f32.mrf.mxu0
      %v1576 = vpop.f32.mrf.mxu0
      %v1577 = vadd.f32 0.0, %v1576
      %v1578 = vpop.f32.mrf.mxu0
      %1579 = vmatprep.mubr.bf16.mxu0 0
      %1580 = vmatmul.mubr.bf16.gmra.mxu0 %v1466
      %v1581 = vpop.f32.mrf.mxu0
      %v1582 = vadd.f32 0.0, %v1581
      %v1583 = vpop.f32.mrf.mxu0
      %v1584 = vpop.f32.mrf.mxu0
      %v1585 = vadd.f32 0.0, %v1584
      %v1586 = vpop.f32.mrf.mxu0
      %1587 = vmatprep.mubr.bf16.mxu0 0
      %1588 = vmatmul.mubr.bf16.gmra.mxu0 %v1474
      %v1589 = vpop.f32.mrf.mxu0
      %v1590 = vadd.f32 0.0, %v1589
      %v1591 = vpop.f32.mrf.mxu0
      %v1592 = vpop.f32.mrf.mxu0
      %v1593 = vadd.f32 0.0, %v1592
      %v1594 = vpop.f32.mrf.mxu0
      %1595 = vmatprep.mubr.bf16.mxu0 0
      %1596 = vmatmul.mubr.bf16.gmra.mxu0 %v1477
      %v1597 = vpop.f32.mrf.mxu0
      %v1598 = vadd.f32 0.0, %v1597
      %v1599 = vpop.f32.mrf.mxu0
      %v1600 = vpop.f32.mrf.mxu0
      %v1601 = vpop.f32.mrf.mxu0
      %1602 = vdwg.mxu0
      %v1603 = vadd.f32 %v1378, %v1566
      %v1604 = vadd.f32 %v1379, %v1569
      %v1605 = vadd.f32 %v1380, %v1574
      %v1606 = vadd.f32 %v1381, %v1577
      %v1607 = vadd.f32 %v1382, %v1582
      %v1608 = vadd.f32 %v1383, %v1585
      %v1609 = vadd.f32 %v1384, %v1590
      %v1610 = vadd.f32 %v1385, %v1593
      %v1611 = vadd.f32 %v1386, %v1598
      %v1612 = vld [vmem:[%s206 + $0x14] sm:$0xf]
      %v1613 = vld [vmem:[%s206 + $0x24] sm:$0xf]
      %v1614 = vld [vmem:[%s206 + $0x34] sm:$0xf]
      %v1615 = vld [vmem:[%s206 + $0x44] sm:$0xf]
      %v1616 = vld [vmem:[%s206 + $0x54] sm:$0xf]
      %v1617 = vld [vmem:[%s206 + $0x64] sm:$0xf]
      %v1618 = vld [vmem:[%s206 + $0x74] sm:$0xf]
      %v1619 = vld [vmem:[%s206 + $0x84] sm:$0xf]
      %v1620 = vld [vmem:[%s206 + $0x94] sm:$0xf]
      %v1621 = vld [vmem:[%s206 + $0xa4] sm:$0x1]
      %s1622 = scalar_lea.vmem %s210, 448
      %v1623 = vld [vmem:[%s1622] sm:$0xf]
      %v1624 = vld [vmem:[%s1622 + $0x4] sm:$0xf]
      %v1625 = vld [vmem:[%s1622 + $0x8] sm:$0xf]
      %v1626 = vld [vmem:[%s1622 + $0xc] sm:$0xf]
      %v1627 = vld [vmem:[%s1622 + $0x10] sm:$0xf]
      %v1628 = vld [vmem:[%s1622 + $0x14] sm:$0xf]
      %v1629 = vld [vmem:[%s1622 + $0x18] sm:$0xf]
      %v1630 = vld [vmem:[%s1622 + $0x1c] sm:$0xf]
      %v1631 = vld [vmem:[%s1622 + $0x20] sm:$0xf]
      %v1632 = vld [vmem:[%s1622 + $0x24] sm:$0xf]
      %v1633 = vld [vmem:[%s1622 + $0x28] sm:$0xf]
      %v1634 = vld [vmem:[%s1622 + $0x2c] sm:$0xf]
      %v1635 = vld [vmem:[%s1622 + $0x30] sm:$0xf]
      %v1636 = vld [vmem:[%s1622 + $0x34] sm:$0xf]
      %v1637 = vld [vmem:[%s1622 + $0x38] sm:$0xf]
      %v1638 = vld [vmem:[%s1622 + $0x3c] sm:$0xf]
      %v1649 = vunpack.c.l.b16 %v1612
      %v1650 = vunpack.c.l.b16 %v1613
      %v1651 = vunpack.c.l.b16 %v1614
      %v1652 = vunpack.c.l.b16 %v1615
      %v1653 = vunpack.c.l.b16 %v1616
      %v1654 = vunpack.c.l.b16 %v1617
      %v1655 = vunpack.c.l.b16 %v1618
      %v1656 = vunpack.c.l.b16 %v1619
      %v1657 = vunpack.c.l.b16 %v1620
      %v1658 = vunpack.c.l.b16 %v1621
      %v1659 = vpack.c.b16 %v1650, %v1649
      %v1660 = vpack.c.b16 %v1652, %v1651
      %v1661 = vpack.c.b16 %v1654, %v1653
      %v1662 = vpack.c.b16 %v1656, %v1655
      %v1663 = vpack.c.b16 %v1658, %v1657
      %v1665 = vshrl.u32 %v1659, 16
      %v1667 = vshll.u32 %v1659, 16
      %v1669 = vrot.slane %v1667, 1
      %v1670 = vor.u32 %v1665, %v1669
      %v1672 = vshll.u32 %v1660, 16
      %v1674 = vrot.slane %v1672, 1
      %v1675 = vsel %vm622, %v1670, %v1674
      %v1676 = vshrl.u32 %v1660, 16
      %v1678 = vor.u32 %v1676, %v1674
      %v1680 = vshll.u32 %v1661, 16
      %v1682 = vrot.slane %v1680, 1
      %v1683 = vsel %vm622, %v1678, %v1682
      %v1684 = vshrl.u32 %v1661, 16
      %v1686 = vor.u32 %v1684, %v1682
      %v1688 = vshll.u32 %v1662, 16
      %v1690 = vrot.slane %v1688, 1
      %v1691 = vsel %vm622, %v1686, %v1690
      %v1692 = vshrl.u32 %v1662, 16
      %v1694 = vor.u32 %v1692, %v1690
      %v1696 = vshll.u32 %v1663, 16
      %v1698 = vrot.slane %v1696, 1
      %v1699 = vsel %vm622, %v1694, %v1698
      %v1700 = vshrl.u32 %v1663, 16
      %v1702 = vor.u32 %v1700, %v1698
      %v1724 = vunpack.c.l.b16 %v1623
      %v1725 = vunpack.c.l.b16 %v1624
      %v1726 = vunpack.c.l.b16 %v1625
      %v1727 = vunpack.c.l.b16 %v1626
      %v1728 = vunpack.c.l.b16 %v1627
      %v1729 = vunpack.c.l.b16 %v1628
      %v1730 = vunpack.c.l.b16 %v1629
      %v1731 = vunpack.c.l.b16 %v1630
      %v1732 = vunpack.c.l.b16 %v1631
      %v1733 = vunpack.c.l.b16 %v1632
      %v1734 = vunpack.c.l.b16 %v1633
      %v1735 = vunpack.c.l.b16 %v1634
      %v1736 = vunpack.c.l.b16 %v1635
      %v1737 = vunpack.c.l.b16 %v1636
      %v1738 = vunpack.c.l.b16 %v1637
      %v1739 = vunpack.c.l.b16 %v1638
      %v1740 = vpack.c.b16 %v1725, %v1724
      %v1741 = vpack.c.b16 %v1727, %v1726
      %v1742 = vpack.c.b16 %v1729, %v1728
      %v1743 = vpack.c.b16 %v1731, %v1730
      %v1744 = vpack.c.b16 %v1733, %v1732
      %v1745 = vpack.c.b16 %v1735, %v1734
      %v1746 = vpack.c.b16 %v1737, %v1736
      %v1747 = vpack.c.b16 %v1739, %v1738
      %1756 = vmatprep.subr.bf16.mxu0 0
      %1757 = vmatpush1.bf16.msra.mxu0 %v1747
      %1758 = vmatprep.subr.bf16.mxu0 0
      %1759 = vmatpush1.bf16.msra.mxu0 %v1746
      %1760 = vmatprep.subr.bf16.mxu0 0
      %1761 = vmatpush1.bf16.msra.mxu0 %v1745
      %1762 = vmatprep.subr.bf16.mxu0 0
      %1763 = vmatpush1.bf16.msra.mxu0 %v1744
      %1764 = vmatprep.subr.bf16.mxu0 0
      %1765 = vmatpush1.bf16.msra.mxu0 %v1743
      %1766 = vmatprep.subr.bf16.mxu0 0
      %1767 = vmatpush1.bf16.msra.mxu0 %v1742
      %1768 = vmatprep.subr.bf16.mxu0 0
      %1769 = vmatpush1.bf16.msra.mxu0 %v1741
      %1770 = vmatprep.subr.bf16.mxu0 0
      %1771 = vmatpush1.bf16.msra.mxu0 %v1740
      %1772 = vmatprep.subr.bf16.mxu0 0
      %1773 = vmatpush2.bf16.msra.mxu0 0
      %1774 = vmatprep.subr.bf16.mxu0 0
      %1775 = vmatpush2.bf16.msra.mxu0 0
      %1776 = vmatprep.subr.bf16.mxu0 0
      %1777 = vmatpush2.bf16.msra.mxu0 0
      %1778 = vmatprep.subr.bf16.mxu0 0
      %1779 = vmatpush2.bf16.msra.mxu0 0
      %1780 = vmatprep.subr.bf16.mxu0 0
      %1781 = vmatpush2.bf16.msra.mxu0 0
      %1782 = vmatprep.subr.bf16.mxu0 0
      %1783 = vmatpush2.bf16.msra.mxu0 0
      %1784 = vmatprep.subr.bf16.mxu0 0
      %1785 = vmatpush2.bf16.msra.mxu0 0
      %1786 = vmatprep.subr.bf16.mxu0 0
      %1787 = vmatpush2.bf16.msra.mxu0 0
      %1788 = vmatprep.mubr.bf16.mxu0 0
      %1789 = vmatmul.mubr.bf16.gmra.mxu0 %v1675
      %v1790 = vpop.f32.mrf.mxu0
      %v1791 = vadd.f32 0.0, %v1790
      %v1792 = vpop.f32.mrf.mxu0
      %v1793 = vpop.f32.mrf.mxu0
      %v1794 = vadd.f32 0.0, %v1793
      %v1795 = vpop.f32.mrf.mxu0
      %1796 = vmatprep.mubr.bf16.mxu0 0
      %1797 = vmatmul.mubr.bf16.gmra.mxu0 %v1683
      %v1798 = vpop.f32.mrf.mxu0
      %v1799 = vadd.f32 0.0, %v1798
      %v1800 = vpop.f32.mrf.mxu0
      %v1801 = vpop.f32.mrf.mxu0
      %v1802 = vadd.f32 0.0, %v1801
      %v1803 = vpop.f32.mrf.mxu0
      %1804 = vmatprep.mubr.bf16.mxu0 0
      %1805 = vmatmul.mubr.bf16.gmra.mxu0 %v1691
      %v1806 = vpop.f32.mrf.mxu0
      %v1807 = vadd.f32 0.0, %v1806
      %v1808 = vpop.f32.mrf.mxu0
      %v1809 = vpop.f32.mrf.mxu0
      %v1810 = vadd.f32 0.0, %v1809
      %v1811 = vpop.f32.mrf.mxu0
      %1812 = vmatprep.mubr.bf16.mxu0 0
      %1813 = vmatmul.mubr.bf16.gmra.mxu0 %v1699
      %v1814 = vpop.f32.mrf.mxu0
      %v1815 = vadd.f32 0.0, %v1814
      %v1816 = vpop.f32.mrf.mxu0
      %v1817 = vpop.f32.mrf.mxu0
      %v1818 = vadd.f32 0.0, %v1817
      %v1819 = vpop.f32.mrf.mxu0
      %1820 = vmatprep.mubr.bf16.mxu0 0
      %1821 = vmatmul.mubr.bf16.gmra.mxu0 %v1702
      %v1822 = vpop.f32.mrf.mxu0
      %v1823 = vadd.f32 0.0, %v1822
      %v1824 = vpop.f32.mrf.mxu0
      %v1825 = vpop.f32.mrf.mxu0
      %v1826 = vpop.f32.mrf.mxu0
      %1827 = vdwg.mxu0
      %v1828 = vadd.f32 %v1603, %v1791
      %v1829 = vadd.f32 %v1604, %v1794
      %v1830 = vadd.f32 %v1605, %v1799
      %v1831 = vadd.f32 %v1606, %v1802
      %v1832 = vadd.f32 %v1607, %v1807
      %v1833 = vadd.f32 %v1608, %v1810
      %v1834 = vadd.f32 %v1609, %v1815
      %v1835 = vadd.f32 %v1610, %v1818
      %v1836 = vadd.f32 %v1611, %v1823
      %v1837 = vld [vmem:[%s206 + $0x10] sm:$0xe]
      %s1838 = scalar_lea.vmem %s210, 512
      %v1839 = vld [vmem:[%s1838] sm:$0xf]
      %v1840 = vld [vmem:[%s1838 + $0x4] sm:$0xf]
      %v1841 = vld [vmem:[%s1838 + $0x8] sm:$0xf]
      %v1842 = vld [vmem:[%s1838 + $0xc] sm:$0xf]
      %v1843 = vld [vmem:[%s1838 + $0x10] sm:$0xf]
      %v1844 = vld [vmem:[%s1838 + $0x14] sm:$0xf]
      %v1845 = vld [vmem:[%s1838 + $0x18] sm:$0xf]
      %v1846 = vld [vmem:[%s1838 + $0x1c] sm:$0xf]
      %v1847 = vld [vmem:[%s1838 + $0x20] sm:$0xf]
      %v1848 = vld [vmem:[%s1838 + $0x24] sm:$0xf]
      %v1849 = vld [vmem:[%s1838 + $0x28] sm:$0xf]
      %v1850 = vld [vmem:[%s1838 + $0x2c] sm:$0xf]
      %v1851 = vld [vmem:[%s1838 + $0x30] sm:$0xf]
      %v1852 = vld [vmem:[%s1838 + $0x34] sm:$0xf]
      %v1853 = vld [vmem:[%s1838 + $0x38] sm:$0xf]
      %v1854 = vld [vmem:[%s1838 + $0x3c] sm:$0xf]
      %v1856 = vunpack.c.l.b16 %v1837
      %v1857 = vpack.c.b16 %v1425, %v1856
      %vm1858 = vcmask 1046528
      %v1859 = vrot.slane %v1857, 1
      %v1860 = vrot.slane %v1435, 1
      %v1861 = vsel %vm1858, %v1859, %v1860
      %v1862 = vrot.slane %v1436, 1
      %v1863 = vsel %vm1858, %v1860, %v1862
      %v1864 = vrot.slane %v1437, 1
      %v1865 = vsel %vm1858, %v1862, %v1864
      %v1866 = vrot.slane %v1438, 1
      %v1867 = vsel %vm1858, %v1864, %v1866
      %v1889 = vunpack.c.l.b16 %v1839
      %v1890 = vunpack.c.l.b16 %v1840
      %v1891 = vunpack.c.l.b16 %v1841
      %v1892 = vunpack.c.l.b16 %v1842
      %v1893 = vunpack.c.l.b16 %v1843
      %v1894 = vunpack.c.l.b16 %v1844
      %v1895 = vunpack.c.l.b16 %v1845
      %v1896 = vunpack.c.l.b16 %v1846
      %v1897 = vunpack.c.l.b16 %v1847
      %v1898 = vunpack.c.l.b16 %v1848
      %v1899 = vunpack.c.l.b16 %v1849
      %v1900 = vunpack.c.l.b16 %v1850
      %v1901 = vunpack.c.l.b16 %v1851
      %v1902 = vunpack.c.l.b16 %v1852
      %v1903 = vunpack.c.l.b16 %v1853
      %v1904 = vunpack.c.l.b16 %v1854
      %v1905 = vpack.c.b16 %v1890, %v1889
      %v1906 = vpack.c.b16 %v1892, %v1891
      %v1907 = vpack.c.b16 %v1894, %v1893
      %v1908 = vpack.c.b16 %v1896, %v1895
      %v1909 = vpack.c.b16 %v1898, %v1897
      %v1910 = vpack.c.b16 %v1900, %v1899
      %v1911 = vpack.c.b16 %v1902, %v1901
      %v1912 = vpack.c.b16 %v1904, %v1903
      %1921 = vmatprep.subr.bf16.mxu0 0
      %1922 = vmatpush1.bf16.msra.mxu0 %v1912
      %1923 = vmatprep.subr.bf16.mxu0 0
      %1924 = vmatpush1.bf16.msra.mxu0 %v1911
      %1925 = vmatprep.subr.bf16.mxu0 0
      %1926 = vmatpush1.bf16.msra.mxu0 %v1910
      %1927 = vmatprep.subr.bf16.mxu0 0
      %1928 = vmatpush1.bf16.msra.mxu0 %v1909
      %1929 = vmatprep.subr.bf16.mxu0 0
      %1930 = vmatpush1.bf16.msra.mxu0 %v1908
      %1931 = vmatprep.subr.bf16.mxu0 0
      %1932 = vmatpush1.bf16.msra.mxu0 %v1907
      %1933 = vmatprep.subr.bf16.mxu0 0
      %1934 = vmatpush1.bf16.msra.mxu0 %v1906
      %1935 = vmatprep.subr.bf16.mxu0 0
      %1936 = vmatpush1.bf16.msra.mxu0 %v1905
      %1937 = vmatprep.subr.bf16.mxu0 0
      %1938 = vmatpush2.bf16.msra.mxu0 0
      %1939 = vmatprep.subr.bf16.mxu0 0
      %1940 = vmatpush2.bf16.msra.mxu0 0
      %1941 = vmatprep.subr.bf16.mxu0 0
      %1942 = vmatpush2.bf16.msra.mxu0 0
      %1943 = vmatprep.subr.bf16.mxu0 0
      %1944 = vmatpush2.bf16.msra.mxu0 0
      %1945 = vmatprep.subr.bf16.mxu0 0
      %1946 = vmatpush2.bf16.msra.mxu0 0
      %1947 = vmatprep.subr.bf16.mxu0 0
      %1948 = vmatpush2.bf16.msra.mxu0 0
      %1949 = vmatprep.subr.bf16.mxu0 0
      %1950 = vmatpush2.bf16.msra.mxu0 0
      %1951 = vmatprep.subr.bf16.mxu0 0
      %1952 = vmatpush2.bf16.msra.mxu0 0
      %1953 = vmatprep.mubr.bf16.mxu0 0
      %1954 = vmatmul.mubr.bf16.gmra.mxu0 %v1861
      %v1955 = vpop.f32.mrf.mxu0
      %v1956 = vadd.f32 0.0, %v1955
      %v1957 = vpop.f32.mrf.mxu0
      %v1958 = vpop.f32.mrf.mxu0
      %v1959 = vadd.f32 0.0, %v1958
      %v1960 = vpop.f32.mrf.mxu0
      %1961 = vmatprep.mubr.bf16.mxu0 0
      %1962 = vmatmul.mubr.bf16.gmra.mxu0 %v1863
      %v1963 = vpop.f32.mrf.mxu0
      %v1964 = vadd.f32 0.0, %v1963
      %v1965 = vpop.f32.mrf.mxu0
      %v1966 = vpop.f32.mrf.mxu0
      %v1967 = vadd.f32 0.0, %v1966
      %v1968 = vpop.f32.mrf.mxu0
      %1969 = vmatprep.mubr.bf16.mxu0 0
      %1970 = vmatmul.mubr.bf16.gmra.mxu0 %v1865
      %v1971 = vpop.f32.mrf.mxu0
      %v1972 = vadd.f32 0.0, %v1971
      %v1973 = vpop.f32.mrf.mxu0
      %v1974 = vpop.f32.mrf.mxu0
      %v1975 = vadd.f32 0.0, %v1974
      %v1976 = vpop.f32.mrf.mxu0
      %1977 = vmatprep.mubr.bf16.mxu0 0
      %1978 = vmatmul.mubr.bf16.gmra.mxu0 %v1867
      %v1979 = vpop.f32.mrf.mxu0
      %v1980 = vadd.f32 0.0, %v1979
      %v1981 = vpop.f32.mrf.mxu0
      %v1982 = vpop.f32.mrf.mxu0
      %v1983 = vadd.f32 0.0, %v1982
      %v1984 = vpop.f32.mrf.mxu0
      %1985 = vmatprep.mubr.bf16.mxu0 0
      %1986 = vmatmul.mubr.bf16.gmra.mxu0 %v1866
      %v1987 = vpop.f32.mrf.mxu0
      %v1988 = vadd.f32 0.0, %v1987
      %v1989 = vpop.f32.mrf.mxu0
      %v1990 = vpop.f32.mrf.mxu0
      %v1991 = vpop.f32.mrf.mxu0
      %1992 = vdwg.mxu0
      %v1993 = vadd.f32 %v1828, %v1956
      %v1994 = vadd.f32 %v1829, %v1959
      %v1995 = vadd.f32 %v1830, %v1964
      %v1996 = vadd.f32 %v1831, %v1967
      %v1997 = vadd.f32 %v1832, %v1972
      %v1998 = vadd.f32 %v1833, %v1975
      %v1999 = vadd.f32 %v1834, %v1980
      %v2000 = vadd.f32 %v1835, %v1983
      %v2001 = vadd.f32 %v1836, %v1988
      %v2002 = vld [vmem:[%s213] sm:$0x1]
      %v2004 = vlaneseq
      %v2005 = vshrl.u32 %v2004, 7
      %v2006 = vsub.s32 0, %v2005
      %v2007 = vrot.slane %v2002, %v2006
      %v2009 = vadd.f32 %v1993, %v2007
      %v2010 = vadd.f32 %v1994, %v2007
      %v2011 = vadd.f32 %v1995, %v2007
      %v2012 = vadd.f32 %v1996, %v2007
      %v2013 = vadd.f32 %v1997, %v2007
      %v2014 = vadd.f32 %v1998, %v2007
      %v2015 = vadd.f32 %v1999, %v2007
      %v2016 = vadd.f32 %v2000, %v2007
      %v2017 = vadd.f32 %v2001, %v2007
      %2018 = vst [vmem:[%s221] sm:$0xff] %v2009
      %2019 = vst [vmem:[%s221 + $0x8] sm:$0xff] %v2010
      %2020 = vst [vmem:[%s221 + $0x10] sm:$0xff] %v2011
      %2021 = vst [vmem:[%s221 + $0x18] sm:$0xff] %v2012
      %2022 = vst [vmem:[%s221 + $0x20] sm:$0xff] %v2013
      %2023 = vst [vmem:[%s221 + $0x28] sm:$0xff] %v2014
      %2024 = vst [vmem:[%s221 + $0x30] sm:$0xff] %v2015
      %2025 = vst [vmem:[%s221 + $0x38] sm:$0xff] %v2016
      %2026 = vst [vmem:[%s221 + $0x40] sm:$0xff] %v2017
      %p2027 = scmp.lt.s32.totalorder %s18, 1
      %s2028 = scalar_select %p2027, %s18, 1
      %p2029 = scmp.lt.s32.totalorder %s19, 0
      %s2030 = scalar_select %p2029, %s19, 0
      %s2031 = smul.addr %s2028, 9
      %s2032 = sadd.s32 %s2030, %s2031
      %s2033 = smul.addr %s2032, 8
      %s2034 = scalar_lea.vmem %s3, %s2033
      // Predicated region
      $region33: #{last_level_p6p7_forward.2} parent=31 // pred_check
        %p2035 = pneg %p124
      $region34: #{last_level_p6p7_forward.2} parent=31 // pred_check_branch
        %2037 = sbr.rel (%p2035) target = $region36
      $region35: #{last_level_p6p7_forward.2} parent=31 // pred_region
        _
      $region36: #{last_level_p6p7_forward.2} parent=31 // pred_fallthru
        _
    $region32: #{last_level_p6p7_forward.2} parent=5 // pred_fallthru
      _
    %p2038 = scmp.le.s32.totalorder 2, %s9
    // Predicated region
    $region37: #{last_level_p6p7_forward.2} parent=5 // pred_check
      %p2039 = pneg %p2038
    $region38: #{last_level_p6p7_forward.2} parent=5 // pred_check_branch
      %2041 = sbr.rel (%p2039) target = $region40
    $region39: #{last_level_p6p7_forward.2} parent=5 // pred_region
      %s2042 = ssub.s32 %s9, 2
      // Predicated region
      $region41: #{last_level_p6p7_forward.2} parent=39 // pred_check
        %p2043 = pneg %p130
      $region42: #{last_level_p6p7_forward.2} parent=39 // pred_check_branch
        %2045 = sbr.rel (%p2043) target = $region44
      $region43: #{last_level_p6p7_forward.2} parent=39 // pred_region
        %p2046 = scmp.lt.s32.totalorder %s20, 1
        %s2047 = scalar_select %p2046, %s20, 1
        %p2048 = scmp.lt.s32.totalorder %s21, 0
        %s2049 = scalar_select %p2048, %s21, 0
        %s2050 = smul.addr %s2047, 9
        %s2051 = sadd.s32 %s2049, %s2050
        %s2052 = smul.addr %s2051, 8
        %s2053 = scalar_lea.vmem %s3, %s2052
      $region44: #{last_level_p6p7_forward.2} parent=39 // pred_fallthru
        _
    $region40: #{last_level_p6p7_forward.2} parent=5 // pred_fallthru
      _
  $region6: #{last_level_p6p7_forward.2} parent=0 // loop_footer
    %s13 = sadd.s32 1, %s9
  $region7: #{last_level_p6p7_forward.2} parent=0 // loop_footer_branch
    %8 = sbr.rel target = $region3
  $region8: #{last_level_p6p7_forward.2} parent=0 // loop_exit
    _

</llo_original>
